<compile_context>
chip_gen: v5e
topology: v5e:2x2
jax: 0.10.0
libtpu: 0.0.40
codegen_flags: <defaults>
</compile_context>

<pallas_src>
import functools

import jax
import jax.numpy as jnp
from jax import lax
from jax.experimental import pallas as pl
from jax.experimental.pallas import tpu as pltpu


def _cdiv(a, b):
    return (a + b - 1) // b


def _round_up(x, m):
    return _cdiv(x, m) * m


def _pick_chunk(L, target=2048):
    """Largest chunk <= target that divides L (prefer multiples of 128)."""
    if L <= target:
        return L
    for d in range(target - target % 128, 127, -128):
        if L % d == 0:
            return d
    for d in range(target, 0, -1):
        if L % d == 0:
            return d
    return L


def _cparams(sem, block_bytes):
    """dimension_semantics + an explicit vmem limit derived from block sizes."""
    limit = int(min(max(4 * block_bytes, 32 * 1024 * 1024), 100 * 1024 * 1024))
    return pltpu.CompilerParams(dimension_semantics=sem,
                                vmem_limit_bytes=limit)


# ----------------------------------------------------------------------------
# Fused bidirectional LSTM: input projection + recurrent scan (fwd & bwd) +
# output projection, one pallas_call, grid over batch-flat tiles.
# ----------------------------------------------------------------------------
def _bilstm_kernel(x_ref, wih_ref, whh_ref, bih_ref, wproj_ref, bproj_ref,
                   o_ref):
    """x_ref    : [T, TBf, Din]  bf16, time-major (forward time order)
       wih_ref  : [2, Din, 4H]   bf16 (dir 0 = fwd, 1 = bwd; gates i,f,g,o)
       whh_ref  : [2, H, 4H]     bf16
       bih_ref  : [2, 1, 4H]     f32
       wproj_ref: [2, H, Ng]     bf16 (output projection, split per direction)
       bproj_ref: [1, Ng]        f32
       o_ref    : [T, TBf, Ng]   f32 = [h_f(t) | h_b(t)] @ W_proj + b_proj."""
    T, TBf, _ = x_ref.shape
    H = whh_ref.shape[1]
    Ng = o_ref.shape[-1]

    # Initialize the projection output with its bias; per-step contributions
    # from both directions are accumulated in-place below.
    o_ref[...] = jnp.broadcast_to(
        bproj_ref[...].reshape(1, 1, Ng), (T, TBf, Ng))

    def cell(gates, c):
        i = jax.nn.sigmoid(gates[:, 0 * H:1 * H])
        f = jax.nn.sigmoid(gates[:, 1 * H:2 * H])
        g = jnp.tanh(gates[:, 2 * H:3 * H])
        o = jax.nn.sigmoid(gates[:, 3 * H:4 * H])
        c_new = f * c + i * g
        h_new = o * jnp.tanh(c_new)
        return h_new.astype(jnp.bfloat16), c_new

    def step(t, carry):
        h_f, c_f, h_b, c_b = carry
        tr = T - 1 - t
        x_t = x_ref[t]                       # forward input at time t
        x_r = x_ref[tr]                      # backward input at time T-1-t
        gf = (jnp.dot(x_t, wih_ref[0], preferred_element_type=jnp.float32)
              + jnp.dot(h_f, whh_ref[0], preferred_element_type=jnp.float32)
              + bih_ref[0])
        gb = (jnp.dot(x_r, wih_ref[1], preferred_element_type=jnp.float32)
              + jnp.dot(h_b, whh_ref[1], preferred_element_type=jnp.float32)
              + bih_ref[1])
        h_f, c_f = cell(gf, c_f)
        h_b, c_b = cell(gb, c_b)
        # Fused output projection: fwd hidden contributes at time t, bwd
        # hidden at time T-1-t (handles time reversal entirely in-kernel).
        o_ref[t] = o_ref[t] + jnp.dot(h_f, wproj_ref[0],
                                      preferred_element_type=jnp.float32)
        o_ref[tr] = o_ref[tr] + jnp.dot(h_b, wproj_ref[1],
                                        preferred_element_type=jnp.float32)
        return h_f, c_f, h_b, c_b

    h0 = jnp.zeros((TBf, H), jnp.bfloat16)
    c0 = jnp.zeros((TBf, H), jnp.float32)
    lax.fori_loop(0, T, step, (h0, c0, h0, c0))


def bilstm(x_tbf, p, tbf_target=128):
    """x_tbf: [T, Bf, Din] time-major -> [T, Bf, Ng] (proj output)."""
    T, Bf, Din = x_tbf.shape
    H = p['whh'].shape[1]
    Ng = p['wproj'].shape[2]
    nb = _cdiv(Bf, tbf_target)
    TBf = _round_up(_cdiv(Bf, nb), 8)
    Bfp = TBf * nb
    xb = x_tbf.astype(jnp.bfloat16)          # bf16 input halves HBM traffic
    if Bfp != Bf:
        xb = jnp.pad(xb, ((0, 0), (0, Bfp - Bf), (0, 0)))

    blk_bytes = (T * TBf * Din * 2 + T * TBf * Ng * 4
                 + 2 * Din * 4 * H * 2 + 2 * H * 4 * H * 2
                 + 2 * 4 * H * 4 + 2 * H * Ng * 2 + Ng * 4)
    out = pl.pallas_call(
        _bilstm_kernel,
        out_shape=jax.ShapeDtypeStruct((T, Bfp, Ng), jnp.float32),
        grid=(nb,),
        in_specs=[
            pl.BlockSpec((T, TBf, Din), lambda i: (0, i, 0)),
            pl.BlockSpec((2, Din, 4 * H), lambda i: (0, 0, 0)),
            pl.BlockSpec((2, H, 4 * H), lambda i: (0, 0, 0)),
            pl.BlockSpec((2, 1, 4 * H), lambda i: (0, 0, 0)),
            pl.BlockSpec((2, H, Ng), lambda i: (0, 0, 0)),
            pl.BlockSpec((1, Ng), lambda i: (0, 0)),
        ],
        out_specs=pl.BlockSpec((T, TBf, Ng), lambda i: (0, i, 0)),
        compiler_params=_cparams(("parallel",), blk_bytes),
    )(xb, p['wih'], p['whh'], p['bih'], p['wproj'], p['bproj'])
    if Bfp != Bf:
        out = out[:, :Bf]
    return out


# ----------------------------------------------------------------------------
# Residual + GroupNorm(1, N, eps=1e-8): out = x + norm(branch)
# Two kernels, tiled over L = K*S: chunked Welford stats, then apply.
# ----------------------------------------------------------------------------
def _gn_stats_kernel(br_ref, mean_ref, m2_ref):
    l = pl.program_id(1)
    br = br_ref[...]                                # (1, N, TL) f32
    n_b = float(br.size)
    s = jnp.sum(br, axis=2, keepdims=True)
    s = jnp.sum(s, axis=1, keepdims=True)           # (1, 1, 1)
    mean_b = s / n_b
    d = br - mean_b
    m2 = jnp.sum(d * d, axis=2, keepdims=True)
    m2_b = jnp.sum(m2, axis=1, keepdims=True)        # (1, 1, 1)

    @pl.when(l == 0)
    def _():
        mean_ref[...] = mean_b
        m2_ref[...] = m2_b

    @pl.when(l > 0)
    def _():
        # Chan / parallel-Welford combine of the running stats with the chunk.
        n_a = n_b * l.astype(jnp.float32)
        n_ab = n_a + n_b
        mean_a = mean_ref[...]
        m2_a = m2_ref[...]
        delta = mean_b - mean_a
        mean_ref[...] = mean_a + delta * (n_b / n_ab)
        m2_ref[...] = m2_a + m2_b + (delta * delta) * (n_a * (n_b / n_ab))


def _gn_apply_kernel(x_ref, br_ref, scale_ref, shift_ref, o_ref):
    o_ref[...] = x_ref[...] + br_ref[...] * scale_ref[...] + shift_ref[...]


def groupnorm_residual(x, branch, w, b, eps=1e-8, tile_l=2048):
    """x, branch: [B, N, K, S] -> x + GroupNorm(1, N)(branch)."""
    B, N, K, S = x.shape
    L = K * S
    TL = _pick_chunk(L, tile_l)
    nL = L // TL
    xr = x.reshape(B, N, L)
    br = branch.reshape(B, N, L)

    stat_blk = N * TL * 4 + 8
    mean_s, m2_s = pl.pallas_call(
        _gn_stats_kernel,
        out_shape=(jax.ShapeDtypeStruct((B, 1, 1), jnp.float32),
                   jax.ShapeDtypeStruct((B, 1, 1), jnp.float32)),
        grid=(B, nL),
        in_specs=[pl.BlockSpec((1, N, TL), lambda bb, ll: (bb, 0, ll))],
        out_specs=(pl.BlockSpec((1, 1, 1), lambda bb, ll: (bb, 0, 0)),
                   pl.BlockSpec((1, 1, 1), lambda bb, ll: (bb, 0, 0))),
        compiler_params=_cparams(("parallel", "arbitrary"), stat_blk),
    )(br)

    cnt = jnp.float32(N * L)
    mean = mean_s[:, 0, 0]                               # [B]
    var = jnp.maximum(m2_s[:, 0, 0] / cnt, 0.0)
    inv = lax.rsqrt(var + eps)                           # [B]
    scale = w[None, :] * inv[:, None]                    # [B, N]
    shift = b[None, :] - mean[:, None] * scale           # [B, N]

    apply_blk = 3 * N * TL * 4 + 2 * N * 4
    out = pl.pallas_call(
        _gn_apply_kernel,
        out_shape=jax.ShapeDtypeStruct((B, N, L), jnp.float32),
        grid=(B, nL),
        in_specs=[pl.BlockSpec((1, N, TL), lambda bb, ll: (bb, 0, ll)),
                  pl.BlockSpec((1, N, TL), lambda bb, ll: (bb, 0, ll)),
                  pl.BlockSpec((1, N, 1), lambda bb, ll: (bb, 0, 0)),
                  pl.BlockSpec((1, N, 1), lambda bb, ll: (bb, 0, 0))],
        out_specs=pl.BlockSpec((1, N, TL), lambda bb, ll: (bb, 0, ll)),
        compiler_params=_cparams(("parallel", "parallel"), apply_blk),
    )(xr, br, scale.reshape(B, N, 1), shift.reshape(B, N, 1))
    return out.reshape(B, N, K, S)


# ----------------------------------------------------------------------------
# Group communication (simplified): mean over groups + shared Ng x Ng linear
# + PReLU + broadcast residual, fused on the lane-dense [B, N, K*S] layout.
# ----------------------------------------------------------------------------
def _group_comm_kernel(x_ref, w_ref, b_ref, a_ref, o_ref, *, G):
    a = a_ref[0]                                     # PReLU slope from SMEM
    x = x_ref[0]                                     # (N, TL) f32
    N, TL = x.shape
    Ng = N // G
    acc = x[0:Ng]
    for g in range(1, G):
        acc = acc + x[g * Ng:(g + 1) * Ng]
    gmean = acc * (1.0 / G)                          # (Ng, TL)
    y = jnp.dot(w_ref[...], gmean.astype(jnp.bfloat16),
                preferred_element_type=jnp.float32) + b_ref[...]
    y = jnp.where(y >= 0, y, a * y)
    for g in range(G):
        o_ref[0, g * Ng:(g + 1) * Ng, :] = x[g * Ng:(g + 1) * Ng] + y


def group_comm(x, lp, G, tile_l=2048):
    B, N, K, S = x.shape
    Ng = N // G
    L = K * S
    TL = _pick_chunk(L, tile_l)
    nL = L // TL
    blk = 2 * N * TL * 4 + Ng * Ng * 2 + Ng * 4
    out = pl.pallas_call(
        functools.partial(_group_comm_kernel, G=G),
        out_shape=jax.ShapeDtypeStruct((B, N, L), jnp.float32),
        grid=(B, nL),
        in_specs=[
            pl.BlockSpec((1, N, TL), lambda bb, ll: (bb, 0, ll)),
            pl.BlockSpec((Ng, Ng), lambda bb, ll: (0, 0)),
            pl.BlockSpec((Ng, 1), lambda bb, ll: (0, 0)),
            pl.BlockSpec(memory_space=pltpu.MemorySpace.SMEM),
        ],
        out_specs=pl.BlockSpec((1, N, TL), lambda bb, ll: (bb, 0, ll)),
        compiler_params=_cparams(("parallel", "parallel"), blk),
    )(x.reshape(B, N, L), lp['w_gc_t'], lp['b_gc'].reshape(Ng, 1),
      lp['alpha_gc'])
    return out.reshape(B, N, K, S)


# ----------------------------------------------------------------------------
# Output head: PReLU + 1x1 conv (N -> O), fused, lane-dense [B, N, K*S].
# ----------------------------------------------------------------------------
def _out_conv_kernel(x_ref, w_ref, b_ref, a_ref, o_ref):
    a = a_ref[0]
    x = x_ref[0]                                     # (N, TL)
    x = jnp.where(x >= 0, x, a * x)
    y = jnp.dot(w_ref[...], x.astype(jnp.bfloat16),
                preferred_element_type=jnp.float32) + b_ref[...]
    o_ref[...] = y[None]


def output_conv(x, params, tile_l=2048):
    B, N, K, S = x.shape
    L = K * S
    O = params['conv_w_t'].shape[0]
    TL = _pick_chunk(L, tile_l)
    nL = L // TL
    blk = N * TL * 4 + O * TL * 4 + O * N * 2 + O * 4
    out = pl.pallas_call(
        _out_conv_kernel,
        out_shape=jax.ShapeDtypeStruct((B, O, L), jnp.float32),
        grid=(B, nL),
        in_specs=[
            pl.BlockSpec((1, N, TL), lambda bb, ll: (bb, 0, ll)),
            pl.BlockSpec((O, N), lambda bb, ll: (0, 0)),
            pl.BlockSpec((O, 1), lambda bb, ll: (0, 0)),
            pl.BlockSpec(memory_space=pltpu.MemorySpace.SMEM),
        ],
        out_specs=pl.BlockSpec((1, O, TL), lambda bb, ll: (bb, 0, ll)),
        compiler_params=_cparams(("parallel", "parallel"), blk),
    )(x.reshape(B, N, L), params['conv_w_t'],
      params['conv_b'].reshape(O, 1), params['alpha_out'])
    return out.reshape(B, O, K, S)


# ----------------------------------------------------------------------------
# split_feature / merge_feature (dual-path segmentation, 50% overlap)
# ----------------------------------------------------------------------------
def split_feature(x, segment_size):
    B, N, T = x.shape
    stride = segment_size // 2
    rest = segment_size - (stride + T % segment_size) % segment_size
    if rest > 0:
        x = jnp.concatenate([x, jnp.zeros((B, N, rest), x.dtype)], axis=2)
    pad_aux = jnp.zeros((B, N, stride), x.dtype)
    x = jnp.concatenate([pad_aux, x, pad_aux], axis=2)
    seg1 = x[:, :, :-stride].reshape(B, N, -1, segment_size)
    seg2 = x[:, :, stride:].reshape(B, N, -1, segment_size)
    segments = jnp.concatenate([seg1, seg2], axis=3)
    segments = segments.reshape(B, N, -1, segment_size).transpose(0, 1, 3, 2)
    return segments, rest


def merge_feature(x, rest):
    BS, N, K, S = x.shape
    stride = K // 2
    x = x.transpose(0, 1, 3, 2).reshape(BS, N, -1, K * 2)
    x1 = x[:, :, :, :K].reshape(BS, N, -1)[:, :, stride:]
    x2 = x[:, :, :, K:].reshape(BS, N, -1)[:, :, :-stride]
    out = x1 + x2                 # overlap-add: let XLA fuse with the slices
    if rest > 0:
        out = out[:, :, :-rest]
    return out


# ----------------------------------------------------------------------------
# Grouped dual-path BiLSTM (seq_model stand-in)
# ----------------------------------------------------------------------------
def dprnn_forward(x, params, num_group, num_layers):
    """x: [B, N, K, S] -> [B, output_dim*num_spk, K, S]."""
    B, N, K, S = x.shape
    G = num_group
    Ng = N // G
    for li in range(num_layers):
        lp = params['layers'][li]
        # ---- intra-block (row) BiLSTM along K, weights shared across groups
        xg = x.reshape(B, G, Ng, K, S)
        row_in = xg.transpose(3, 0, 4, 1, 2).reshape(K, B * S * G, Ng)
        row_out = bilstm(row_in, lp['row'])                   # [K, B*S*G, Ng]
        row_out = row_out.reshape(K, B, S, G, Ng)
        row_out = row_out.transpose(1, 3, 4, 0, 2).reshape(B, N, K, S)
        x = groupnorm_residual(x, row_out, lp['row_norm_w'], lp['row_norm_b'])
        # ---- inter-block (col) BiLSTM along S
        xg = x.reshape(B, G, Ng, K, S)
        col_in = xg.transpose(4, 0, 3, 1, 2).reshape(S, B * K * G, Ng)
        col_out = bilstm(col_in, lp['col'])                   # [S, B*K*G, Ng]
        col_out = col_out.reshape(S, B, K, G, Ng)
        col_out = col_out.transpose(1, 3, 4, 2, 0).reshape(B, N, K, S)
        x = groupnorm_residual(x, col_out, lp['col_norm_w'], lp['col_norm_b'])
        # ---- group communication (fused mean + linear + PReLU + residual)
        x = group_comm(x, lp, G)
    # ---- output head: PReLU + 1x1 conv fused on lane-dense layout
    return output_conv(x, params)


# ----------------------------------------------------------------------------
# DP_Wrapper forward
# ----------------------------------------------------------------------------
def dp_wrapper_forward(x, params, cfg):
    B = x.shape[0]
    blocks, rest = split_feature(x, cfg['block_size'])            # [B,N,K,S]
    out = dprnn_forward(blocks, params, cfg['num_group'], cfg['layer'])
    K = cfg['block_size']
    out = out.reshape(B * cfg['num_spk'], cfg['input_dim'], K, -1)
    out = merge_feature(out, rest)                                 # [B*spk,N,T]
    out = out.reshape(B, cfg['num_spk'], cfg['output_dim'], -1)
    return out


# ----------------------------------------------------------------------------
# Deterministic parameter init (weights stored in kernel-ready layouts)
# ----------------------------------------------------------------------------
def init_params(key, cfg):
    N = cfg['input_dim']
    H = cfg['hidden_dim']
    G = cfg['num_group']
    O = cfg['output_dim'] * cfg['num_spk']
    assert N % G == 0
    assert cfg['input_dim'] == cfg['output_dim'], \
        "wrapper view requires output_dim == input_dim"
    Ng = N // G
    cnt = [0]

    def nxt(shape, scale=0.1, dtype=jnp.float32):
        cnt[0] += 1
        v = scale * jax.random.normal(jax.random.fold_in(key, cnt[0]),
                                      shape, jnp.float32)
        return v.astype(dtype)

    def rnn_block():
        return dict(
            wih=nxt((2, Ng, 4 * H), dtype=jnp.bfloat16),   # [dir, in, 4H]
            whh=nxt((2, H, 4 * H), dtype=jnp.bfloat16),    # [dir, H, 4H]
            bih=nxt((2, 1, 4 * H)),                        # [dir, 1, 4H]
            wproj=nxt((2, H, Ng), dtype=jnp.bfloat16),     # [dir, H, Ng]
            bproj=nxt((1, Ng)))

    layers = []
    for _ in range(cfg['layer']):
        layers.append(dict(
            row=rnn_block(), col=rnn_block(),
            row_norm_w=jnp.ones((N,), jnp.float32),
            row_norm_b=jnp.zeros((N,), jnp.float32),
            col_norm_w=jnp.ones((N,), jnp.float32),
            col_norm_b=jnp.zeros((N,), jnp.float32),
            w_gc_t=nxt((Ng, Ng), dtype=jnp.bfloat16),      # (out, in)
            b_gc=nxt((Ng,)),
            alpha_gc=jnp.full((1,), 0.25, jnp.float32)))
    return dict(layers=layers,
                conv_w_t=nxt((O, N), dtype=jnp.bfloat16),  # (out, in)
                conv_b=nxt((O,)),
                alpha_out=jnp.full((1,), 0.25, jnp.float32))


if __name__ == "__main__":
    cfg = dict(input_dim=16, hidden_dim=16, output_dim=16, num_spk=2,
               num_group=4, layer=2, block_size=16)
    key = jax.random.PRNGKey(0)
    params = init_params(key, cfg)
    T = 40
    x = jax.random.normal(jax.random.fold_in(key, 12345),
                          (2, cfg['input_dim'], T), jnp.float32)
    fwd = jax.jit(functools.partial(dp_wrapper_forward, cfg=cfg))
    out = jax.block_until_ready(fwd(x, params))
    assert out.shape == (2, cfg['num_spk'], cfg['output_dim'], T), out.shape
    assert bool(jnp.all(jnp.isfinite(out)))
    print("KERNEL_OK")
</pallas_src>

<mosaic_0001>
module attributes {stable_mosaic.version = 11 : i64} {
  func.func @_bilstm_kernel(%arg0: i32, %arg1: memref<16x64x4xbf16, #tpu.memory_space<vmem>>, %arg2: memref<2x4x64xbf16, #tpu.memory_space<vmem>>, %arg3: memref<2x16x64xbf16, #tpu.memory_space<vmem>>, %arg4: memref<2x1x64xf32, #tpu.memory_space<vmem>>, %arg5: memref<2x16x4xbf16, #tpu.memory_space<vmem>>, %arg6: memref<1x4xf32, #tpu.memory_space<vmem>>, %arg7: memref<16x64x4xf32, #tpu.memory_space<vmem>>) attributes {dimension_semantics = [#tpu.dimension_semantics<parallel>], iteration_bounds = array<i64: 1>, scalar_prefetch = 0 : i64, scratch_operands = 0 : i64, tpu.core_type = #tpu.core_type<tc>, window_params = [{transform_indices = @transform_0, window_bounds = array<i64: 16, 64, 4>}, {pipeline_mode = #tpu.pipeline_mode<synchronous>, transform_indices = @transform_1, window_bounds = array<i64: 2, 4, 64>}, {pipeline_mode = #tpu.pipeline_mode<synchronous>, transform_indices = @transform_2, window_bounds = array<i64: 2, 16, 64>}, {pipeline_mode = #tpu.pipeline_mode<synchronous>, transform_indices = @transform_3, window_bounds = array<i64: 2, 1, 64>}, {pipeline_mode = #tpu.pipeline_mode<synchronous>, transform_indices = @transform_4, window_bounds = array<i64: 2, 16, 4>}, {pipeline_mode = #tpu.pipeline_mode<synchronous>, transform_indices = @transform_5, window_bounds = array<i64: 1, 4>}, {transform_indices = @transform_6, window_bounds = array<i64: 16, 64, 4>}]} {
    %c0 = arith.constant 0 : index
    %c0_0 = arith.constant 0 : index
    %0 = vector.load %arg6[%c0, %c0_0] : memref<1x4xf32, #tpu.memory_space<vmem>>, vector<1x4xf32>
    %1 = vector.shape_cast %0 : vector<1x4xf32> to vector<1x1x4xf32>
    %2 = vector.shape_cast %1 : vector<1x1x4xf32> to vector<1x1x4xf32>
    %3 = vector.broadcast %2 : vector<1x1x4xf32> to vector<16x64x4xf32>
    %c0_1 = arith.constant 0 : index
    %c0_2 = arith.constant 0 : index
    %c0_3 = arith.constant 0 : index
    %4 = vector.load %arg7[%c0_1, %c0_2, %c0_3] : memref<16x64x4xf32, #tpu.memory_space<vmem>>, vector<16x64x4xf32>
    tpu.vector_store %arg7[%c0_1, %c0_2, %c0_3], %3 {strides = array<i32>} : memref<16x64x4xf32, #tpu.memory_space<vmem>>, vector<16x64x4xf32>,
    %cst = arith.constant 0.000000e+00 : bf16
    %5 = vector.broadcast %cst : bf16 to vector<64x16xbf16>
    %cst_4 = arith.constant 0.000000e+00 : f32
    %6 = vector.broadcast %cst_4 : f32 to vector<64x16xf32>
    %c0_i32 = arith.constant 0 : i32
    %c16_i32 = arith.constant 16 : i32
    %7 = arith.addi %c0_i32, %c16_i32 : i32
    %c1_i32 = arith.constant 1 : i32
    %8:4 = scf.for %arg8 = %c0_i32 to %7 step %c1_i32 iter_args(%arg9 = %5, %arg10 = %6, %arg11 = %5, %arg12 = %6) -> (vector<64x16xbf16>, vector<64x16xf32>, vector<64x16xbf16>, vector<64x16xf32>)  : i32 {
      %c15_i32 = arith.constant 15 : i32
      %9 = arith.subi %c15_i32, %arg8 : i32
      %10 = arith.index_cast %arg8 : i32 to index
      %c0_6 = arith.constant 0 : index
      %c0_7 = arith.constant 0 : index
      %11 = vector.load %arg1[%10, %c0_6, %c0_7] : memref<16x64x4xbf16, #tpu.memory_space<vmem>>, vector<1x64x4xbf16>
      %12 = vector.shape_cast %11 : vector<1x64x4xbf16> to vector<64x4xbf16>
      %13 = arith.index_cast %9 : i32 to index
      %c0_8 = arith.constant 0 : index
      %c0_9 = arith.constant 0 : index
      %14 = vector.load %arg1[%13, %c0_8, %c0_9] : memref<16x64x4xbf16, #tpu.memory_space<vmem>>, vector<1x64x4xbf16>
      %15 = vector.shape_cast %14 : vector<1x64x4xbf16> to vector<64x4xbf16>
      %c0_10 = arith.constant 0 : index
      %c0_11 = arith.constant 0 : index
      %c0_12 = arith.constant 0 : index
      %16 = vector.load %arg2[%c0_10, %c0_11, %c0_12] : memref<2x4x64xbf16, #tpu.memory_space<vmem>>, vector<1x4x64xbf16>
      %17 = vector.shape_cast %16 : vector<1x4x64xbf16> to vector<4x64xbf16>
      %cst_13 = arith.constant dense<0.000000e+00> : vector<64x64xf32>
      %18 = tpu.matmul %12, %17, %cst_13 {dimension_numbers = #tpu.dot_dimension_numbers<[1], [0], [0], [1], [0, 0, 1, 1], [], []>} : vector<64x4xbf16>, vector<4x64xbf16>, vector<64x64xf32> -> vector<64x64xf32>
      %c0_14 = arith.constant 0 : index
      %c0_15 = arith.constant 0 : index
      %c0_16 = arith.constant 0 : index
      %19 = vector.load %arg3[%c0_14, %c0_15, %c0_16] : memref<2x16x64xbf16, #tpu.memory_space<vmem>>, vector<1x16x64xbf16>
      %20 = vector.shape_cast %19 : vector<1x16x64xbf16> to vector<16x64xbf16>
      %cst_17 = arith.constant dense<0.000000e+00> : vector<64x64xf32>
      %21 = tpu.matmul %arg9, %20, %cst_17 {dimension_numbers = #tpu.dot_dimension_numbers<[1], [0], [0], [1], [0, 0, 1, 1], [], []>} : vector<64x16xbf16>, vector<16x64xbf16>, vector<64x64xf32> -> vector<64x64xf32>
      %22 = arith.addf %18, %21 : vector<64x64xf32>
      %c0_18 = arith.constant 0 : index
      %c0_19 = arith.constant 0 : index
      %c0_20 = arith.constant 0 : index
      %23 = vector.load %arg4[%c0_18, %c0_19, %c0_20] : memref<2x1x64xf32, #tpu.memory_space<vmem>>, vector<1x1x64xf32>
      %24 = vector.shape_cast %23 : vector<1x1x64xf32> to vector<1x64xf32>
      %25 = vector.broadcast %24 : vector<1x64xf32> to vector<64x64xf32>
      %26 = arith.addf %22, %25 : vector<64x64xf32>
      %c1 = arith.constant 1 : index
      %c0_21 = arith.constant 0 : index
      %c0_22 = arith.constant 0 : index
      %27 = vector.load %arg2[%c1, %c0_21, %c0_22] : memref<2x4x64xbf16, #tpu.memory_space<vmem>>, vector<1x4x64xbf16>
      %28 = vector.shape_cast %27 : vector<1x4x64xbf16> to vector<4x64xbf16>
      %cst_23 = arith.constant dense<0.000000e+00> : vector<64x64xf32>
      %29 = tpu.matmul %15, %28, %cst_23 {dimension_numbers = #tpu.dot_dimension_numbers<[1], [0], [0], [1], [0, 0, 1, 1], [], []>} : vector<64x4xbf16>, vector<4x64xbf16>, vector<64x64xf32> -> vector<64x64xf32>
      %c1_24 = arith.constant 1 : index
      %c0_25 = arith.constant 0 : index
      %c0_26 = arith.constant 0 : index
      %30 = vector.load %arg3[%c1_24, %c0_25, %c0_26] : memref<2x16x64xbf16, #tpu.memory_space<vmem>>, vector<1x16x64xbf16>
      %31 = vector.shape_cast %30 : vector<1x16x64xbf16> to vector<16x64xbf16>
      %cst_27 = arith.constant dense<0.000000e+00> : vector<64x64xf32>
      %32 = tpu.matmul %arg11, %31, %cst_27 {dimension_numbers = #tpu.dot_dimension_numbers<[1], [0], [0], [1], [0, 0, 1, 1], [], []>} : vector<64x16xbf16>, vector<16x64xbf16>, vector<64x64xf32> -> vector<64x64xf32>
      %33 = arith.addf %29, %32 : vector<64x64xf32>
      %c1_28 = arith.constant 1 : index
      %c0_29 = arith.constant 0 : index
      %c0_30 = arith.constant 0 : index
      %34 = vector.load %arg4[%c1_28, %c0_29, %c0_30] : memref<2x1x64xf32, #tpu.memory_space<vmem>>, vector<1x1x64xf32>
      %35 = vector.shape_cast %34 : vector<1x1x64xf32> to vector<1x64xf32>
      %36 = vector.broadcast %35 : vector<1x64xf32> to vector<64x64xf32>
      %37 = arith.addf %33, %36 : vector<64x64xf32>
      %38 = vector.extract_strided_slice %26 {offsets = [0, 0], sizes = [64, 16], strides = [1, 1]} : vector<64x64xf32> to vector<64x16xf32>
      %39 = arith.negf %38 : vector<64x16xf32>
      %40 = math.exp %39 : vector<64x16xf32>
      %cst_31 = arith.constant 1.000000e+00 : f32
      %41 = vector.broadcast %cst_31 : f32 to vector<64x16xf32>
      %42 = arith.addf %41, %40 : vector<64x16xf32>
      %43 = arith.divf %41, %42 : vector<64x16xf32>
      %44 = vector.extract_strided_slice %26 {offsets = [0, 16], sizes = [64, 16], strides = [1, 1]} : vector<64x64xf32> to vector<64x16xf32>
      %45 = arith.negf %44 : vector<64x16xf32>
      %46 = math.exp %45 : vector<64x16xf32>
      %cst_32 = arith.constant 1.000000e+00 : f32
      %47 = vector.broadcast %cst_32 : f32 to vector<64x16xf32>
      %48 = arith.addf %47, %46 : vector<64x16xf32>
      %49 = arith.divf %47, %48 : vector<64x16xf32>
      %50 = vector.extract_strided_slice %26 {offsets = [0, 32], sizes = [64, 16], strides = [1, 1]} : vector<64x64xf32> to vector<64x16xf32>
      %51 = math.tanh %50 : vector<64x16xf32>
      %52 = vector.extract_strided_slice %26 {offsets = [0, 48], sizes = [64, 16], strides = [1, 1]} : vector<64x64xf32> to vector<64x16xf32>
      %53 = arith.negf %52 : vector<64x16xf32>
      %54 = math.exp %53 : vector<64x16xf32>
      %cst_33 = arith.constant 1.000000e+00 : f32
      %55 = vector.broadcast %cst_33 : f32 to vector<64x16xf32>
      %56 = arith.addf %55, %54 : vector<64x16xf32>
      %57 = arith.divf %55, %56 : vector<64x16xf32>
      %58 = arith.mulf %49, %arg10 : vector<64x16xf32>
      %59 = arith.mulf %43, %51 : vector<64x16xf32>
      %60 = arith.addf %58, %59 : vector<64x16xf32>
      %61 = math.tanh %60 : vector<64x16xf32>
      %62 = arith.mulf %57, %61 : vector<64x16xf32>
      %63 = arith.truncf %62 : vector<64x16xf32> to vector<64x16xbf16>
      %64 = vector.extract_strided_slice %37 {offsets = [0, 0], sizes = [64, 16], strides = [1, 1]} : vector<64x64xf32> to vector<64x16xf32>
      %65 = arith.negf %64 : vector<64x16xf32>
      %66 = math.exp %65 : vector<64x16xf32>
      %cst_34 = arith.constant 1.000000e+00 : f32
      %67 = vector.broadcast %cst_34 : f32 to vector<64x16xf32>
      %68 = arith.addf %67, %66 : vector<64x16xf32>
      %69 = arith.divf %67, %68 : vector<64x16xf32>
      %70 = vector.extract_strided_slice %37 {offsets = [0, 16], sizes = [64, 16], strides = [1, 1]} : vector<64x64xf32> to vector<64x16xf32>
      %71 = arith.negf %70 : vector<64x16xf32>
      %72 = math.exp %71 : vector<64x16xf32>
      %cst_35 = arith.constant 1.000000e+00 : f32
      %73 = vector.broadcast %cst_35 : f32 to vector<64x16xf32>
      %74 = arith.addf %73, %72 : vector<64x16xf32>
      %75 = arith.divf %73, %74 : vector<64x16xf32>
      %76 = vector.extract_strided_slice %37 {offsets = [0, 32], sizes = [64, 16], strides = [1, 1]} : vector<64x64xf32> to vector<64x16xf32>
      %77 = math.tanh %76 : vector<64x16xf32>
      %78 = vector.extract_strided_slice %37 {offsets = [0, 48], sizes = [64, 16], strides = [1, 1]} : vector<64x64xf32> to vector<64x16xf32>
      %79 = arith.negf %78 : vector<64x16xf32>
      %80 = math.exp %79 : vector<64x16xf32>
      %cst_36 = arith.constant 1.000000e+00 : f32
      %81 = vector.broadcast %cst_36 : f32 to vector<64x16xf32>
      %82 = arith.addf %81, %80 : vector<64x16xf32>
      %83 = arith.divf %81, %82 : vector<64x16xf32>
      %84 = arith.mulf %75, %arg12 : vector<64x16xf32>
      %85 = arith.mulf %69, %77 : vector<64x16xf32>
      %86 = arith.addf %84, %85 : vector<64x16xf32>
      %87 = math.tanh %86 : vector<64x16xf32>
      %88 = arith.mulf %83, %87 : vector<64x16xf32>
      %89 = arith.truncf %88 : vector<64x16xf32> to vector<64x16xbf16>
      %90 = arith.index_cast %arg8 : i32 to index
      %c0_37 = arith.constant 0 : index
      %c0_38 = arith.constant 0 : index
      %91 = vector.load %arg7[%90, %c0_37, %c0_38] : memref<16x64x4xf32, #tpu.memory_space<vmem>>, vector<1x64x4xf32>
      %92 = vector.shape_cast %91 : vector<1x64x4xf32> to vector<64x4xf32>
      %c0_39 = arith.constant 0 : index
      %c0_40 = arith.constant 0 : index
      %c0_41 = arith.constant 0 : index
      %93 = vector.load %arg5[%c0_39, %c0_40, %c0_41] : memref<2x16x4xbf16, #tpu.memory_space<vmem>>, vector<1x16x4xbf16>
      %94 = vector.shape_cast %93 : vector<1x16x4xbf16> to vector<16x4xbf16>
      %cst_42 = arith.constant dense<0.000000e+00> : vector<64x4xf32>
      %95 = tpu.matmul %63, %94, %cst_42 {dimension_numbers = #tpu.dot_dimension_numbers<[1], [0], [0], [1], [0, 0, 1, 1], [], []>} : vector<64x16xbf16>, vector<16x4xbf16>, vector<64x4xf32> -> vector<64x4xf32>
      %96 = arith.addf %92, %95 : vector<64x4xf32>
      %97 = arith.index_cast %arg8 : i32 to index
      %c0_43 = arith.constant 0 : index
      %c0_44 = arith.constant 0 : index
      %98 = vector.load %arg7[%97, %c0_43, %c0_44] : memref<16x64x4xf32, #tpu.memory_space<vmem>>, vector<1x64x4xf32>
      %99 = vector.shape_cast %98 : vector<1x64x4xf32> to vector<64x4xf32>
      %100 = vector.shape_cast %96 : vector<64x4xf32> to vector<1x64x4xf32>
      tpu.vector_store %arg7[%97, %c0_43, %c0_44], %100 {strides = array<i32>} : memref<16x64x4xf32, #tpu.memory_space<vmem>>, vector<1x64x4xf32>,
      %101 = arith.index_cast %9 : i32 to index
      %c0_45 = arith.constant 0 : index
      %c0_46 = arith.constant 0 : index
      %102 = vector.load %arg7[%101, %c0_45, %c0_46] : memref<16x64x4xf32, #tpu.memory_space<vmem>>, vector<1x64x4xf32>
      %103 = vector.shape_cast %102 : vector<1x64x4xf32> to vector<64x4xf32>
      %c1_47 = arith.constant 1 : index
      %c0_48 = arith.constant 0 : index
      %c0_49 = arith.constant 0 : index
      %104 = vector.load %arg5[%c1_47, %c0_48, %c0_49] : memref<2x16x4xbf16, #tpu.memory_space<vmem>>, vector<1x16x4xbf16>
      %105 = vector.shape_cast %104 : vector<1x16x4xbf16> to vector<16x4xbf16>
      %cst_50 = arith.constant dense<0.000000e+00> : vector<64x4xf32>
      %106 = tpu.matmul %89, %105, %cst_50 {dimension_numbers = #tpu.dot_dimension_numbers<[1], [0], [0], [1], [0, 0, 1, 1], [], []>} : vector<64x16xbf16>, vector<16x4xbf16>, vector<64x4xf32> -> vector<64x4xf32>
      %107 = arith.addf %103, %106 : vector<64x4xf32>
      %108 = arith.index_cast %9 : i32 to index
      %c0_51 = arith.constant 0 : index
      %c0_52 = arith.constant 0 : index
      %109 = vector.load %arg7[%108, %c0_51, %c0_52] : memref<16x64x4xf32, #tpu.memory_space<vmem>>, vector<1x64x4xf32>
      %110 = vector.shape_cast %109 : vector<1x64x4xf32> to vector<64x4xf32>
      %111 = vector.shape_cast %107 : vector<64x4xf32> to vector<1x64x4xf32>
      tpu.vector_store %arg7[%108, %c0_51, %c0_52], %111 {strides = array<i32>} : memref<16x64x4xf32, #tpu.memory_space<vmem>>, vector<1x64x4xf32>,
      scf.yield %63, %60, %89, %86 : vector<64x16xbf16>, vector<64x16xf32>, vector<64x16xbf16>, vector<64x16xf32>
    }
    %c16_i32_5 = arith.constant 16 : i32
    return
  }
  func.func @transform_0(%arg0: i32) -> (i32, i32, i32) {
    %c0_i32 = arith.constant 0 : i32
    %c0_i32_0 = arith.constant 0 : i32
    %c0_i32_1 = arith.constant 0 : i32
    return %c0_i32, %arg0, %c0_i32_0 : i32, i32, i32
  }
  func.func @transform_1(%arg0: i32) -> (i32, i32, i32) {
    %c0_i32 = arith.constant 0 : i32
    %c0_i32_0 = arith.constant 0 : i32
    %c0_i32_1 = arith.constant 0 : i32
    %c0_i32_2 = arith.constant 0 : i32
    return %c0_i32, %c0_i32_0, %c0_i32_1 : i32, i32, i32
  }
  func.func @transform_2(%arg0: i32) -> (i32, i32, i32) {
    %c0_i32 = arith.constant 0 : i32
    %c0_i32_0 = arith.constant 0 : i32
    %c0_i32_1 = arith.constant 0 : i32
    %c0_i32_2 = arith.constant 0 : i32
    return %c0_i32, %c0_i32_0, %c0_i32_1 : i32, i32, i32
  }
  func.func @transform_3(%arg0: i32) -> (i32, i32, i32) {
    %c0_i32 = arith.constant 0 : i32
    %c0_i32_0 = arith.constant 0 : i32
    %c0_i32_1 = arith.constant 0 : i32
    %c0_i32_2 = arith.constant 0 : i32
    return %c0_i32, %c0_i32_0, %c0_i32_1 : i32, i32, i32
  }
  func.func @transform_4(%arg0: i32) -> (i32, i32, i32) {
    %c0_i32 = arith.constant 0 : i32
    %c0_i32_0 = arith.constant 0 : i32
    %c0_i32_1 = arith.constant 0 : i32
    %c0_i32_2 = arith.constant 0 : i32
    return %c0_i32, %c0_i32_0, %c0_i32_1 : i32, i32, i32
  }
  func.func @transform_5(%arg0: i32) -> (i32, i32) {
    %c0_i32 = arith.constant 0 : i32
    %c0_i32_0 = arith.constant 0 : i32
    %c0_i32_1 = arith.constant 0 : i32
    return %c0_i32, %c0_i32_0 : i32, i32
  }
  func.func @transform_6(%arg0: i32) -> (i32, i32, i32) {
    %c0_i32 = arith.constant 0 : i32
    %c0_i32_0 = arith.constant 0 : i32
    %c0_i32_1 = arith.constant 0 : i32
    return %c0_i32, %arg0, %c0_i32_0 : i32, i32, i32
  }
}

module attributes {stable_mosaic.version = 11 : i64} {
  func.func @_gn_stats_kernel(%arg0: i32, %arg1: i32, %arg2: memref<1x16x128xf32, #tpu.memory_space<vmem>>, %arg3: memref<1x1x1xf32, #tpu.memory_space<vmem>>, %arg4: memref<1x1x1xf32, #tpu.memory_space<vmem>>) attributes {dimension_semantics = [#tpu.dimension_semantics<parallel>, #tpu.dimension_semantics<arbitrary>], iteration_bounds = array<i64: 2, 1>, scalar_prefetch = 0 : i64, scratch_operands = 0 : i64, tpu.core_type = #tpu.core_type<tc>, window_params = [{transform_indices = @transform_0, window_bounds = array<i64: 1, 16, 128>}, {transform_indices = @transform_1, window_bounds = array<i64: 1, 1, 1>}, {transform_indices = @transform_2, window_bounds = array<i64: 1, 1, 1>}]} {
    %c0 = arith.constant 0 : index
    %c0_0 = arith.constant 0 : index
    %c0_1 = arith.constant 0 : index
    %0 = vector.load %arg2[%c0, %c0_0, %c0_1] : memref<1x16x128xf32, #tpu.memory_space<vmem>>, vector<1x16x128xf32>
    %cst = arith.constant dense<0.000000e+00> : vector<1x16xf32>
    %1 = vector.multi_reduction <add>, %0, %cst [2] : vector<1x16x128xf32> to vector<1x16xf32>
    %2 = vector.shape_cast %1 : vector<1x16xf32> to vector<1x16x1xf32>
    %cst_2 = arith.constant dense<0.000000e+00> : vector<1x1xf32>
    %3 = vector.multi_reduction <add>, %2, %cst_2 [1] : vector<1x16x1xf32> to vector<1x1xf32>
    %4 = vector.shape_cast %3 : vector<1x1xf32> to vector<1x1x1xf32>
    %cst_3 = arith.constant 2.048000e+03 : f32
    %5 = vector.broadcast %cst_3 : f32 to vector<1x1x1xf32>
    %6 = arith.divf %4, %5 : vector<1x1x1xf32>
    %7 = vector.broadcast %6 : vector<1x1x1xf32> to vector<1x16x128xf32>
    %8 = arith.subf %0, %7 : vector<1x16x128xf32>
    %9 = arith.mulf %8, %8 : vector<1x16x128xf32>
    %cst_4 = arith.constant dense<0.000000e+00> : vector<1x16xf32>
    %10 = vector.multi_reduction <add>, %9, %cst_4 [2] : vector<1x16x128xf32> to vector<1x16xf32>
    %11 = vector.shape_cast %10 : vector<1x16xf32> to vector<1x16x1xf32>
    %cst_5 = arith.constant dense<0.000000e+00> : vector<1x1xf32>
    %12 = vector.multi_reduction <add>, %11, %cst_5 [1] : vector<1x16x1xf32> to vector<1x1xf32>
    %13 = vector.shape_cast %12 : vector<1x1xf32> to vector<1x1x1xf32>
    %c0_i32 = arith.constant 0 : i32
    %14 = arith.cmpi eq, %arg1, %c0_i32 : i32
    %15 = arith.extui %14 : i1 to i32
    %c0_i32_6 = arith.constant 0 : i32
    %16 = arith.cmpi ne, %15, %c0_i32_6 : i32
    scf.if %16 {
      %c0_9 = arith.constant 0 : index
      %c0_10 = arith.constant 0 : index
      %c0_11 = arith.constant 0 : index
      %20 = vector.load %arg3[%c0_9, %c0_10, %c0_11] : memref<1x1x1xf32, #tpu.memory_space<vmem>>, vector<1x1x1xf32>
      tpu.vector_store %arg3[%c0_9, %c0_10, %c0_11], %6 {strides = array<i32>} : memref<1x1x1xf32, #tpu.memory_space<vmem>>, vector<1x1x1xf32>,
      %c0_12 = arith.constant 0 : index
      %c0_13 = arith.constant 0 : index
      %c0_14 = arith.constant 0 : index
      %21 = vector.load %arg4[%c0_12, %c0_13, %c0_14] : memref<1x1x1xf32, #tpu.memory_space<vmem>>, vector<1x1x1xf32>
      tpu.vector_store %arg4[%c0_12, %c0_13, %c0_14], %13 {strides = array<i32>} : memref<1x1x1xf32, #tpu.memory_space<vmem>>, vector<1x1x1xf32>,
    } else {
    }
    %c0_i32_7 = arith.constant 0 : i32
    %17 = arith.cmpi sgt, %arg1, %c0_i32_7 : i32
    %18 = arith.extui %17 : i1 to i32
    %c0_i32_8 = arith.constant 0 : i32
    %19 = arith.cmpi ne, %18, %c0_i32_8 : i32
    scf.if %19 {
      %20 = arith.sitofp %arg1 : i32 to f32
      %cst_9 = arith.constant 2.048000e+03 : f32
      %21 = arith.mulf %cst_9, %20 : f32
      %cst_10 = arith.constant 2.048000e+03 : f32
      %22 = arith.addf %21, %cst_10 : f32
      %c0_11 = arith.constant 0 : index
      %c0_12 = arith.constant 0 : index
      %c0_13 = arith.constant 0 : index
      %23 = vector.load %arg3[%c0_11, %c0_12, %c0_13] : memref<1x1x1xf32, #tpu.memory_space<vmem>>, vector<1x1x1xf32>
      %c0_14 = arith.constant 0 : index
      %c0_15 = arith.constant 0 : index
      %c0_16 = arith.constant 0 : index
      %24 = vector.load %arg4[%c0_14, %c0_15, %c0_16] : memref<1x1x1xf32, #tpu.memory_space<vmem>>, vector<1x1x1xf32>
      %25 = arith.subf %6, %23 : vector<1x1x1xf32>
      %cst_17 = arith.constant 2.048000e+03 : f32
      %26 = arith.divf %cst_17, %22 : f32
      %27 = vector.broadcast %26 : f32 to vector<1x1x1xf32>
      %28 = arith.mulf %25, %27 : vector<1x1x1xf32>
      %29 = arith.addf %23, %28 : vector<1x1x1xf32>
      %c0_18 = arith.constant 0 : index
      %c0_19 = arith.constant 0 : index
      %c0_20 = arith.constant 0 : index
      %30 = vector.load %arg3[%c0_18, %c0_19, %c0_20] : memref<1x1x1xf32, #tpu.memory_space<vmem>>, vector<1x1x1xf32>
      tpu.vector_store %arg3[%c0_18, %c0_19, %c0_20], %29 {strides = array<i32>} : memref<1x1x1xf32, #tpu.memory_space<vmem>>, vector<1x1x1xf32>,
      %31 = arith.addf %24, %13 : vector<1x1x1xf32>
      %32 = arith.mulf %25, %25 : vector<1x1x1xf32>
      %cst_21 = arith.constant 2.048000e+03 : f32
      %33 = arith.divf %cst_21, %22 : f32
      %34 = arith.mulf %21, %33 : f32
      %35 = vector.broadcast %34 : f32 to vector<1x1x1xf32>
      %36 = arith.mulf %32, %35 : vector<1x1x1xf32>
      %37 = arith.addf %31, %36 : vector<1x1x1xf32>
      %c0_22 = arith.constant 0 : index
      %c0_23 = arith.constant 0 : index
      %c0_24 = arith.constant 0 : index
      %38 = vector.load %arg4[%c0_22, %c0_23, %c0_24] : memref<1x1x1xf32, #tpu.memory_space<vmem>>, vector<1x1x1xf32>
      tpu.vector_store %arg4[%c0_22, %c0_23, %c0_24], %37 {strides = array<i32>} : memref<1x1x1xf32, #tpu.memory_space<vmem>>, vector<1x1x1xf32>,
    } else {
    }
    return
  }
  func.func @transform_0(%arg0: i32, %arg1: i32) -> (i32, i32, i32) {
    %c0_i32 = arith.constant 0 : i32
    %c0_i32_0 = arith.constant 0 : i32
    return %arg0, %c0_i32, %arg1 : i32, i32, i32
  }
  func.func @transform_1(%arg0: i32, %arg1: i32) -> (i32, i32, i32) {
    %c0_i32 = arith.constant 0 : i32
    %c0_i32_0 = arith.constant 0 : i32
    %c0_i32_1 = arith.constant 0 : i32
    return %arg0, %c0_i32, %c0_i32_0 : i32, i32, i32
  }
  func.func @transform_2(%arg0: i32, %arg1: i32) -> (i32, i32, i32) {
    %c0_i32 = arith.constant 0 : i32
    %c0_i32_0 = arith.constant 0 : i32
    %c0_i32_1 = arith.constant 0 : i32
    return %arg0, %c0_i32, %c0_i32_0 : i32, i32, i32
  }
}

module attributes {stable_mosaic.version = 11 : i64} {
  func.func @_gn_apply_kernel(%arg0: i32, %arg1: i32, %arg2: memref<1x16x128xf32, #tpu.memory_space<vmem>>, %arg3: memref<1x16x128xf32, #tpu.memory_space<vmem>>, %arg4: memref<1x16x1xf32, #tpu.memory_space<vmem>>, %arg5: memref<1x16x1xf32, #tpu.memory_space<vmem>>, %arg6: memref<1x16x128xf32, #tpu.memory_space<vmem>>) attributes {dimension_semantics = [#tpu.dimension_semantics<parallel>, #tpu.dimension_semantics<parallel>], iteration_bounds = array<i64: 2, 1>, scalar_prefetch = 0 : i64, scratch_operands = 0 : i64, tpu.core_type = #tpu.core_type<tc>, window_params = [{transform_indices = @transform_0, window_bounds = array<i64: 1, 16, 128>}, {transform_indices = @transform_1, window_bounds = array<i64: 1, 16, 128>}, {transform_indices = @transform_2, window_bounds = array<i64: 1, 16, 1>}, {transform_indices = @transform_3, window_bounds = array<i64: 1, 16, 1>}, {transform_indices = @transform_4, window_bounds = array<i64: 1, 16, 128>}]} {
    %c0 = arith.constant 0 : index
    %c0_0 = arith.constant 0 : index
    %c0_1 = arith.constant 0 : index
    %0 = vector.load %arg2[%c0, %c0_0, %c0_1] : memref<1x16x128xf32, #tpu.memory_space<vmem>>, vector<1x16x128xf32>
    %c0_2 = arith.constant 0 : index
    %c0_3 = arith.constant 0 : index
    %c0_4 = arith.constant 0 : index
    %1 = vector.load %arg3[%c0_2, %c0_3, %c0_4] : memref<1x16x128xf32, #tpu.memory_space<vmem>>, vector<1x16x128xf32>
    %c0_5 = arith.constant 0 : index
    %c0_6 = arith.constant 0 : index
    %c0_7 = arith.constant 0 : index
    %2 = vector.load %arg4[%c0_5, %c0_6, %c0_7] : memref<1x16x1xf32, #tpu.memory_space<vmem>>, vector<1x16x1xf32>
    %3 = vector.broadcast %2 : vector<1x16x1xf32> to vector<1x16x128xf32>
    %4 = arith.mulf %1, %3 : vector<1x16x128xf32>
    %5 = arith.addf %0, %4 : vector<1x16x128xf32>
    %c0_8 = arith.constant 0 : index
    %c0_9 = arith.constant 0 : index
    %c0_10 = arith.constant 0 : index
    %6 = vector.load %arg5[%c0_8, %c0_9, %c0_10] : memref<1x16x1xf32, #tpu.memory_space<vmem>>, vector<1x16x1xf32>
    %7 = vector.broadcast %6 : vector<1x16x1xf32> to vector<1x16x128xf32>
    %8 = arith.addf %5, %7 : vector<1x16x128xf32>
    %c0_11 = arith.constant 0 : index
    %c0_12 = arith.constant 0 : index
    %c0_13 = arith.constant 0 : index
    %9 = vector.load %arg6[%c0_11, %c0_12, %c0_13] : memref<1x16x128xf32, #tpu.memory_space<vmem>>, vector<1x16x128xf32>
    tpu.vector_store %arg6[%c0_11, %c0_12, %c0_13], %8 {strides = array<i32>} : memref<1x16x128xf32, #tpu.memory_space<vmem>>, vector<1x16x128xf32>,
    return
  }
  func.func @transform_0(%arg0: i32, %arg1: i32) -> (i32, i32, i32) {
    %c0_i32 = arith.constant 0 : i32
    %c0_i32_0 = arith.constant 0 : i32
    return %arg0, %c0_i32, %arg1 : i32, i32, i32
  }
  func.func @transform_1(%arg0: i32, %arg1: i32) -> (i32, i32, i32) {
    %c0_i32 = arith.constant 0 : i32
    %c0_i32_0 = arith.constant 0 : i32
    return %arg0, %c0_i32, %arg1 : i32, i32, i32
  }
  func.func @transform_2(%arg0: i32, %arg1: i32) -> (i32, i32, i32) {
    %c0_i32 = arith.constant 0 : i32
    %c0_i32_0 = arith.constant 0 : i32
    %c0_i32_1 = arith.constant 0 : i32
    return %arg0, %c0_i32, %c0_i32_0 : i32, i32, i32
  }
  func.func @transform_3(%arg0: i32, %arg1: i32) -> (i32, i32, i32) {
    %c0_i32 = arith.constant 0 : i32
    %c0_i32_0 = arith.constant 0 : i32
    %c0_i32_1 = arith.constant 0 : i32
    return %arg0, %c0_i32, %c0_i32_0 : i32, i32, i32
  }
  func.func @transform_4(%arg0: i32, %arg1: i32) -> (i32, i32, i32) {
    %c0_i32 = arith.constant 0 : i32
    %c0_i32_0 = arith.constant 0 : i32
    return %arg0, %c0_i32, %arg1 : i32, i32, i32
  }
}

module attributes {stable_mosaic.version = 11 : i64} {
  func.func @_bilstm_kernel(%arg0: i32, %arg1: memref<8x128x4xbf16, #tpu.memory_space<vmem>>, %arg2: memref<2x4x64xbf16, #tpu.memory_space<vmem>>, %arg3: memref<2x16x64xbf16, #tpu.memory_space<vmem>>, %arg4: memref<2x1x64xf32, #tpu.memory_space<vmem>>, %arg5: memref<2x16x4xbf16, #tpu.memory_space<vmem>>, %arg6: memref<1x4xf32, #tpu.memory_space<vmem>>, %arg7: memref<8x128x4xf32, #tpu.memory_space<vmem>>) attributes {dimension_semantics = [#tpu.dimension_semantics<parallel>], iteration_bounds = array<i64: 1>, scalar_prefetch = 0 : i64, scratch_operands = 0 : i64, tpu.core_type = #tpu.core_type<tc>, window_params = [{transform_indices = @transform_0, window_bounds = array<i64: 8, 128, 4>}, {pipeline_mode = #tpu.pipeline_mode<synchronous>, transform_indices = @transform_1, window_bounds = array<i64: 2, 4, 64>}, {pipeline_mode = #tpu.pipeline_mode<synchronous>, transform_indices = @transform_2, window_bounds = array<i64: 2, 16, 64>}, {pipeline_mode = #tpu.pipeline_mode<synchronous>, transform_indices = @transform_3, window_bounds = array<i64: 2, 1, 64>}, {pipeline_mode = #tpu.pipeline_mode<synchronous>, transform_indices = @transform_4, window_bounds = array<i64: 2, 16, 4>}, {pipeline_mode = #tpu.pipeline_mode<synchronous>, transform_indices = @transform_5, window_bounds = array<i64: 1, 4>}, {transform_indices = @transform_6, window_bounds = array<i64: 8, 128, 4>}]} {
    %c0 = arith.constant 0 : index
    %c0_0 = arith.constant 0 : index
    %0 = vector.load %arg6[%c0, %c0_0] : memref<1x4xf32, #tpu.memory_space<vmem>>, vector<1x4xf32>
    %1 = vector.shape_cast %0 : vector<1x4xf32> to vector<1x1x4xf32>
    %2 = vector.shape_cast %1 : vector<1x1x4xf32> to vector<1x1x4xf32>
    %3 = vector.broadcast %2 : vector<1x1x4xf32> to vector<8x128x4xf32>
    %c0_1 = arith.constant 0 : index
    %c0_2 = arith.constant 0 : index
    %c0_3 = arith.constant 0 : index
    %4 = vector.load %arg7[%c0_1, %c0_2, %c0_3] : memref<8x128x4xf32, #tpu.memory_space<vmem>>, vector<8x128x4xf32>
    tpu.vector_store %arg7[%c0_1, %c0_2, %c0_3], %3 {strides = array<i32>} : memref<8x128x4xf32, #tpu.memory_space<vmem>>, vector<8x128x4xf32>,
    %cst = arith.constant 0.000000e+00 : bf16
    %5 = vector.broadcast %cst : bf16 to vector<128x16xbf16>
    %cst_4 = arith.constant 0.000000e+00 : f32
    %6 = vector.broadcast %cst_4 : f32 to vector<128x16xf32>
    %c0_i32 = arith.constant 0 : i32
    %c8_i32 = arith.constant 8 : i32
    %7 = arith.addi %c0_i32, %c8_i32 : i32
    %c1_i32 = arith.constant 1 : i32
    %8:4 = scf.for %arg8 = %c0_i32 to %7 step %c1_i32 iter_args(%arg9 = %5, %arg10 = %6, %arg11 = %5, %arg12 = %6) -> (vector<128x16xbf16>, vector<128x16xf32>, vector<128x16xbf16>, vector<128x16xf32>)  : i32 {
      %c7_i32 = arith.constant 7 : i32
      %9 = arith.subi %c7_i32, %arg8 : i32
      %10 = arith.index_cast %arg8 : i32 to index
      %c0_6 = arith.constant 0 : index
      %c0_7 = arith.constant 0 : index
      %11 = vector.load %arg1[%10, %c0_6, %c0_7] : memref<8x128x4xbf16, #tpu.memory_space<vmem>>, vector<1x128x4xbf16>
      %12 = vector.shape_cast %11 : vector<1x128x4xbf16> to vector<128x4xbf16>
      %13 = arith.index_cast %9 : i32 to index
      %c0_8 = arith.constant 0 : index
      %c0_9 = arith.constant 0 : index
      %14 = vector.load %arg1[%13, %c0_8, %c0_9] : memref<8x128x4xbf16, #tpu.memory_space<vmem>>, vector<1x128x4xbf16>
      %15 = vector.shape_cast %14 : vector<1x128x4xbf16> to vector<128x4xbf16>
      %c0_10 = arith.constant 0 : index
      %c0_11 = arith.constant 0 : index
      %c0_12 = arith.constant 0 : index
      %16 = vector.load %arg2[%c0_10, %c0_11, %c0_12] : memref<2x4x64xbf16, #tpu.memory_space<vmem>>, vector<1x4x64xbf16>
      %17 = vector.shape_cast %16 : vector<1x4x64xbf16> to vector<4x64xbf16>
      %cst_13 = arith.constant dense<0.000000e+00> : vector<128x64xf32>
      %18 = tpu.matmul %12, %17, %cst_13 {dimension_numbers = #tpu.dot_dimension_numbers<[1], [0], [0], [1], [0, 0, 1, 1], [], []>} : vector<128x4xbf16>, vector<4x64xbf16>, vector<128x64xf32> -> vector<128x64xf32>
      %c0_14 = arith.constant 0 : index
      %c0_15 = arith.constant 0 : index
      %c0_16 = arith.constant 0 : index
      %19 = vector.load %arg3[%c0_14, %c0_15, %c0_16] : memref<2x16x64xbf16, #tpu.memory_space<vmem>>, vector<1x16x64xbf16>
      %20 = vector.shape_cast %19 : vector<1x16x64xbf16> to vector<16x64xbf16>
      %cst_17 = arith.constant dense<0.000000e+00> : vector<128x64xf32>
      %21 = tpu.matmul %arg9, %20, %cst_17 {dimension_numbers = #tpu.dot_dimension_numbers<[1], [0], [0], [1], [0, 0, 1, 1], [], []>} : vector<128x16xbf16>, vector<16x64xbf16>, vector<128x64xf32> -> vector<128x64xf32>
      %22 = arith.addf %18, %21 : vector<128x64xf32>
      %c0_18 = arith.constant 0 : index
      %c0_19 = arith.constant 0 : index
      %c0_20 = arith.constant 0 : index
      %23 = vector.load %arg4[%c0_18, %c0_19, %c0_20] : memref<2x1x64xf32, #tpu.memory_space<vmem>>, vector<1x1x64xf32>
      %24 = vector.shape_cast %23 : vector<1x1x64xf32> to vector<1x64xf32>
      %25 = vector.broadcast %24 : vector<1x64xf32> to vector<128x64xf32>
      %26 = arith.addf %22, %25 : vector<128x64xf32>
      %c1 = arith.constant 1 : index
      %c0_21 = arith.constant 0 : index
      %c0_22 = arith.constant 0 : index
      %27 = vector.load %arg2[%c1, %c0_21, %c0_22] : memref<2x4x64xbf16, #tpu.memory_space<vmem>>, vector<1x4x64xbf16>
      %28 = vector.shape_cast %27 : vector<1x4x64xbf16> to vector<4x64xbf16>
      %cst_23 = arith.constant dense<0.000000e+00> : vector<128x64xf32>
      %29 = tpu.matmul %15, %28, %cst_23 {dimension_numbers = #tpu.dot_dimension_numbers<[1], [0], [0], [1], [0, 0, 1, 1], [], []>} : vector<128x4xbf16>, vector<4x64xbf16>, vector<128x64xf32> -> vector<128x64xf32>
      %c1_24 = arith.constant 1 : index
      %c0_25 = arith.constant 0 : index
      %c0_26 = arith.constant 0 : index
      %30 = vector.load %arg3[%c1_24, %c0_25, %c0_26] : memref<2x16x64xbf16, #tpu.memory_space<vmem>>, vector<1x16x64xbf16>
      %31 = vector.shape_cast %30 : vector<1x16x64xbf16> to vector<16x64xbf16>
      %cst_27 = arith.constant dense<0.000000e+00> : vector<128x64xf32>
      %32 = tpu.matmul %arg11, %31, %cst_27 {dimension_numbers = #tpu.dot_dimension_numbers<[1], [0], [0], [1], [0, 0, 1, 1], [], []>} : vector<128x16xbf16>, vector<16x64xbf16>, vector<128x64xf32> -> vector<128x64xf32>
      %33 = arith.addf %29, %32 : vector<128x64xf32>
      %c1_28 = arith.constant 1 : index
      %c0_29 = arith.constant 0 : index
      %c0_30 = arith.constant 0 : index
      %34 = vector.load %arg4[%c1_28, %c0_29, %c0_30] : memref<2x1x64xf32, #tpu.memory_space<vmem>>, vector<1x1x64xf32>
      %35 = vector.shape_cast %34 : vector<1x1x64xf32> to vector<1x64xf32>
      %36 = vector.broadcast %35 : vector<1x64xf32> to vector<128x64xf32>
      %37 = arith.addf %33, %36 : vector<128x64xf32>
      %38 = vector.extract_strided_slice %26 {offsets = [0, 0], sizes = [128, 16], strides = [1, 1]} : vector<128x64xf32> to vector<128x16xf32>
      %39 = arith.negf %38 : vector<128x16xf32>
      %40 = math.exp %39 : vector<128x16xf32>
      %cst_31 = arith.constant 1.000000e+00 : f32
      %41 = vector.broadcast %cst_31 : f32 to vector<128x16xf32>
      %42 = arith.addf %41, %40 : vector<128x16xf32>
      %43 = arith.divf %41, %42 : vector<128x16xf32>
      %44 = vector.extract_strided_slice %26 {offsets = [0, 16], sizes = [128, 16], strides = [1, 1]} : vector<128x64xf32> to vector<128x16xf32>
      %45 = arith.negf %44 : vector<128x16xf32>
      %46 = math.exp %45 : vector<128x16xf32>
      %cst_32 = arith.constant 1.000000e+00 : f32
      %47 = vector.broadcast %cst_32 : f32 to vector<128x16xf32>
      %48 = arith.addf %47, %46 : vector<128x16xf32>
      %49 = arith.divf %47, %48 : vector<128x16xf32>
      %50 = vector.extract_strided_slice %26 {offsets = [0, 32], sizes = [128, 16], strides = [1, 1]} : vector<128x64xf32> to vector<128x16xf32>
      %51 = math.tanh %50 : vector<128x16xf32>
      %52 = vector.extract_strided_slice %26 {offsets = [0, 48], sizes = [128, 16], strides = [1, 1]} : vector<128x64xf32> to vector<128x16xf32>
      %53 = arith.negf %52 : vector<128x16xf32>
      %54 = math.exp %53 : vector<128x16xf32>
      %cst_33 = arith.constant 1.000000e+00 : f32
      %55 = vector.broadcast %cst_33 : f32 to vector<128x16xf32>
      %56 = arith.addf %55, %54 : vector<128x16xf32>
      %57 = arith.divf %55, %56 : vector<128x16xf32>
      %58 = arith.mulf %49, %arg10 : vector<128x16xf32>
      %59 = arith.mulf %43, %51 : vector<128x16xf32>
      %60 = arith.addf %58, %59 : vector<128x16xf32>
      %61 = math.tanh %60 : vector<128x16xf32>
      %62 = arith.mulf %57, %61 : vector<128x16xf32>
      %63 = arith.truncf %62 : vector<128x16xf32> to vector<128x16xbf16>
      %64 = vector.extract_strided_slice %37 {offsets = [0, 0], sizes = [128, 16], strides = [1, 1]} : vector<128x64xf32> to vector<128x16xf32>
      %65 = arith.negf %64 : vector<128x16xf32>
      %66 = math.exp %65 : vector<128x16xf32>
      %cst_34 = arith.constant 1.000000e+00 : f32
      %67 = vector.broadcast %cst_34 : f32 to vector<128x16xf32>
      %68 = arith.addf %67, %66 : vector<128x16xf32>
      %69 = arith.divf %67, %68 : vector<128x16xf32>
      %70 = vector.extract_strided_slice %37 {offsets = [0, 16], sizes = [128, 16], strides = [1, 1]} : vector<128x64xf32> to vector<128x16xf32>
      %71 = arith.negf %70 : vector<128x16xf32>
      %72 = math.exp %71 : vector<128x16xf32>
      %cst_35 = arith.constant 1.000000e+00 : f32
      %73 = vector.broadcast %cst_35 : f32 to vector<128x16xf32>
      %74 = arith.addf %73, %72 : vector<128x16xf32>
      %75 = arith.divf %73, %74 : vector<128x16xf32>
      %76 = vector.extract_strided_slice %37 {offsets = [0, 32], sizes = [128, 16], strides = [1, 1]} : vector<128x64xf32> to vector<128x16xf32>
      %77 = math.tanh %76 : vector<128x16xf32>
      %78 = vector.extract_strided_slice %37 {offsets = [0, 48], sizes = [128, 16], strides = [1, 1]} : vector<128x64xf32> to vector<128x16xf32>
      %79 = arith.negf %78 : vector<128x16xf32>
      %80 = math.exp %79 : vector<128x16xf32>
      %cst_36 = arith.constant 1.000000e+00 : f32
      %81 = vector.broadcast %cst_36 : f32 to vector<128x16xf32>
      %82 = arith.addf %81, %80 : vector<128x16xf32>
      %83 = arith.divf %81, %82 : vector<128x16xf32>
      %84 = arith.mulf %75, %arg12 : vector<128x16xf32>
      %85 = arith.mulf %69, %77 : vector<128x16xf32>
      %86 = arith.addf %84, %85 : vector<128x16xf32>
      %87 = math.tanh %86 : vector<128x16xf32>
      %88 = arith.mulf %83, %87 : vector<128x16xf32>
      %89 = arith.truncf %88 : vector<128x16xf32> to vector<128x16xbf16>
      %90 = arith.index_cast %arg8 : i32 to index
      %c0_37 = arith.constant 0 : index
      %c0_38 = arith.constant 0 : index
      %91 = vector.load %arg7[%90, %c0_37, %c0_38] : memref<8x128x4xf32, #tpu.memory_space<vmem>>, vector<1x128x4xf32>
      %92 = vector.shape_cast %91 : vector<1x128x4xf32> to vector<128x4xf32>
      %c0_39 = arith.constant 0 : index
      %c0_40 = arith.constant 0 : index
      %c0_41 = arith.constant 0 : index
      %93 = vector.load %arg5[%c0_39, %c0_40, %c0_41] : memref<2x16x4xbf16, #tpu.memory_space<vmem>>, vector<1x16x4xbf16>
      %94 = vector.shape_cast %93 : vector<1x16x4xbf16> to vector<16x4xbf16>
      %cst_42 = arith.constant dense<0.000000e+00> : vector<128x4xf32>
      %95 = tpu.matmul %63, %94, %cst_42 {dimension_numbers = #tpu.dot_dimension_numbers<[1], [0], [0], [1], [0, 0, 1, 1], [], []>} : vector<128x16xbf16>, vector<16x4xbf16>, vector<128x4xf32> -> vector<128x4xf32>
      %96 = arith.addf %92, %95 : vector<128x4xf32>
      %97 = arith.index_cast %arg8 : i32 to index
      %c0_43 = arith.constant 0 : index
      %c0_44 = arith.constant 0 : index
      %98 = vector.load %arg7[%97, %c0_43, %c0_44] : memref<8x128x4xf32, #tpu.memory_space<vmem>>, vector<1x128x4xf32>
      %99 = vector.shape_cast %98 : vector<1x128x4xf32> to vector<128x4xf32>
      %100 = vector.shape_cast %96 : vector<128x4xf32> to vector<1x128x4xf32>
      tpu.vector_store %arg7[%97, %c0_43, %c0_44], %100 {strides = array<i32>} : memref<8x128x4xf32, #tpu.memory_space<vmem>>, vector<1x128x4xf32>,
      %101 = arith.index_cast %9 : i32 to index
      %c0_45 = arith.constant 0 : index
      %c0_46 = arith.constant 0 : index
      %102 = vector.load %arg7[%101, %c0_45, %c0_46] : memref<8x128x4xf32, #tpu.memory_space<vmem>>, vector<1x128x4xf32>
      %103 = vector.shape_cast %102 : vector<1x128x4xf32> to vector<128x4xf32>
      %c1_47 = arith.constant 1 : index
      %c0_48 = arith.constant 0 : index
      %c0_49 = arith.constant 0 : index
      %104 = vector.load %arg5[%c1_47, %c0_48, %c0_49] : memref<2x16x4xbf16, #tpu.memory_space<vmem>>, vector<1x16x4xbf16>
      %105 = vector.shape_cast %104 : vector<1x16x4xbf16> to vector<16x4xbf16>
      %cst_50 = arith.constant dense<0.000000e+00> : vector<128x4xf32>
      %106 = tpu.matmul %89, %105, %cst_50 {dimension_numbers = #tpu.dot_dimension_numbers<[1], [0], [0], [1], [0, 0, 1, 1], [], []>} : vector<128x16xbf16>, vector<16x4xbf16>, vector<128x4xf32> -> vector<128x4xf32>
      %107 = arith.addf %103, %106 : vector<128x4xf32>
      %108 = arith.index_cast %9 : i32 to index
      %c0_51 = arith.constant 0 : index
      %c0_52 = arith.constant 0 : index
      %109 = vector.load %arg7[%108, %c0_51, %c0_52] : memref<8x128x4xf32, #tpu.memory_space<vmem>>, vector<1x128x4xf32>
      %110 = vector.shape_cast %109 : vector<1x128x4xf32> to vector<128x4xf32>
      %111 = vector.shape_cast %107 : vector<128x4xf32> to vector<1x128x4xf32>
      tpu.vector_store %arg7[%108, %c0_51, %c0_52], %111 {strides = array<i32>} : memref<8x128x4xf32, #tpu.memory_space<vmem>>, vector<1x128x4xf32>,
      scf.yield %63, %60, %89, %86 : vector<128x16xbf16>, vector<128x16xf32>, vector<128x16xbf16>, vector<128x16xf32>
    }
    %c8_i32_5 = arith.constant 8 : i32
    return
  }
  func.func @transform_0(%arg0: i32) -> (i32, i32, i32) {
    %c0_i32 = arith.constant 0 : i32
    %c0_i32_0 = arith.constant 0 : i32
    %c0_i32_1 = arith.constant 0 : i32
    return %c0_i32, %arg0, %c0_i32_0 : i32, i32, i32
  }
  func.func @transform_1(%arg0: i32) -> (i32, i32, i32) {
    %c0_i32 = arith.constant 0 : i32
    %c0_i32_0 = arith.constant 0 : i32
    %c0_i32_1 = arith.constant 0 : i32
    %c0_i32_2 = arith.constant 0 : i32
    return %c0_i32, %c0_i32_0, %c0_i32_1 : i32, i32, i32
  }
  func.func @transform_2(%arg0: i32) -> (i32, i32, i32) {
    %c0_i32 = arith.constant 0 : i32
    %c0_i32_0 = arith.constant 0 : i32
    %c0_i32_1 = arith.constant 0 : i32
    %c0_i32_2 = arith.constant 0 : i32
    return %c0_i32, %c0_i32_0, %c0_i32_1 : i32, i32, i32
  }
  func.func @transform_3(%arg0: i32) -> (i32, i32, i32) {
    %c0_i32 = arith.constant 0 : i32
    %c0_i32_0 = arith.constant 0 : i32
    %c0_i32_1 = arith.constant 0 : i32
    %c0_i32_2 = arith.constant 0 : i32
    return %c0_i32, %c0_i32_0, %c0_i32_1 : i32, i32, i32
  }
  func.func @transform_4(%arg0: i32) -> (i32, i32, i32) {
    %c0_i32 = arith.constant 0 : i32
    %c0_i32_0 = arith.constant 0 : i32
    %c0_i32_1 = arith.constant 0 : i32
    %c0_i32_2 = arith.constant 0 : i32
    return %c0_i32, %c0_i32_0, %c0_i32_1 : i32, i32, i32
  }
  func.func @transform_5(%arg0: i32) -> (i32, i32) {
    %c0_i32 = arith.constant 0 : i32
    %c0_i32_0 = arith.constant 0 : i32
    %c0_i32_1 = arith.constant 0 : i32
    return %c0_i32, %c0_i32_0 : i32, i32
  }
  func.func @transform_6(%arg0: i32) -> (i32, i32, i32) {
    %c0_i32 = arith.constant 0 : i32
    %c0_i32_0 = arith.constant 0 : i32
    %c0_i32_1 = arith.constant 0 : i32
    return %c0_i32, %arg0, %c0_i32_0 : i32, i32, i32
  }
}

module attributes {stable_mosaic.version = 11 : i64} {
  func.func @_group_comm_kernel(%arg0: i32, %arg1: i32, %arg2: memref<1x16x128xf32, #tpu.memory_space<vmem>>, %arg3: memref<4x4xbf16, #tpu.memory_space<vmem>>, %arg4: memref<4x1xf32, #tpu.memory_space<vmem>>, %arg5: memref<1xf32, #tpu.memory_space<smem>>, %arg6: memref<1x16x128xf32, #tpu.memory_space<vmem>>) attributes {dimension_semantics = [#tpu.dimension_semantics<parallel>, #tpu.dimension_semantics<parallel>], iteration_bounds = array<i64: 2, 1>, scalar_prefetch = 0 : i64, scratch_operands = 0 : i64, tpu.core_type = #tpu.core_type<tc>, window_params = [{transform_indices = @transform_0, window_bounds = array<i64: 1, 16, 128>}, {pipeline_mode = #tpu.pipeline_mode<synchronous>, transform_indices = @transform_1, window_bounds = array<i64: 4, 4>}, {pipeline_mode = #tpu.pipeline_mode<synchronous>, transform_indices = @transform_2, window_bounds = array<i64: 4, 1>}, {transform_indices = @transform_3, window_bounds = array<i64: 1>}, {transform_indices = @transform_4, window_bounds = array<i64: 1, 16, 128>}]} {
    %c0 = arith.constant 0 : index
    %0 = memref.load %arg5[%c0] : memref<1xf32, #tpu.memory_space<smem>>
    %c0_0 = arith.constant 0 : index
    %c0_1 = arith.constant 0 : index
    %c0_2 = arith.constant 0 : index
    %1 = vector.load %arg2[%c0_0, %c0_1, %c0_2] : memref<1x16x128xf32, #tpu.memory_space<vmem>>, vector<1x16x128xf32>
    %2 = vector.shape_cast %1 : vector<1x16x128xf32> to vector<16x128xf32>
    %3 = vector.extract_strided_slice %2 {offsets = [0, 0], sizes = [4, 128], strides = [1, 1]} : vector<16x128xf32> to vector<4x128xf32>
    %4 = vector.extract_strided_slice %2 {offsets = [4, 0], sizes = [4, 128], strides = [1, 1]} : vector<16x128xf32> to vector<4x128xf32>
    %5 = arith.addf %3, %4 : vector<4x128xf32>
    %6 = vector.extract_strided_slice %2 {offsets = [8, 0], sizes = [4, 128], strides = [1, 1]} : vector<16x128xf32> to vector<4x128xf32>
    %7 = arith.addf %5, %6 : vector<4x128xf32>
    %8 = vector.extract_strided_slice %2 {offsets = [12, 0], sizes = [4, 128], strides = [1, 1]} : vector<16x128xf32> to vector<4x128xf32>
    %9 = arith.addf %7, %8 : vector<4x128xf32>
    %cst = arith.constant 2.500000e-01 : f32
    %10 = vector.broadcast %cst : f32 to vector<4x128xf32>
    %11 = arith.mulf %9, %10 : vector<4x128xf32>
    %c0_3 = arith.constant 0 : index
    %c0_4 = arith.constant 0 : index
    %12 = vector.load %arg3[%c0_3, %c0_4] : memref<4x4xbf16, #tpu.memory_space<vmem>>, vector<4x4xbf16>
    %13 = arith.truncf %11 : vector<4x128xf32> to vector<4x128xbf16>
    %cst_5 = arith.constant dense<0.000000e+00> : vector<4x128xf32>
    %14 = tpu.matmul %12, %13, %cst_5 {dimension_numbers = #tpu.dot_dimension_numbers<[1], [0], [0], [1], [0, 0, 1, 1], [], []>} : vector<4x4xbf16>, vector<4x128xbf16>, vector<4x128xf32> -> vector<4x128xf32>
    %c0_6 = arith.constant 0 : index
    %c0_7 = arith.constant 0 : index
    %15 = vector.load %arg4[%c0_6, %c0_7] : memref<4x1xf32, #tpu.memory_space<vmem>>, vector<4x1xf32>
    %16 = vector.broadcast %15 : vector<4x1xf32> to vector<4x128xf32>
    %17 = arith.addf %14, %16 : vector<4x128xf32>
    %cst_8 = arith.constant 0.000000e+00 : f32
    %18 = vector.broadcast %cst_8 : f32 to vector<4x128xf32>
    %19 = arith.cmpf oge, %17, %18 : vector<4x128xf32>
    %20 = vector.broadcast %0 : f32 to vector<4x128xf32>
    %21 = arith.mulf %20, %17 : vector<4x128xf32>
    %22 = arith.select %19, %17, %21 : vector<4x128xi1>, vector<4x128xf32>
    %23 = vector.extract_strided_slice %2 {offsets = [0, 0], sizes = [4, 128], strides = [1, 1]} : vector<16x128xf32> to vector<4x128xf32>
    %24 = arith.addf %23, %22 : vector<4x128xf32>
    %c0_9 = arith.constant 0 : index
    %c0_10 = arith.constant 0 : index
    %c0_11 = arith.constant 0 : index
    %25 = vector.load %arg6[%c0_9, %c0_10, %c0_11] : memref<1x16x128xf32, #tpu.memory_space<vmem>>, vector<1x4x128xf32>
    %26 = vector.shape_cast %25 : vector<1x4x128xf32> to vector<4x128xf32>
    %27 = vector.shape_cast %24 : vector<4x128xf32> to vector<1x4x128xf32>
    tpu.vector_store %arg6[%c0_9, %c0_10, %c0_11], %27 {strides = array<i32>} : memref<1x16x128xf32, #tpu.memory_space<vmem>>, vector<1x4x128xf32>,
    %28 = vector.extract_strided_slice %2 {offsets = [4, 0], sizes = [4, 128], strides = [1, 1]} : vector<16x128xf32> to vector<4x128xf32>
    %29 = arith.addf %28, %22 : vector<4x128xf32>
    %c0_12 = arith.constant 0 : index
    %c4 = arith.constant 4 : index
    %c0_13 = arith.constant 0 : index
    %30 = vector.load %arg6[%c0_12, %c4, %c0_13] : memref<1x16x128xf32, #tpu.memory_space<vmem>>, vector<1x4x128xf32>
    %31 = vector.shape_cast %30 : vector<1x4x128xf32> to vector<4x128xf32>
    %32 = vector.shape_cast %29 : vector<4x128xf32> to vector<1x4x128xf32>
    tpu.vector_store %arg6[%c0_12, %c4, %c0_13], %32 {strides = array<i32>} : memref<1x16x128xf32, #tpu.memory_space<vmem>>, vector<1x4x128xf32>,
    %33 = vector.extract_strided_slice %2 {offsets = [8, 0], sizes = [4, 128], strides = [1, 1]} : vector<16x128xf32> to vector<4x128xf32>
    %34 = arith.addf %33, %22 : vector<4x128xf32>
    %c0_14 = arith.constant 0 : index
    %c8 = arith.constant 8 : index
    %c0_15 = arith.constant 0 : index
    %35 = vector.load %arg6[%c0_14, %c8, %c0_15] : memref<1x16x128xf32, #tpu.memory_space<vmem>>, vector<1x4x128xf32>
    %36 = vector.shape_cast %35 : vector<1x4x128xf32> to vector<4x128xf32>
    %37 = vector.shape_cast %34 : vector<4x128xf32> to vector<1x4x128xf32>
    tpu.vector_store %arg6[%c0_14, %c8, %c0_15], %37 {strides = array<i32>} : memref<1x16x128xf32, #tpu.memory_space<vmem>>, vector<1x4x128xf32>,
    %38 = vector.extract_strided_slice %2 {offsets = [12, 0], sizes = [4, 128], strides = [1, 1]} : vector<16x128xf32> to vector<4x128xf32>
    %39 = arith.addf %38, %22 : vector<4x128xf32>
    %c0_16 = arith.constant 0 : index
    %c12 = arith.constant 12 : index
    %c0_17 = arith.constant 0 : index
    %40 = vector.load %arg6[%c0_16, %c12, %c0_17] : memref<1x16x128xf32, #tpu.memory_space<vmem>>, vector<1x4x128xf32>
    %41 = vector.shape_cast %40 : vector<1x4x128xf32> to vector<4x128xf32>
    %42 = vector.shape_cast %39 : vector<4x128xf32> to vector<1x4x128xf32>
    tpu.vector_store %arg6[%c0_16, %c12, %c0_17], %42 {strides = array<i32>} : memref<1x16x128xf32, #tpu.memory_space<vmem>>, vector<1x4x128xf32>,
    return
  }
  func.func @transform_0(%arg0: i32, %arg1: i32) -> (i32, i32, i32) {
    %c0_i32 = arith.constant 0 : i32
    %c0_i32_0 = arith.constant 0 : i32
    return %arg0, %c0_i32, %arg1 : i32, i32, i32
  }
  func.func @transform_1(%arg0: i32, %arg1: i32) -> (i32, i32) {
    %c0_i32 = arith.constant 0 : i32
    %c0_i32_0 = arith.constant 0 : i32
    %c0_i32_1 = arith.constant 0 : i32
    return %c0_i32, %c0_i32_0 : i32, i32
  }
  func.func @transform_2(%arg0: i32, %arg1: i32) -> (i32, i32) {
    %c0_i32 = arith.constant 0 : i32
    %c0_i32_0 = arith.constant 0 : i32
    %c0_i32_1 = arith.constant 0 : i32
    return %c0_i32, %c0_i32_0 : i32, i32
  }
  func.func @transform_3(%arg0: i32, %arg1: i32) -> i32 {
    %c0_i32 = arith.constant 0 : i32
    %c0_i32_0 = arith.constant 0 : i32
    return %c0_i32 : i32
  }
  func.func @transform_4(%arg0: i32, %arg1: i32) -> (i32, i32, i32) {
    %c0_i32 = arith.constant 0 : i32
    %c0_i32_0 = arith.constant 0 : i32
    return %arg0, %c0_i32, %arg1 : i32, i32, i32
  }
}

module attributes {stable_mosaic.version = 11 : i64} {
  func.func @_out_conv_kernel(%arg0: i32, %arg1: i32, %arg2: memref<1x16x128xf32, #tpu.memory_space<vmem>>, %arg3: memref<32x16xbf16, #tpu.memory_space<vmem>>, %arg4: memref<32x1xf32, #tpu.memory_space<vmem>>, %arg5: memref<1xf32, #tpu.memory_space<smem>>, %arg6: memref<1x32x128xf32, #tpu.memory_space<vmem>>) attributes {dimension_semantics = [#tpu.dimension_semantics<parallel>, #tpu.dimension_semantics<parallel>], iteration_bounds = array<i64: 2, 1>, scalar_prefetch = 0 : i64, scratch_operands = 0 : i64, tpu.core_type = #tpu.core_type<tc>, window_params = [{transform_indices = @transform_0, window_bounds = array<i64: 1, 16, 128>}, {pipeline_mode = #tpu.pipeline_mode<synchronous>, transform_indices = @transform_1, window_bounds = array<i64: 32, 16>}, {pipeline_mode = #tpu.pipeline_mode<synchronous>, transform_indices = @transform_2, window_bounds = array<i64: 32, 1>}, {transform_indices = @transform_3, window_bounds = array<i64: 1>}, {transform_indices = @transform_4, window_bounds = array<i64: 1, 32, 128>}]} {
    %c0 = arith.constant 0 : index
    %0 = memref.load %arg5[%c0] : memref<1xf32, #tpu.memory_space<smem>>
    %c0_0 = arith.constant 0 : index
    %c0_1 = arith.constant 0 : index
    %c0_2 = arith.constant 0 : index
    %1 = vector.load %arg2[%c0_0, %c0_1, %c0_2] : memref<1x16x128xf32, #tpu.memory_space<vmem>>, vector<1x16x128xf32>
    %2 = vector.shape_cast %1 : vector<1x16x128xf32> to vector<16x128xf32>
    %cst = arith.constant 0.000000e+00 : f32
    %3 = vector.broadcast %cst : f32 to vector<16x128xf32>
    %4 = arith.cmpf oge, %2, %3 : vector<16x128xf32>
    %5 = vector.broadcast %0 : f32 to vector<16x128xf32>
    %6 = arith.mulf %5, %2 : vector<16x128xf32>
    %7 = arith.select %4, %2, %6 : vector<16x128xi1>, vector<16x128xf32>
    %c0_3 = arith.constant 0 : index
    %c0_4 = arith.constant 0 : index
    %8 = vector.load %arg3[%c0_3, %c0_4] : memref<32x16xbf16, #tpu.memory_space<vmem>>, vector<32x16xbf16>
    %9 = arith.truncf %7 : vector<16x128xf32> to vector<16x128xbf16>
    %cst_5 = arith.constant dense<0.000000e+00> : vector<32x128xf32>
    %10 = tpu.matmul %8, %9, %cst_5 {dimension_numbers = #tpu.dot_dimension_numbers<[1], [0], [0], [1], [0, 0, 1, 1], [], []>} : vector<32x16xbf16>, vector<16x128xbf16>, vector<32x128xf32> -> vector<32x128xf32>
    %c0_6 = arith.constant 0 : index
    %c0_7 = arith.constant 0 : index
    %11 = vector.load %arg4[%c0_6, %c0_7] : memref<32x1xf32, #tpu.memory_space<vmem>>, vector<32x1xf32>
    %12 = vector.broadcast %11 : vector<32x1xf32> to vector<32x128xf32>
    %13 = arith.addf %10, %12 : vector<32x128xf32>
    %14 = vector.shape_cast %13 : vector<32x128xf32> to vector<1x32x128xf32>
    %c0_8 = arith.constant 0 : index
    %c0_9 = arith.constant 0 : index
    %c0_10 = arith.constant 0 : index
    %15 = vector.load %arg6[%c0_8, %c0_9, %c0_10] : memref<1x32x128xf32, #tpu.memory_space<vmem>>, vector<1x32x128xf32>
    tpu.vector_store %arg6[%c0_8, %c0_9, %c0_10], %14 {strides = array<i32>} : memref<1x32x128xf32, #tpu.memory_space<vmem>>, vector<1x32x128xf32>,
    return
  }
  func.func @transform_0(%arg0: i32, %arg1: i32) -> (i32, i32, i32) {
    %c0_i32 = arith.constant 0 : i32
    %c0_i32_0 = arith.constant 0 : i32
    return %arg0, %c0_i32, %arg1 : i32, i32, i32
  }
  func.func @transform_1(%arg0: i32, %arg1: i32) -> (i32, i32) {
    %c0_i32 = arith.constant 0 : i32
    %c0_i32_0 = arith.constant 0 : i32
    %c0_i32_1 = arith.constant 0 : i32
    return %c0_i32, %c0_i32_0 : i32, i32
  }
  func.func @transform_2(%arg0: i32, %arg1: i32) -> (i32, i32) {
    %c0_i32 = arith.constant 0 : i32
    %c0_i32_0 = arith.constant 0 : i32
    %c0_i32_1 = arith.constant 0 : i32
    return %c0_i32, %c0_i32_0 : i32, i32
  }
  func.func @transform_3(%arg0: i32, %arg1: i32) -> i32 {
    %c0_i32 = arith.constant 0 : i32
    %c0_i32_0 = arith.constant 0 : i32
    return %c0_i32 : i32
  }
  func.func @transform_4(%arg0: i32, %arg1: i32) -> (i32, i32, i32) {
    %c0_i32 = arith.constant 0 : i32
    %c0_i32_0 = arith.constant 0 : i32
    return %arg0, %c0_i32, %arg1 : i32, i32, i32
  }
}

</mosaic_0001>

<llo_original>
// kernel: dp_wrapper_forward.16
$region0: #{dp_wrapper_forward.16}
  #allocation0 [shape = 'u32[]', space=smem, size = 0x4, offset = 0x4, fixed_abs, tag = 'smem constant byte address 0x4 - core index']
  #allocation1 [shape = 'u32[72,128]{1,0:T(1,128)}', space=vmem, size = 0x9000, scoped, tag = 'internal scratch']
  %s0 = inlined_call_operand.vmem [shape: f32[2,16,128], index: 0, kind: input, shape index: {}]
  %s1 = inlined_call_operand.vmem [shape: f32[2,1,1], index: 1, kind: output, shape index: {0}]
  %s2 = inlined_call_operand.vmem [shape: f32[2,1,1], index: 2, kind: output, shape index: {1}]
  %3 = xla_tuple %s1, %s2
  %s4 = sld [smem:[#allocation0]]
  $region53: #{dp_wrapper_forward.16} parent=0
    _
  %s6 = ssub.s32 1, %s4
  %s7 = scalar_select 0, %s6, %s4
  loop: start=0, step=1, limit=4
  $region2: #{dp_wrapper_forward.16} parent=0 // loop_pre_header
    _
  $region3: #{dp_wrapper_forward.16} parent=0 // loop_header
    %s9 = sphi 0, %s13
    %p10 = scmp.ge.s32.totalorder %s9, 4
    %s16 = sphi 0, %s28
    %s17 = sphi 0, %s24
    %s18 = sphi 0, %s16
    %s19 = sphi 0, %s17
    %s20 = sphi 0, %s18
    %s21 = sphi 0, %s19
    %s33 = sphi 0, %s35
    %s36 = sphi 0, %s33
    %s37 = sphi 0, %s36
    %s53 = sphi 0, %s37
    %s59 = sphi 0, %s61
    %s62 = sphi 0, %s59
    %s63 = sphi 0, %s62
    %s79 = sphi 0, %s63
    %s85 = sphi 0, %s87
    %s88 = sphi 0, %s85
    %s89 = sphi 0, %s88
    %s105 = sphi 0, %s89
  $region4: #{dp_wrapper_forward.16} parent=0 // loop_header_branch
    %12 = sbr.rel (%p10) target = $region8
  $region5: #{dp_wrapper_forward.16} parent=0 // loop_body
    %s14 = ssub.s32 %s9, 1
    %s15 = ssub.s32 %s9, 2
    %s22 = sadd.s32 1, %s17
    %p23 = scmp.ge.s32.totalorder %s22, 1
    %s24 = scalar_select %p23, 0, %s22
    %s25 = sadd.s32 1, %s16
    %s26 = scalar_select %p23, %s25, %s16
    %p27 = scmp.ge.s32.totalorder %s26, 2
    %s28 = scalar_select %p27, 0, %s26
    %s29 = ssub.s32 %s16, %s28
    %s30 = ssub.s32 %s17, %s24
    %s31 = sor.u32 %s29, %s30
    %p32 = scmp.eq.s32.totalorder %s31, 0
    %s34 = sadd.s32 %s33, 1
    %s35 = scalar_select %p32, %s33, %s34
    %p38 = pneg %p32
    %p39 = scmp.eq.s32.totalorder %s9, 1
    %p40 = por %p38, %p39
    %p41 = scmp.ne.s32.totalorder %s33, %s36
    %p42 = scmp.eq.s32.totalorder %s9, 0
    %p43 = por %p41, %p42
    %p44 = scmp.ne.s32.totalorder %s33, %s36
    %p45 = scmp.eq.s32.totalorder %s14, 1
    %p46 = por %p44, %p45
    %p47 = scmp.ne.s32.totalorder %s36, %s37
    %p48 = scmp.eq.s32.totalorder %s14, 0
    %p49 = por %p47, %p48
    %p50 = scmp.ne.s32.totalorder %s36, %s37
    %p51 = scmp.eq.s32.totalorder %s15, 1
    %p52 = por %p50, %p51
    %p54 = scmp.ne.s32.totalorder %s37, %s53
    %p55 = scmp.eq.s32.totalorder %s15, 0
    %p56 = por %p54, %p55
    %s57 = ssub.s32 %s16, %s28
    %p58 = scmp.eq.s32.totalorder %s57, 0
    %s60 = sadd.s32 %s59, 1
    %s61 = scalar_select %p58, %s59, %s60
    %p64 = pneg %p58
    %p65 = scmp.eq.s32.totalorder %s9, 1
    %p66 = por %p64, %p65
    %p67 = scmp.ne.s32.totalorder %s59, %s62
    %p68 = scmp.eq.s32.totalorder %s9, 0
    %p69 = por %p67, %p68
    %p70 = scmp.ne.s32.totalorder %s59, %s62
    %p71 = scmp.eq.s32.totalorder %s14, 1
    %p72 = por %p70, %p71
    %p73 = scmp.ne.s32.totalorder %s62, %s63
    %p74 = scmp.eq.s32.totalorder %s14, 0
    %p75 = por %p73, %p74
    %p76 = scmp.ne.s32.totalorder %s62, %s63
    %p77 = scmp.eq.s32.totalorder %s15, 1
    %p78 = por %p76, %p77
    %p80 = scmp.ne.s32.totalorder %s63, %s79
    %p81 = scmp.eq.s32.totalorder %s15, 0
    %p82 = por %p80, %p81
    %s83 = ssub.s32 %s16, %s28
    %p84 = scmp.eq.s32.totalorder %s83, 0
    %s86 = sadd.s32 %s85, 1
    %s87 = scalar_select %p84, %s85, %s86
    %p90 = pneg %p84
    %p91 = scmp.eq.s32.totalorder %s9, 1
    %p92 = por %p90, %p91
    %p93 = scmp.ne.s32.totalorder %s85, %s88
    %p94 = scmp.eq.s32.totalorder %s9, 0
    %p95 = por %p93, %p94
    %p96 = scmp.ne.s32.totalorder %s85, %s88
    %p97 = scmp.eq.s32.totalorder %s14, 1
    %p98 = por %p96, %p97
    %p99 = scmp.ne.s32.totalorder %s88, %s89
    %p100 = scmp.eq.s32.totalorder %s14, 0
    %p101 = por %p99, %p100
    %p102 = scmp.ne.s32.totalorder %s88, %s89
    %p103 = scmp.eq.s32.totalorder %s15, 1
    %p104 = por %p102, %p103
    %p106 = scmp.ne.s32.totalorder %s89, %s105
    %p107 = scmp.eq.s32.totalorder %s15, 0
    %p108 = por %p106, %p107
    %p109 = scmp.le.s32.totalorder 1, %s9
    %p110 = scmp.lt.s32.totalorder %s9, 3
    %p111 = pnand %p109, %p110
    %p112 = pneg %p111
    // Predicated region
    $region9: #{dp_wrapper_forward.16} parent=5 // pred_check
      _
    $region10: #{dp_wrapper_forward.16} parent=5 // pred_check_branch
      %114 = sbr.rel (%p111) target = $region12
    $region11: #{dp_wrapper_forward.16} parent=5 // pred_region
      %s115 = ssub.s32 %s9, 1
    $region12: #{dp_wrapper_forward.16} parent=5 // pred_fallthru
      _
    %p116 = scmp.lt.s32.totalorder %s9, 2
    // Predicated region
    $region13: #{dp_wrapper_forward.16} parent=5 // pred_check
      %p117 = pneg %p116
    $region14: #{dp_wrapper_forward.16} parent=5 // pred_check_branch
      %119 = sbr.rel (%p117) target = $region16
    $region15: #{dp_wrapper_forward.16} parent=5 // pred_region
      // Predicated region
      $region17: #{dp_wrapper_forward.16} parent=15 // pred_check
        %p120 = pneg %p43
      $region18: #{dp_wrapper_forward.16} parent=15 // pred_check_branch
        %122 = sbr.rel (%p120) target = $region20
      $region19: #{dp_wrapper_forward.16} parent=15 // pred_region
        %p123 = scmp.lt.s32.totalorder %s16, 1
        %s124 = scalar_select %p123, %s16, 1
        %p125 = scmp.lt.s32.totalorder %s17, 0
        %s126 = scalar_select %p125, %s17, 0
        %s127 = smul.addr %s124, 2
        %s128 = sadd.s32 %s126, %s127
        %s129 = smul.addr %s128, 8
        %s130 = scalar_lea.vmem %s0, %s129
      $region20: #{dp_wrapper_forward.16} parent=15 // pred_fallthru
        _
    $region16: #{dp_wrapper_forward.16} parent=5 // pred_fallthru
      _
    %p131 = scmp.le.s32.totalorder 1, %s9
    %p132 = scmp.lt.s32.totalorder %s9, 3
    %p133 = pnand %p131, %p132
    %p134 = pneg %p133
    // Predicated region
    $region21: #{dp_wrapper_forward.16} parent=5 // pred_check
      _
    $region22: #{dp_wrapper_forward.16} parent=5 // pred_check_branch
      %136 = sbr.rel (%p133) target = $region24
    $region23: #{dp_wrapper_forward.16} parent=5 // pred_region
      %s137 = ssub.s32 %s9, 1
      %p138 = scmp.lt.s32.totalorder %s18, 1
      %s139 = scalar_select %p138, %s18, 1
      %p140 = scmp.lt.s32.totalorder %s19, 0
      %s141 = scalar_select %p140, %s19, 0
      %s142 = smul.addr %s139, 2
      %s143 = sadd.s32 %s141, %s142
      %s144 = smul.addr %s143, 8
      %s145 = scalar_lea.vmem %s0, %s144
      %p146 = pneg %p49
      %p147 = pneg %p46
      %p148 = pneg %p75
      %p149 = pneg %p72
      %p150 = scmp.lt.s32.totalorder %s18, 1
      %s151 = scalar_select %p150, %s18, 1
      %s152 = scalar_lea.vmem %s1, %s151
      %p153 = pneg %p101
      %p154 = pneg %p98
      %p155 = scmp.lt.s32.totalorder %s18, 1
      %s156 = scalar_select %p155, %s18, 1
      %s157 = scalar_lea.vmem %s2, %s156
      %p158 = scmp.lt.s32.totalorder %s18, 1
      %s159 = scalar_select %p158, %s18, 1
      %p160 = scmp.lt.s32.totalorder %s19, 0
      %s161 = scalar_select %p160, %s19, 0
      %s162 = smul.addr %s159, 2
      %s163 = sadd.s32 %s161, %s162
      %s164 = smul.addr %s163, 8
      %s165 = scalar_lea.vmem %s0, %s164
      %p166 = scmp.lt.s32.totalorder %s18, 1
      %s167 = scalar_select %p166, %s18, 1
      %s168 = scalar_lea.vmem %s1, %s167
      %p169 = scmp.lt.s32.totalorder %s18, 1
      %s170 = scalar_select %p169, %s18, 1
      %s171 = scalar_lea.vmem %s2, %s170
      %v172 = vld [vmem:[%s165] sm:$0xff]
      %v173 = vld [vmem:[%s165 + $0x8] sm:$0xff]
      %174 = vadd.xlane.f32.xlu0 %v172
      %v175 = vpop.xlane.xlu0 %174
      %176 = vadd.xlane.f32.xlu0 %v173
      %v177 = vpop.xlane.xlu0 %176
      %v178 = vadd.f32 %v175, %v177
      %v179 = vrot.slane %v178, 4
      %v180 = vadd.f32 %v178, %v179
      %v181 = vrot.slane %v180, 2
      %v182 = vadd.f32 %v180, %v181
      %v183 = vrot.slane %v182, 1
      %v184 = vadd.f32 %v182, %v183
      %v185 = vrcp.pop 2048.0
      %v186 = vmul.f32 2048.0, %v185
      %v187 = vsub.f32 1.0, %v186
      %v188 = vmul.f32 %v185, %v187
      %v189 = vadd.f32 %v185, %v188
      %vm190 = vweird.f32 %v185
      %v191 = vsel %vm190, %v185, %v189
      %v192 = vmul.f32 %v184, %v191
      %v193 = vsub.f32 %v172, %v192
      %v194 = vsub.f32 %v173, %v192
      %v195 = vmul.f32 %v193, %v193
      %v196 = vmul.f32 %v194, %v194
      %197 = vadd.xlane.f32.xlu0 %v195
      %v198 = vpop.xlane.xlu0 %197
      %199 = vadd.xlane.f32.xlu0 %v196
      %v200 = vpop.xlane.xlu0 %199
      %v201 = vadd.f32 %v198, %v200
      %v202 = vrot.slane %v201, 4
      %v203 = vadd.f32 %v201, %v202
      %v204 = vrot.slane %v203, 2
      %v205 = vadd.f32 %v203, %v204
      %v206 = vrot.slane %v205, 1
      %v207 = vadd.f32 %v205, %v206
      %p208 = scmp.eq.s32.totalorder %s19, 0
      // Predicated region
      $region25: #{dp_wrapper_forward.16} parent=23 // pred_check
        %p209 = pneg %p208
      $region26: #{dp_wrapper_forward.16} parent=23 // pred_check_branch
        %211 = sbr.rel (%p209) target = $region28
      $region27: #{dp_wrapper_forward.16} parent=23 // pred_region
        %vm212 = vcmask 0
        %213 = vst.msk [vmem:[%s168] sm:$0x1] %vm212, %v192
        %214 = vst.msk [vmem:[%s171] sm:$0x1] %vm212, %v207
      $region28: #{dp_wrapper_forward.16} parent=23 // pred_fallthru
        _
      %p215 = scmp.gt.s32.totalorder %s19, 0
      // Predicated region
      $region29: #{dp_wrapper_forward.16} parent=23 // pred_check
        %p216 = pneg %p215
      $region30: #{dp_wrapper_forward.16} parent=23 // pred_check_branch
        %218 = sbr.rel (%p216) target = $region32
      $region31: #{dp_wrapper_forward.16} parent=23 // pred_region
        %s219 = scvt.s32.f32 %s19
        %s220 = smul.f32 %s219, 2048.0
        %s221 = sadd.f32 %s220, 2048.0
        %v222 = vld [vmem:[%s168] sm:$0x1]
        %v223 = vld [vmem:[%s171] sm:$0x1]
        %v224 = vsub.f32 %v192, %v222
        %v225 = vstv %s221
        %v226 = vrcp.pop %v225
        %v227 = vmul.f32 %v225, %v226
        %v228 = vsub.f32 1.0, %v227
        %v229 = vmul.f32 %v226, %v228
        %v230 = vadd.f32 %v226, %v229
        %vm231 = vweird.f32 %v225
        %vm232 = vweird.f32 %v226
        %vm233 = vmor %vm231, %vm232
        %v234 = vsel %vm233, %v226, %v230
        %v235 = vand.u32 2147483647, %v225
        %vm236 = vcmp.eq.f32.partialorder %v235, 8.507059e+37
        %v237 = vand.u32 %v225, 2147483648
        %v238 = vor.u32 1.1754944e-38, %v237
        %v239 = vsel %vm236, %v238, %v234
        %s240 = vtos %v239
        %s241 = smul.f32 2048.0, %s240
        %v242 = vstv %s241
        %v243 = vmul.f32 %v224, %v242
        %v244 = vadd.f32 %v222, %v243
        %vm245 = vcmask 0
        %246 = vst.msk [vmem:[%s168] sm:$0x1] %vm245, %v244
        %v247 = vadd.f32 %v223, %v207
        %v248 = vmul.f32 %v224, %v224
        %s249 = smul.f32 %s220, %s241
        %v250 = vstv %s249
        %v251 = vmul.f32 %v248, %v250
        %v252 = vadd.f32 %v247, %v251
        %253 = vst.msk [vmem:[%s171] sm:$0x1] %vm245, %v252
      $region32: #{dp_wrapper_forward.16} parent=23 // pred_fallthru
        _
      %p254 = scmp.lt.s32.totalorder %s18, 1
      %s255 = scalar_select %p254, %s18, 1
      %s256 = scalar_lea.vmem %s1, %s255
      %p257 = scmp.lt.s32.totalorder %s18, 1
      %s258 = scalar_select %p257, %s18, 1
      %s259 = scalar_lea.vmem %s2, %s258
      // Predicated region
      $region33: #{dp_wrapper_forward.16} parent=23 // pred_check
        %p260 = pneg %p72
      $region34: #{dp_wrapper_forward.16} parent=23 // pred_check_branch
        %262 = sbr.rel (%p260) target = $region36
      $region35: #{dp_wrapper_forward.16} parent=23 // pred_region
        _
      $region36: #{dp_wrapper_forward.16} parent=23 // pred_fallthru
        _
      // Predicated region
      $region37: #{dp_wrapper_forward.16} parent=23 // pred_check
        %p263 = pneg %p98
      $region38: #{dp_wrapper_forward.16} parent=23 // pred_check_branch
        %265 = sbr.rel (%p263) target = $region40
      $region39: #{dp_wrapper_forward.16} parent=23 // pred_region
        _
      $region40: #{dp_wrapper_forward.16} parent=23 // pred_fallthru
        _
    $region24: #{dp_wrapper_forward.16} parent=5 // pred_fallthru
      _
    %p266 = scmp.le.s32.totalorder 2, %s9
    // Predicated region
    $region41: #{dp_wrapper_forward.16} parent=5 // pred_check
      %p267 = pneg %p266
    $region42: #{dp_wrapper_forward.16} parent=5 // pred_check_branch
      %269 = sbr.rel (%p267) target = $region44
    $region43: #{dp_wrapper_forward.16} parent=5 // pred_region
      %s270 = ssub.s32 %s9, 2
      // Predicated region
      $region45: #{dp_wrapper_forward.16} parent=43 // pred_check
        %p271 = pneg %p78
      $region46: #{dp_wrapper_forward.16} parent=43 // pred_check_branch
        %273 = sbr.rel (%p271) target = $region48
      $region47: #{dp_wrapper_forward.16} parent=43 // pred_region
        %p274 = scmp.lt.s32.totalorder %s20, 1
        %s275 = scalar_select %p274, %s20, 1
        %s276 = scalar_lea.vmem %s1, %s275
      $region48: #{dp_wrapper_forward.16} parent=43 // pred_fallthru
        _
      // Predicated region
      $region49: #{dp_wrapper_forward.16} parent=43 // pred_check
        %p277 = pneg %p104
      $region50: #{dp_wrapper_forward.16} parent=43 // pred_check_branch
        %279 = sbr.rel (%p277) target = $region52
      $region51: #{dp_wrapper_forward.16} parent=43 // pred_region
        %p280 = scmp.lt.s32.totalorder %s20, 1
        %s281 = scalar_select %p280, %s20, 1
        %s282 = scalar_lea.vmem %s2, %s281
      $region52: #{dp_wrapper_forward.16} parent=43 // pred_fallthru
        _
    $region44: #{dp_wrapper_forward.16} parent=5 // pred_fallthru
      _
  $region6: #{dp_wrapper_forward.16} parent=0 // loop_footer
    %s13 = sadd.s32 1, %s9
  $region7: #{dp_wrapper_forward.16} parent=0 // loop_footer_branch
    %8 = sbr.rel target = $region3
  $region8: #{dp_wrapper_forward.16} parent=0 // loop_exit
    _

// kernel: dp_wrapper_forward.15
$region0: #{dp_wrapper_forward.15}
  #allocation0 [shape = 'u32[]', space=smem, size = 0x4, offset = 0x4, fixed_abs, tag = 'smem constant byte address 0x4 - core index']
  #allocation1 [shape = 'u32[72,128]{1,0:T(1,128)}', space=vmem, size = 0x9000, scoped, tag = 'internal scratch']
  %s0 = inlined_call_operand.vmem [shape: bf16[16,64,4], index: 0, kind: input, shape index: {}]
  %s1 = inlined_call_operand.vmem [shape: bf16[2,4,64], index: 1, kind: input, shape index: {}]
  %s2 = inlined_call_operand.vmem [shape: bf16[2,16,64], index: 2, kind: input, shape index: {}]
  %s3 = inlined_call_operand.vmem [shape: f32[2,1,64], index: 3, kind: input, shape index: {}]
  %s4 = inlined_call_operand.vmem [shape: bf16[2,16,4], index: 4, kind: input, shape index: {}]
  %s5 = inlined_call_operand.vmem [shape: f32[1,4], index: 5, kind: input, shape index: {}]
  %s6 = inlined_call_operand.vmem [shape: f32[16,64,4], index: 6, kind: output, shape index: {}]
  %s7 = sld [smem:[#allocation0]]
  $region41: #{dp_wrapper_forward.15} parent=0
    _
  %s9 = ssub.s32 1, %s7
  %s10 = scalar_select 0, %s9, %s7
  // Predicated region
  $region2: #{dp_wrapper_forward.15} parent=0 // pred_check
    _
  $region3: #{dp_wrapper_forward.15} parent=0 // pred_check_branch
    %12 = sbr.rel (0) target = $region5
  $region4: #{dp_wrapper_forward.15} parent=0 // pred_region
    _
  $region5: #{dp_wrapper_forward.15} parent=0 // pred_fallthru
    _
  // Predicated region
  $region6: #{dp_wrapper_forward.15} parent=0 // pred_check
    _
  $region7: #{dp_wrapper_forward.15} parent=0 // pred_check_branch
    %14 = sbr.rel (0) target = $region9
  $region8: #{dp_wrapper_forward.15} parent=0 // pred_region
    _
  $region9: #{dp_wrapper_forward.15} parent=0 // pred_fallthru
    _
  // Predicated region
  $region10: #{dp_wrapper_forward.15} parent=0 // pred_check
    _
  $region11: #{dp_wrapper_forward.15} parent=0 // pred_check_branch
    %16 = sbr.rel (0) target = $region13
  $region12: #{dp_wrapper_forward.15} parent=0 // pred_region
    _
  $region13: #{dp_wrapper_forward.15} parent=0 // pred_fallthru
    _
  // Predicated region
  $region14: #{dp_wrapper_forward.15} parent=0 // pred_check
    _
  $region15: #{dp_wrapper_forward.15} parent=0 // pred_check_branch
    %18 = sbr.rel (0) target = $region17
  $region16: #{dp_wrapper_forward.15} parent=0 // pred_region
    _
  $region17: #{dp_wrapper_forward.15} parent=0 // pred_fallthru
    _
  // Predicated region
  $region18: #{dp_wrapper_forward.15} parent=0 // pred_check
    _
  $region19: #{dp_wrapper_forward.15} parent=0 // pred_check_branch
    %20 = sbr.rel (0) target = $region21
  $region20: #{dp_wrapper_forward.15} parent=0 // pred_region
    _
  $region21: #{dp_wrapper_forward.15} parent=0 // pred_fallthru
    _
  // Predicated region
  $region22: #{dp_wrapper_forward.15} parent=0 // pred_check
    _
  $region23: #{dp_wrapper_forward.15} parent=0 // pred_check_branch
    %22 = sbr.rel (0) target = $region25
  $region24: #{dp_wrapper_forward.15} parent=0 // pred_region
    _
  $region25: #{dp_wrapper_forward.15} parent=0 // pred_fallthru
    _
  %v24 = vld [vmem:[%s5] sm:$0x1]
  %v26 = vperm.slane %v24, 0
  %vm28 = vcmask 31744
  %29 = vst.msk [vmem:[%s6] sm:$0xff] %vm28, %v26
  %30 = vst.msk [vmem:[%s6 + $0x8] sm:$0xff] %vm28, %v26
  %31 = vst.msk [vmem:[%s6 + $0x10] sm:$0xff] %vm28, %v26
  %32 = vst.msk [vmem:[%s6 + $0x18] sm:$0xff] %vm28, %v26
  %33 = vst.msk [vmem:[%s6 + $0x20] sm:$0xff] %vm28, %v26
  %34 = vst.msk [vmem:[%s6 + $0x28] sm:$0xff] %vm28, %v26
  %35 = vst.msk [vmem:[%s6 + $0x30] sm:$0xff] %vm28, %v26
  %36 = vst.msk [vmem:[%s6 + $0x38] sm:$0xff] %vm28, %v26
  %37 = vst.msk [vmem:[%s6 + $0x40] sm:$0xff] %vm28, %v26
  %38 = vst.msk [vmem:[%s6 + $0x48] sm:$0xff] %vm28, %v26
  %39 = vst.msk [vmem:[%s6 + $0x50] sm:$0xff] %vm28, %v26
  %40 = vst.msk [vmem:[%s6 + $0x58] sm:$0xff] %vm28, %v26
  %41 = vst.msk [vmem:[%s6 + $0x60] sm:$0xff] %vm28, %v26
  %42 = vst.msk [vmem:[%s6 + $0x68] sm:$0xff] %vm28, %v26
  %43 = vst.msk [vmem:[%s6 + $0x70] sm:$0xff] %vm28, %v26
  %44 = vst.msk [vmem:[%s6 + $0x78] sm:$0xff] %vm28, %v26
  %45 = vst.msk [vmem:[%s6 + $0x80] sm:$0xff] %vm28, %v26
  %46 = vst.msk [vmem:[%s6 + $0x88] sm:$0xff] %vm28, %v26
  %47 = vst.msk [vmem:[%s6 + $0x90] sm:$0xff] %vm28, %v26
  %48 = vst.msk [vmem:[%s6 + $0x98] sm:$0xff] %vm28, %v26
  %49 = vst.msk [vmem:[%s6 + $0xa0] sm:$0xff] %vm28, %v26
  %50 = vst.msk [vmem:[%s6 + $0xa8] sm:$0xff] %vm28, %v26
  %51 = vst.msk [vmem:[%s6 + $0xb0] sm:$0xff] %vm28, %v26
  %52 = vst.msk [vmem:[%s6 + $0xb8] sm:$0xff] %vm28, %v26
  %53 = vst.msk [vmem:[%s6 + $0xc0] sm:$0xff] %vm28, %v26
  %54 = vst.msk [vmem:[%s6 + $0xc8] sm:$0xff] %vm28, %v26
  %55 = vst.msk [vmem:[%s6 + $0xd0] sm:$0xff] %vm28, %v26
  %56 = vst.msk [vmem:[%s6 + $0xd8] sm:$0xff] %vm28, %v26
  %57 = vst.msk [vmem:[%s6 + $0xe0] sm:$0xff] %vm28, %v26
  %58 = vst.msk [vmem:[%s6 + $0xe8] sm:$0xff] %vm28, %v26
  %59 = vst.msk [vmem:[%s6 + $0xf0] sm:$0xff] %vm28, %v26
  %60 = vst.msk [vmem:[%s6 + $0xf8] sm:$0xff] %vm28, %v26
  %61 = vst.msk [vmem:[%s6 + $0x100] sm:$0xff] %vm28, %v26
  %62 = vst.msk [vmem:[%s6 + $0x108] sm:$0xff] %vm28, %v26
  %63 = vst.msk [vmem:[%s6 + $0x110] sm:$0xff] %vm28, %v26
  %64 = vst.msk [vmem:[%s6 + $0x118] sm:$0xff] %vm28, %v26
  %65 = vst.msk [vmem:[%s6 + $0x120] sm:$0xff] %vm28, %v26
  %66 = vst.msk [vmem:[%s6 + $0x128] sm:$0xff] %vm28, %v26
  %67 = vst.msk [vmem:[%s6 + $0x130] sm:$0xff] %vm28, %v26
  %68 = vst.msk [vmem:[%s6 + $0x138] sm:$0xff] %vm28, %v26
  %69 = vst.msk [vmem:[%s6 + $0x140] sm:$0xff] %vm28, %v26
  %70 = vst.msk [vmem:[%s6 + $0x148] sm:$0xff] %vm28, %v26
  %71 = vst.msk [vmem:[%s6 + $0x150] sm:$0xff] %vm28, %v26
  %72 = vst.msk [vmem:[%s6 + $0x158] sm:$0xff] %vm28, %v26
  %73 = vst.msk [vmem:[%s6 + $0x160] sm:$0xff] %vm28, %v26
  %74 = vst.msk [vmem:[%s6 + $0x168] sm:$0xff] %vm28, %v26
  %75 = vst.msk [vmem:[%s6 + $0x170] sm:$0xff] %vm28, %v26
  %76 = vst.msk [vmem:[%s6 + $0x178] sm:$0xff] %vm28, %v26
  %77 = vst.msk [vmem:[%s6 + $0x180] sm:$0xff] %vm28, %v26
  %78 = vst.msk [vmem:[%s6 + $0x188] sm:$0xff] %vm28, %v26
  %79 = vst.msk [vmem:[%s6 + $0x190] sm:$0xff] %vm28, %v26
  %80 = vst.msk [vmem:[%s6 + $0x198] sm:$0xff] %vm28, %v26
  %81 = vst.msk [vmem:[%s6 + $0x1a0] sm:$0xff] %vm28, %v26
  %82 = vst.msk [vmem:[%s6 + $0x1a8] sm:$0xff] %vm28, %v26
  %83 = vst.msk [vmem:[%s6 + $0x1b0] sm:$0xff] %vm28, %v26
  %84 = vst.msk [vmem:[%s6 + $0x1b8] sm:$0xff] %vm28, %v26
  %85 = vst.msk [vmem:[%s6 + $0x1c0] sm:$0xff] %vm28, %v26
  %86 = vst.msk [vmem:[%s6 + $0x1c8] sm:$0xff] %vm28, %v26
  %87 = vst.msk [vmem:[%s6 + $0x1d0] sm:$0xff] %vm28, %v26
  %88 = vst.msk [vmem:[%s6 + $0x1d8] sm:$0xff] %vm28, %v26
  %89 = vst.msk [vmem:[%s6 + $0x1e0] sm:$0xff] %vm28, %v26
  %90 = vst.msk [vmem:[%s6 + $0x1e8] sm:$0xff] %vm28, %v26
  %91 = vst.msk [vmem:[%s6 + $0x1f0] sm:$0xff] %vm28, %v26
  %92 = vst.msk [vmem:[%s6 + $0x1f8] sm:$0xff] %vm28, %v26
  %93 = vst.msk [vmem:[%s6 + $0x200] sm:$0xff] %vm28, %v26
  %94 = vst.msk [vmem:[%s6 + $0x208] sm:$0xff] %vm28, %v26
  %95 = vst.msk [vmem:[%s6 + $0x210] sm:$0xff] %vm28, %v26
  %96 = vst.msk [vmem:[%s6 + $0x218] sm:$0xff] %vm28, %v26
  %97 = vst.msk [vmem:[%s6 + $0x220] sm:$0xff] %vm28, %v26
  %98 = vst.msk [vmem:[%s6 + $0x228] sm:$0xff] %vm28, %v26
  %99 = vst.msk [vmem:[%s6 + $0x230] sm:$0xff] %vm28, %v26
  %100 = vst.msk [vmem:[%s6 + $0x238] sm:$0xff] %vm28, %v26
  %101 = vst.msk [vmem:[%s6 + $0x240] sm:$0xff] %vm28, %v26
  %102 = vst.msk [vmem:[%s6 + $0x248] sm:$0xff] %vm28, %v26
  %103 = vst.msk [vmem:[%s6 + $0x250] sm:$0xff] %vm28, %v26
  %104 = vst.msk [vmem:[%s6 + $0x258] sm:$0xff] %vm28, %v26
  %105 = vst.msk [vmem:[%s6 + $0x260] sm:$0xff] %vm28, %v26
  %106 = vst.msk [vmem:[%s6 + $0x268] sm:$0xff] %vm28, %v26
  %107 = vst.msk [vmem:[%s6 + $0x270] sm:$0xff] %vm28, %v26
  %108 = vst.msk [vmem:[%s6 + $0x278] sm:$0xff] %vm28, %v26
  %109 = vst.msk [vmem:[%s6 + $0x280] sm:$0xff] %vm28, %v26
  %110 = vst.msk [vmem:[%s6 + $0x288] sm:$0xff] %vm28, %v26
  %111 = vst.msk [vmem:[%s6 + $0x290] sm:$0xff] %vm28, %v26
  %112 = vst.msk [vmem:[%s6 + $0x298] sm:$0xff] %vm28, %v26
  %113 = vst.msk [vmem:[%s6 + $0x2a0] sm:$0xff] %vm28, %v26
  %114 = vst.msk [vmem:[%s6 + $0x2a8] sm:$0xff] %vm28, %v26
  %115 = vst.msk [vmem:[%s6 + $0x2b0] sm:$0xff] %vm28, %v26
  %116 = vst.msk [vmem:[%s6 + $0x2b8] sm:$0xff] %vm28, %v26
  %117 = vst.msk [vmem:[%s6 + $0x2c0] sm:$0xff] %vm28, %v26
  %118 = vst.msk [vmem:[%s6 + $0x2c8] sm:$0xff] %vm28, %v26
  %119 = vst.msk [vmem:[%s6 + $0x2d0] sm:$0xff] %vm28, %v26
  %120 = vst.msk [vmem:[%s6 + $0x2d8] sm:$0xff] %vm28, %v26
  %121 = vst.msk [vmem:[%s6 + $0x2e0] sm:$0xff] %vm28, %v26
  %122 = vst.msk [vmem:[%s6 + $0x2e8] sm:$0xff] %vm28, %v26
  %123 = vst.msk [vmem:[%s6 + $0x2f0] sm:$0xff] %vm28, %v26
  %124 = vst.msk [vmem:[%s6 + $0x2f8] sm:$0xff] %vm28, %v26
  %125 = vst.msk [vmem:[%s6 + $0x300] sm:$0xff] %vm28, %v26
  %126 = vst.msk [vmem:[%s6 + $0x308] sm:$0xff] %vm28, %v26
  %127 = vst.msk [vmem:[%s6 + $0x310] sm:$0xff] %vm28, %v26
  %128 = vst.msk [vmem:[%s6 + $0x318] sm:$0xff] %vm28, %v26
  %129 = vst.msk [vmem:[%s6 + $0x320] sm:$0xff] %vm28, %v26
  %130 = vst.msk [vmem:[%s6 + $0x328] sm:$0xff] %vm28, %v26
  %131 = vst.msk [vmem:[%s6 + $0x330] sm:$0xff] %vm28, %v26
  %132 = vst.msk [vmem:[%s6 + $0x338] sm:$0xff] %vm28, %v26
  %133 = vst.msk [vmem:[%s6 + $0x340] sm:$0xff] %vm28, %v26
  %134 = vst.msk [vmem:[%s6 + $0x348] sm:$0xff] %vm28, %v26
  %135 = vst.msk [vmem:[%s6 + $0x350] sm:$0xff] %vm28, %v26
  %136 = vst.msk [vmem:[%s6 + $0x358] sm:$0xff] %vm28, %v26
  %137 = vst.msk [vmem:[%s6 + $0x360] sm:$0xff] %vm28, %v26
  %138 = vst.msk [vmem:[%s6 + $0x368] sm:$0xff] %vm28, %v26
  %139 = vst.msk [vmem:[%s6 + $0x370] sm:$0xff] %vm28, %v26
  %140 = vst.msk [vmem:[%s6 + $0x378] sm:$0xff] %vm28, %v26
  %141 = vst.msk [vmem:[%s6 + $0x380] sm:$0xff] %vm28, %v26
  %142 = vst.msk [vmem:[%s6 + $0x388] sm:$0xff] %vm28, %v26
  %143 = vst.msk [vmem:[%s6 + $0x390] sm:$0xff] %vm28, %v26
  %144 = vst.msk [vmem:[%s6 + $0x398] sm:$0xff] %vm28, %v26
  %145 = vst.msk [vmem:[%s6 + $0x3a0] sm:$0xff] %vm28, %v26
  %146 = vst.msk [vmem:[%s6 + $0x3a8] sm:$0xff] %vm28, %v26
  %147 = vst.msk [vmem:[%s6 + $0x3b0] sm:$0xff] %vm28, %v26
  %148 = vst.msk [vmem:[%s6 + $0x3b8] sm:$0xff] %vm28, %v26
  %149 = vst.msk [vmem:[%s6 + $0x3c0] sm:$0xff] %vm28, %v26
  %150 = vst.msk [vmem:[%s6 + $0x3c8] sm:$0xff] %vm28, %v26
  %151 = vst.msk [vmem:[%s6 + $0x3d0] sm:$0xff] %vm28, %v26
  %152 = vst.msk [vmem:[%s6 + $0x3d8] sm:$0xff] %vm28, %v26
  %153 = vst.msk [vmem:[%s6 + $0x3e0] sm:$0xff] %vm28, %v26
  %154 = vst.msk [vmem:[%s6 + $0x3e8] sm:$0xff] %vm28, %v26
  %155 = vst.msk [vmem:[%s6 + $0x3f0] sm:$0xff] %vm28, %v26
  %156 = vst.msk [vmem:[%s6 + $0x3f8] sm:$0xff] %vm28, %v26
  loop: start=0, step=1, limit=16
  $region26: #{dp_wrapper_forward.15} parent=0 // loop_pre_header
    _
  $region27: #{dp_wrapper_forward.15} parent=0 // loop_header
    %s158 = sphi 0, %s162
    %p159 = scmp.ge.s32.totalorder %s158, 16
    %v163 = vphi 0, %v827
    %v164 = vphi 0, %v828
    %v165 = vphi 0, %v829
    %v166 = vphi 0, %v830
    %v167 = vphi 0, %v831
    %v168 = vphi 0, %v832
    %v169 = vphi 0, %v833
    %v170 = vphi 0, %v834
    %v171 = vphi 0.0, %v771
    %v172 = vphi 0.0, %v772
    %v173 = vphi 0.0, %v773
    %v174 = vphi 0.0, %v774
    %v175 = vphi 0.0, %v775
    %v176 = vphi 0.0, %v776
    %v177 = vphi 0.0, %v777
    %v178 = vphi 0.0, %v778
    %v179 = vphi 0, %v1131
    %v180 = vphi 0, %v1132
    %v181 = vphi 0, %v1133
    %v182 = vphi 0, %v1134
    %v183 = vphi 0, %v1135
    %v184 = vphi 0, %v1136
    %v185 = vphi 0, %v1137
    %v186 = vphi 0, %v1138
    %v187 = vphi 0.0, %v1075
    %v188 = vphi 0.0, %v1076
    %v189 = vphi 0.0, %v1077
    %v190 = vphi 0.0, %v1078
    %v191 = vphi 0.0, %v1079
    %v192 = vphi 0.0, %v1080
    %v193 = vphi 0.0, %v1081
    %v194 = vphi 0.0, %v1082
  $region28: #{dp_wrapper_forward.15} parent=0 // loop_header_branch
    %161 = sbr.rel (%p159) target = $region32
  $region29: #{dp_wrapper_forward.15} parent=0 // loop_body
    %s195 = ssub.s32 15, %s158
    %s196 = smul.u32 %s158, 8
    %s197 = smul.addr %s196, 4
    %s198 = scalar_lea.vmem %s0, %s197
    %v199 = vld [vmem:[%s198] sm:$0xf]
    %v200 = vld [vmem:[%s198 + $0x4] sm:$0xf]
    %v201 = vld [vmem:[%s198 + $0x8] sm:$0xf]
    %v202 = vld [vmem:[%s198 + $0xc] sm:$0xf]
    %v203 = vld [vmem:[%s198 + $0x10] sm:$0xf]
    %v204 = vld [vmem:[%s198 + $0x14] sm:$0xf]
    %v205 = vld [vmem:[%s198 + $0x18] sm:$0xf]
    %v206 = vld [vmem:[%s198 + $0x1c] sm:$0xf]
    %s207 = smul.u32 %s195, 8
    %s208 = smul.addr %s207, 4
    %s209 = scalar_lea.vmem %s0, %s208
    %v210 = vld [vmem:[%s209] sm:$0xf]
    %v211 = vld [vmem:[%s209 + $0x4] sm:$0xf]
    %v212 = vld [vmem:[%s209 + $0x8] sm:$0xf]
    %v213 = vld [vmem:[%s209 + $0xc] sm:$0xf]
    %v214 = vld [vmem:[%s209 + $0x10] sm:$0xf]
    %v215 = vld [vmem:[%s209 + $0x14] sm:$0xf]
    %v216 = vld [vmem:[%s209 + $0x18] sm:$0xf]
    %v217 = vld [vmem:[%s209 + $0x1c] sm:$0xf]
    %v218 = vld [vmem:[%s1] sm:$0x3]
    %v219 = vld [vmem:[%s2] sm:$0xf]
    %v220 = vld [vmem:[%s2 + $0x4] sm:$0xf]
    %v229 = vunpack.c.l.b16 %v163
    %v230 = vunpack.c.l.b16 %v164
    %v231 = vunpack.c.l.b16 %v165
    %v232 = vunpack.c.l.b16 %v166
    %v233 = vunpack.c.l.b16 %v167
    %v234 = vunpack.c.l.b16 %v168
    %v235 = vunpack.c.l.b16 %v169
    %v236 = vunpack.c.l.b16 %v170
    %v237 = vpack.c.b16 %v230, %v229
    %v238 = vpack.c.b16 %v232, %v231
    %v239 = vpack.c.b16 %v234, %v233
    %v240 = vpack.c.b16 %v236, %v235
    %241 = vrot.lane.b32.xlu0 %v237, 80
    %v242 = vpop.permute.xlu0 %241
    %243 = vrot.lane.b32.xlu0 %v238, 80
    %v244 = vpop.permute.xlu0 %243
    %245 = vrot.lane.b32.xlu0 %v239, 80
    %v246 = vpop.permute.xlu0 %245
    %247 = vrot.lane.b32.xlu0 %v240, 80
    %v248 = vpop.permute.xlu0 %247
    %v251 = vunpack.c.l.b16 %v219
    %v252 = vunpack.c.l.b16 %v220
    %v253 = vpack.c.b16 %v252, %v251
    %vm255 = vcmask 130048
    %v257 = vsel %vm255, %v242, 0
    %v260 = vsel %vm255, %v244, 0
    %v263 = vsel %vm255, %v246, 0
    %v266 = vsel %vm255, %v248, 0
    %268 = vmatpush.bf16.msra.mxu0 0
    %269 = vmatpush.bf16.msra.mxu0 0
    %270 = vmatpush.bf16.msra.mxu0 0
    %271 = vmatpush.bf16.msra.mxu0 0
    %272 = vmatpush.bf16.msra.mxu0 0
    %273 = vmatpush.bf16.msra.mxu0 0
    %274 = vmatpush.bf16.msra.mxu0 0
    %275 = vmatpush.bf16.msra.mxu0 %v253
    %276 = vmatmul.bf16.gmra.mxu0 %v257
    %v277 = vpop.f32.mrf.mxu0
    %v278 = vadd.f32 0.0, %v277
    %v279 = vpop.f32.mrf.mxu0
    %v280 = vadd.f32 0.0, %v279
    %281 = vmatmul.bf16.gmra.mxu0 %v260
    %v282 = vpop.f32.mrf.mxu0
    %v283 = vadd.f32 0.0, %v282
    %v284 = vpop.f32.mrf.mxu0
    %v285 = vadd.f32 0.0, %v284
    %286 = vmatmul.bf16.gmra.mxu0 %v263
    %v287 = vpop.f32.mrf.mxu0
    %v288 = vadd.f32 0.0, %v287
    %v289 = vpop.f32.mrf.mxu0
    %v290 = vadd.f32 0.0, %v289
    %291 = vmatmul.bf16.gmra.mxu0 %v266
    %v292 = vpop.f32.mrf.mxu0
    %v293 = vadd.f32 0.0, %v292
    %v294 = vpop.f32.mrf.mxu0
    %v295 = vadd.f32 0.0, %v294
    %296 = vdwg.mxu0
    %v305 = vunpack.c.l.b16 %v199
    %v306 = vunpack.c.l.b16 %v200
    %v307 = vunpack.c.l.b16 %v201
    %v308 = vunpack.c.l.b16 %v202
    %v309 = vunpack.c.l.b16 %v203
    %v310 = vunpack.c.l.b16 %v204
    %v311 = vunpack.c.l.b16 %v205
    %v312 = vunpack.c.l.b16 %v206
    %v313 = vpack.c.b16 %v306, %v305
    %v314 = vpack.c.b16 %v308, %v307
    %v315 = vpack.c.b16 %v310, %v309
    %v316 = vpack.c.b16 %v312, %v311
    %v318 = vsel %vm28, %v313, 0
    %v321 = vsel %vm28, %v314, 0
    %v324 = vsel %vm28, %v315, 0
    %v327 = vsel %vm28, %v316, 0
    %vm329 = vcmask 1041408
    %v331 = vsel %vm329, %v218, 0
    %333 = vmatpush.bf16.msra.mxu0 0
    %334 = vmatpush.bf16.msra.mxu0 0
    %335 = vmatpush.bf16.msra.mxu0 0
    %336 = vmatpush.bf16.msra.mxu0 0
    %337 = vmatpush.bf16.msra.mxu0 0
    %338 = vmatpush.bf16.msra.mxu0 0
    %339 = vmatpush.bf16.msra.mxu0 0
    %340 = vmatpush.bf16.msra.mxu0 %v331
    %341 = vmatmul.bf16.gmra.mxu0 %v318
    %v342 = vpop.f32.mrf.mxu0
    %v343 = vadd.f32 %v278, %v342
    %v344 = vpop.f32.mrf.mxu0
    %v345 = vadd.f32 %v280, %v344
    %346 = vmatmul.bf16.gmra.mxu0 %v321
    %v347 = vpop.f32.mrf.mxu0
    %v348 = vadd.f32 %v283, %v347
    %v349 = vpop.f32.mrf.mxu0
    %v350 = vadd.f32 %v285, %v349
    %351 = vmatmul.bf16.gmra.mxu0 %v324
    %v352 = vpop.f32.mrf.mxu0
    %v353 = vadd.f32 %v288, %v352
    %v354 = vpop.f32.mrf.mxu0
    %v355 = vadd.f32 %v290, %v354
    %356 = vmatmul.bf16.gmra.mxu0 %v327
    %v357 = vpop.f32.mrf.mxu0
    %v358 = vadd.f32 %v293, %v357
    %v359 = vpop.f32.mrf.mxu0
    %v360 = vadd.f32 %v295, %v359
    %361 = vdwg.mxu0
    %v362 = vld [vmem:[%s3] sm:$0x1]
    %v364 = vperm.slane %v362, 0
    %v366 = vadd.f32 %v343, %v364
    %v367 = vadd.f32 %v345, %v364
    %v368 = vadd.f32 %v348, %v364
    %v369 = vadd.f32 %v350, %v364
    %v370 = vadd.f32 %v353, %v364
    %v371 = vadd.f32 %v355, %v364
    %v372 = vadd.f32 %v358, %v364
    %v373 = vadd.f32 %v360, %v364
    %s374 = scalar_lea.vmem %s1, 2
    %v375 = vld [vmem:[%s374] sm:$0x3]
    %s376 = scalar_lea.vmem %s2, 8
    %v377 = vld [vmem:[%s376] sm:$0xf]
    %v378 = vld [vmem:[%s376 + $0x4] sm:$0xf]
    %v387 = vunpack.c.l.b16 %v179
    %v388 = vunpack.c.l.b16 %v180
    %v389 = vunpack.c.l.b16 %v181
    %v390 = vunpack.c.l.b16 %v182
    %v391 = vunpack.c.l.b16 %v183
    %v392 = vunpack.c.l.b16 %v184
    %v393 = vunpack.c.l.b16 %v185
    %v394 = vunpack.c.l.b16 %v186
    %v395 = vpack.c.b16 %v388, %v387
    %v396 = vpack.c.b16 %v390, %v389
    %v397 = vpack.c.b16 %v392, %v391
    %v398 = vpack.c.b16 %v394, %v393
    %399 = vrot.lane.b32.xlu0 %v395, 80
    %v400 = vpop.permute.xlu0 %399
    %401 = vrot.lane.b32.xlu0 %v396, 80
    %v402 = vpop.permute.xlu0 %401
    %403 = vrot.lane.b32.xlu0 %v397, 80
    %v404 = vpop.permute.xlu0 %403
    %405 = vrot.lane.b32.xlu0 %v398, 80
    %v406 = vpop.permute.xlu0 %405
    %v409 = vunpack.c.l.b16 %v377
    %v410 = vunpack.c.l.b16 %v378
    %v411 = vpack.c.b16 %v410, %v409
    %v414 = vsel %vm255, %v400, 0
    %v417 = vsel %vm255, %v402, 0
    %v420 = vsel %vm255, %v404, 0
    %v423 = vsel %vm255, %v406, 0
    %425 = vmatpush.bf16.msra.mxu0 0
    %426 = vmatpush.bf16.msra.mxu0 0
    %427 = vmatpush.bf16.msra.mxu0 0
    %428 = vmatpush.bf16.msra.mxu0 0
    %429 = vmatpush.bf16.msra.mxu0 0
    %430 = vmatpush.bf16.msra.mxu0 0
    %431 = vmatpush.bf16.msra.mxu0 0
    %432 = vmatpush.bf16.msra.mxu0 %v411
    %433 = vmatmul.bf16.gmra.mxu0 %v414
    %v434 = vpop.f32.mrf.mxu0
    %v435 = vadd.f32 0.0, %v434
    %v436 = vpop.f32.mrf.mxu0
    %v437 = vadd.f32 0.0, %v436
    %438 = vmatmul.bf16.gmra.mxu0 %v417
    %v439 = vpop.f32.mrf.mxu0
    %v440 = vadd.f32 0.0, %v439
    %v441 = vpop.f32.mrf.mxu0
    %v442 = vadd.f32 0.0, %v441
    %443 = vmatmul.bf16.gmra.mxu0 %v420
    %v444 = vpop.f32.mrf.mxu0
    %v445 = vadd.f32 0.0, %v444
    %v446 = vpop.f32.mrf.mxu0
    %v447 = vadd.f32 0.0, %v446
    %448 = vmatmul.bf16.gmra.mxu0 %v423
    %v449 = vpop.f32.mrf.mxu0
    %v450 = vadd.f32 0.0, %v449
    %v451 = vpop.f32.mrf.mxu0
    %v452 = vadd.f32 0.0, %v451
    %453 = vdwg.mxu0
    %v462 = vunpack.c.l.b16 %v210
    %v463 = vunpack.c.l.b16 %v211
    %v464 = vunpack.c.l.b16 %v212
    %v465 = vunpack.c.l.b16 %v213
    %v466 = vunpack.c.l.b16 %v214
    %v467 = vunpack.c.l.b16 %v215
    %v468 = vunpack.c.l.b16 %v216
    %v469 = vunpack.c.l.b16 %v217
    %v470 = vpack.c.b16 %v463, %v462
    %v471 = vpack.c.b16 %v465, %v464
    %v472 = vpack.c.b16 %v467, %v466
    %v473 = vpack.c.b16 %v469, %v468
    %v475 = vsel %vm28, %v470, 0
    %v478 = vsel %vm28, %v471, 0
    %v481 = vsel %vm28, %v472, 0
    %v484 = vsel %vm28, %v473, 0
    %v487 = vsel %vm329, %v375, 0
    %489 = vmatpush.bf16.msra.mxu0 0
    %490 = vmatpush.bf16.msra.mxu0 0
    %491 = vmatpush.bf16.msra.mxu0 0
    %492 = vmatpush.bf16.msra.mxu0 0
    %493 = vmatpush.bf16.msra.mxu0 0
    %494 = vmatpush.bf16.msra.mxu0 0
    %495 = vmatpush.bf16.msra.mxu0 0
    %496 = vmatpush.bf16.msra.mxu0 %v487
    %497 = vmatmul.bf16.gmra.mxu0 %v475
    %v498 = vpop.f32.mrf.mxu0
    %v499 = vadd.f32 %v435, %v498
    %v500 = vpop.f32.mrf.mxu0
    %v501 = vadd.f32 %v437, %v500
    %502 = vmatmul.bf16.gmra.mxu0 %v478
    %v503 = vpop.f32.mrf.mxu0
    %v504 = vadd.f32 %v440, %v503
    %v505 = vpop.f32.mrf.mxu0
    %v506 = vadd.f32 %v442, %v505
    %507 = vmatmul.bf16.gmra.mxu0 %v481
    %v508 = vpop.f32.mrf.mxu0
    %v509 = vadd.f32 %v445, %v508
    %v510 = vpop.f32.mrf.mxu0
    %v511 = vadd.f32 %v447, %v510
    %512 = vmatmul.bf16.gmra.mxu0 %v484
    %v513 = vpop.f32.mrf.mxu0
    %v514 = vadd.f32 %v450, %v513
    %v515 = vpop.f32.mrf.mxu0
    %v516 = vadd.f32 %v452, %v515
    %517 = vdwg.mxu0
    %s518 = scalar_lea.vmem %s3, 1
    %v519 = vld [vmem:[%s518] sm:$0x1]
    %v521 = vperm.slane %v519, 0
    %v523 = vadd.f32 %v499, %v521
    %v524 = vadd.f32 %v501, %v521
    %v525 = vadd.f32 %v504, %v521
    %v526 = vadd.f32 %v506, %v521
    %v527 = vadd.f32 %v509, %v521
    %v528 = vadd.f32 %v511, %v521
    %v529 = vadd.f32 %v514, %v521
    %v530 = vadd.f32 %v516, %v521
    %v531 = vxor.u32 %v366, 2147483648
    %v532 = vxor.u32 %v367, 2147483648
    %v533 = vxor.u32 %v368, 2147483648
    %v534 = vxor.u32 %v369, 2147483648
    %v535 = vxor.u32 %v370, 2147483648
    %v536 = vxor.u32 %v371, 2147483648
    %v537 = vxor.u32 %v372, 2147483648
    %v538 = vxor.u32 %v373, 2147483648
    %v539 = vmul.f32 %v531, 1.442695
    %v540 = vpow.pop %v539
    %v541 = vmul.f32 %v532, 1.442695
    %v542 = vpow.pop %v541
    %v543 = vmul.f32 %v533, 1.442695
    %v544 = vpow.pop %v543
    %v545 = vmul.f32 %v534, 1.442695
    %v546 = vpow.pop %v545
    %v547 = vmul.f32 %v535, 1.442695
    %v548 = vpow.pop %v547
    %v549 = vmul.f32 %v536, 1.442695
    %v550 = vpow.pop %v549
    %v551 = vmul.f32 %v537, 1.442695
    %v552 = vpow.pop %v551
    %v553 = vmul.f32 %v538, 1.442695
    %v554 = vpow.pop %v553
    %v555 = vadd.f32 %v540, 1.0
    %v556 = vadd.f32 %v542, 1.0
    %v557 = vadd.f32 %v544, 1.0
    %v558 = vadd.f32 %v546, 1.0
    %v559 = vadd.f32 %v548, 1.0
    %v560 = vadd.f32 %v550, 1.0
    %v561 = vadd.f32 %v552, 1.0
    %v562 = vadd.f32 %v554, 1.0
    %v563 = vrcp.pop %v555
    %v564 = vmul.f32 %v555, %v563
    %v565 = vsub.f32 1.0, %v564
    %v566 = vmul.f32 %v563, %v565
    %v567 = vadd.f32 %v563, %v566
    %vm568 = vweird.f32 %v555
    %vm569 = vweird.f32 %v563
    %vm570 = vmor %vm568, %vm569
    %v571 = vsel %vm570, %v563, %v567
    %v572 = vand.u32 2147483647, %v555
    %vm573 = vcmp.eq.f32.partialorder %v572, 8.507059e+37
    %v574 = vand.u32 %v555, 2147483648
    %v575 = vor.u32 1.1754944e-38, %v574
    %v576 = vsel %vm573, %v575, %v571
    %v577 = vmul.f32 1.0, %v576
    %v578 = vrcp.pop %v556
    %v579 = vmul.f32 %v556, %v578
    %v580 = vsub.f32 1.0, %v579
    %v581 = vmul.f32 %v578, %v580
    %v582 = vadd.f32 %v578, %v581
    %vm583 = vweird.f32 %v556
    %vm584 = vweird.f32 %v578
    %vm585 = vmor %vm583, %vm584
    %v586 = vsel %vm585, %v578, %v582
    %v587 = vand.u32 2147483647, %v556
    %vm588 = vcmp.eq.f32.partialorder %v587, 8.507059e+37
    %v589 = vand.u32 %v556, 2147483648
    %v590 = vor.u32 1.1754944e-38, %v589
    %v591 = vsel %vm588, %v590, %v586
    %v592 = vmul.f32 1.0, %v591
    %v593 = vrcp.pop %v557
    %v594 = vmul.f32 %v557, %v593
    %v595 = vsub.f32 1.0, %v594
    %v596 = vmul.f32 %v593, %v595
    %v597 = vadd.f32 %v593, %v596
    %vm598 = vweird.f32 %v557
    %vm599 = vweird.f32 %v593
    %vm600 = vmor %vm598, %vm599
    %v601 = vsel %vm600, %v593, %v597
    %v602 = vand.u32 2147483647, %v557
    %vm603 = vcmp.eq.f32.partialorder %v602, 8.507059e+37
    %v604 = vand.u32 %v557, 2147483648
    %v605 = vor.u32 1.1754944e-38, %v604
    %v606 = vsel %vm603, %v605, %v601
    %v607 = vmul.f32 1.0, %v606
    %v608 = vrcp.pop %v558
    %v609 = vmul.f32 %v558, %v608
    %v610 = vsub.f32 1.0, %v609
    %v611 = vmul.f32 %v608, %v610
    %v612 = vadd.f32 %v608, %v611
    %vm613 = vweird.f32 %v558
    %vm614 = vweird.f32 %v608
    %vm615 = vmor %vm613, %vm614
    %v616 = vsel %vm615, %v608, %v612
    %v617 = vand.u32 2147483647, %v558
    %vm618 = vcmp.eq.f32.partialorder %v617, 8.507059e+37
    %v619 = vand.u32 %v558, 2147483648
    %v620 = vor.u32 1.1754944e-38, %v619
    %v621 = vsel %vm618, %v620, %v616
    %v622 = vmul.f32 1.0, %v621
    %v623 = vrcp.pop %v559
    %v624 = vmul.f32 %v559, %v623
    %v625 = vsub.f32 1.0, %v624
    %v626 = vmul.f32 %v623, %v625
    %v627 = vadd.f32 %v623, %v626
    %vm628 = vweird.f32 %v559
    %vm629 = vweird.f32 %v623
    %vm630 = vmor %vm628, %vm629
    %v631 = vsel %vm630, %v623, %v627
    %v632 = vand.u32 2147483647, %v559
    %vm633 = vcmp.eq.f32.partialorder %v632, 8.507059e+37
    %v634 = vand.u32 %v559, 2147483648
    %v635 = vor.u32 1.1754944e-38, %v634
    %v636 = vsel %vm633, %v635, %v631
    %v637 = vmul.f32 1.0, %v636
    %v638 = vrcp.pop %v560
    %v639 = vmul.f32 %v560, %v638
    %v640 = vsub.f32 1.0, %v639
    %v641 = vmul.f32 %v638, %v640
    %v642 = vadd.f32 %v638, %v641
    %vm643 = vweird.f32 %v560
    %vm644 = vweird.f32 %v638
    %vm645 = vmor %vm643, %vm644
    %v646 = vsel %vm645, %v638, %v642
    %v647 = vand.u32 2147483647, %v560
    %vm648 = vcmp.eq.f32.partialorder %v647, 8.507059e+37
    %v649 = vand.u32 %v560, 2147483648
    %v650 = vor.u32 1.1754944e-38, %v649
    %v651 = vsel %vm648, %v650, %v646
    %v652 = vmul.f32 1.0, %v651
    %v653 = vrcp.pop %v561
    %v654 = vmul.f32 %v561, %v653
    %v655 = vsub.f32 1.0, %v654
    %v656 = vmul.f32 %v653, %v655
    %v657 = vadd.f32 %v653, %v656
    %vm658 = vweird.f32 %v561
    %vm659 = vweird.f32 %v653
    %vm660 = vmor %vm658, %vm659
    %v661 = vsel %vm660, %v653, %v657
    %v662 = vand.u32 2147483647, %v561
    %vm663 = vcmp.eq.f32.partialorder %v662, 8.507059e+37
    %v664 = vand.u32 %v561, 2147483648
    %v665 = vor.u32 1.1754944e-38, %v664
    %v666 = vsel %vm663, %v665, %v661
    %v667 = vmul.f32 1.0, %v666
    %v668 = vrcp.pop %v562
    %v669 = vmul.f32 %v562, %v668
    %v670 = vsub.f32 1.0, %v669
    %v671 = vmul.f32 %v668, %v670
    %v672 = vadd.f32 %v668, %v671
    %vm673 = vweird.f32 %v562
    %vm674 = vweird.f32 %v668
    %vm675 = vmor %vm673, %vm674
    %v676 = vsel %vm675, %v668, %v672
    %v677 = vand.u32 2147483647, %v562
    %vm678 = vcmp.eq.f32.partialorder %v677, 8.507059e+37
    %v679 = vand.u32 %v562, 2147483648
    %v680 = vor.u32 1.1754944e-38, %v679
    %v681 = vsel %vm678, %v680, %v676
    %v682 = vmul.f32 1.0, %v681
    %v683 = vtanh.pop %v366
    %v684 = vtanh.pop %v367
    %v685 = vtanh.pop %v368
    %v686 = vtanh.pop %v369
    %v687 = vtanh.pop %v370
    %v688 = vtanh.pop %v371
    %v689 = vtanh.pop %v372
    %v690 = vtanh.pop %v373
    %v691 = vmul.f32 %v577, %v171
    %v692 = vmul.f32 %v592, %v172
    %v693 = vmul.f32 %v607, %v173
    %v694 = vmul.f32 %v622, %v174
    %v695 = vmul.f32 %v637, %v175
    %v696 = vmul.f32 %v652, %v176
    %v697 = vmul.f32 %v667, %v177
    %v698 = vmul.f32 %v682, %v178
    %707 = vrot.lane.b32.xlu0 %v683, 96
    %v708 = vpop.permute.xlu0 %707
    %709 = vrot.lane.b32.xlu0 %v684, 96
    %v710 = vpop.permute.xlu0 %709
    %711 = vrot.lane.b32.xlu0 %v685, 96
    %v712 = vpop.permute.xlu0 %711
    %713 = vrot.lane.b32.xlu0 %v686, 96
    %v714 = vpop.permute.xlu0 %713
    %715 = vrot.lane.b32.xlu0 %v687, 96
    %v716 = vpop.permute.xlu0 %715
    %717 = vrot.lane.b32.xlu0 %v688, 96
    %v718 = vpop.permute.xlu0 %717
    %719 = vrot.lane.b32.xlu0 %v689, 96
    %v720 = vpop.permute.xlu0 %719
    %721 = vrot.lane.b32.xlu0 %v690, 96
    %v722 = vpop.permute.xlu0 %721
    %v731 = vmul.f32 %v577, %v708
    %v732 = vmul.f32 %v592, %v710
    %v733 = vmul.f32 %v607, %v712
    %v734 = vmul.f32 %v622, %v714
    %v735 = vmul.f32 %v637, %v716
    %v736 = vmul.f32 %v652, %v718
    %v737 = vmul.f32 %v667, %v720
    %v738 = vmul.f32 %v682, %v722
    %747 = vrot.lane.b32.xlu0 %v731, 16
    %v748 = vpop.permute.xlu0 %747
    %749 = vrot.lane.b32.xlu0 %v732, 16
    %v750 = vpop.permute.xlu0 %749
    %751 = vrot.lane.b32.xlu0 %v733, 16
    %v752 = vpop.permute.xlu0 %751
    %753 = vrot.lane.b32.xlu0 %v734, 16
    %v754 = vpop.permute.xlu0 %753
    %755 = vrot.lane.b32.xlu0 %v735, 16
    %v756 = vpop.permute.xlu0 %755
    %757 = vrot.lane.b32.xlu0 %v736, 16
    %v758 = vpop.permute.xlu0 %757
    %759 = vrot.lane.b32.xlu0 %v737, 16
    %v760 = vpop.permute.xlu0 %759
    %761 = vrot.lane.b32.xlu0 %v738, 16
    %v762 = vpop.permute.xlu0 %761
    %v771 = vadd.f32 %v691, %v748
    %v772 = vadd.f32 %v692, %v750
    %v773 = vadd.f32 %v693, %v752
    %v774 = vadd.f32 %v694, %v754
    %v775 = vadd.f32 %v695, %v756
    %v776 = vadd.f32 %v696, %v758
    %v777 = vadd.f32 %v697, %v760
    %v778 = vadd.f32 %v698, %v762
    %v779 = vtanh.pop %v771
    %v780 = vtanh.pop %v772
    %v781 = vtanh.pop %v773
    %v782 = vtanh.pop %v774
    %v783 = vtanh.pop %v775
    %v784 = vtanh.pop %v776
    %v785 = vtanh.pop %v777
    %v786 = vtanh.pop %v778
    %795 = vrot.lane.b32.xlu0 %v779, 32
    %v796 = vpop.permute.xlu0 %795
    %797 = vrot.lane.b32.xlu0 %v780, 32
    %v798 = vpop.permute.xlu0 %797
    %799 = vrot.lane.b32.xlu0 %v781, 32
    %v800 = vpop.permute.xlu0 %799
    %801 = vrot.lane.b32.xlu0 %v782, 32
    %v802 = vpop.permute.xlu0 %801
    %803 = vrot.lane.b32.xlu0 %v783, 32
    %v804 = vpop.permute.xlu0 %803
    %805 = vrot.lane.b32.xlu0 %v784, 32
    %v806 = vpop.permute.xlu0 %805
    %807 = vrot.lane.b32.xlu0 %v785, 32
    %v808 = vpop.permute.xlu0 %807
    %809 = vrot.lane.b32.xlu0 %v786, 32
    %v810 = vpop.permute.xlu0 %809
    %v819 = vmul.f32 %v577, %v796
    %v820 = vmul.f32 %v592, %v798
    %v821 = vmul.f32 %v607, %v800
    %v822 = vmul.f32 %v622, %v802
    %v823 = vmul.f32 %v637, %v804
    %v824 = vmul.f32 %v652, %v806
    %v825 = vmul.f32 %v667, %v808
    %v826 = vmul.f32 %v682, %v810
    %v827 = vpack.c.bf16 %v819, %v819
    %v828 = vpack.c.bf16 %v820, %v820
    %v829 = vpack.c.bf16 %v821, %v821
    %v830 = vpack.c.bf16 %v822, %v822
    %v831 = vpack.c.bf16 %v823, %v823
    %v832 = vpack.c.bf16 %v824, %v824
    %v833 = vpack.c.bf16 %v825, %v825
    %v834 = vpack.c.bf16 %v826, %v826
    %v835 = vxor.u32 %v523, 2147483648
    %v836 = vxor.u32 %v524, 2147483648
    %v837 = vxor.u32 %v525, 2147483648
    %v838 = vxor.u32 %v526, 2147483648
    %v839 = vxor.u32 %v527, 2147483648
    %v840 = vxor.u32 %v528, 2147483648
    %v841 = vxor.u32 %v529, 2147483648
    %v842 = vxor.u32 %v530, 2147483648
    %v843 = vmul.f32 %v835, 1.442695
    %v844 = vpow.pop %v843
    %v845 = vmul.f32 %v836, 1.442695
    %v846 = vpow.pop %v845
    %v847 = vmul.f32 %v837, 1.442695
    %v848 = vpow.pop %v847
    %v849 = vmul.f32 %v838, 1.442695
    %v850 = vpow.pop %v849
    %v851 = vmul.f32 %v839, 1.442695
    %v852 = vpow.pop %v851
    %v853 = vmul.f32 %v840, 1.442695
    %v854 = vpow.pop %v853
    %v855 = vmul.f32 %v841, 1.442695
    %v856 = vpow.pop %v855
    %v857 = vmul.f32 %v842, 1.442695
    %v858 = vpow.pop %v857
    %v859 = vadd.f32 %v844, 1.0
    %v860 = vadd.f32 %v846, 1.0
    %v861 = vadd.f32 %v848, 1.0
    %v862 = vadd.f32 %v850, 1.0
    %v863 = vadd.f32 %v852, 1.0
    %v864 = vadd.f32 %v854, 1.0
    %v865 = vadd.f32 %v856, 1.0
    %v866 = vadd.f32 %v858, 1.0
    %v867 = vrcp.pop %v859
    %v868 = vmul.f32 %v859, %v867
    %v869 = vsub.f32 1.0, %v868
    %v870 = vmul.f32 %v867, %v869
    %v871 = vadd.f32 %v867, %v870
    %vm872 = vweird.f32 %v859
    %vm873 = vweird.f32 %v867
    %vm874 = vmor %vm872, %vm873
    %v875 = vsel %vm874, %v867, %v871
    %v876 = vand.u32 2147483647, %v859
    %vm877 = vcmp.eq.f32.partialorder %v876, 8.507059e+37
    %v878 = vand.u32 %v859, 2147483648
    %v879 = vor.u32 1.1754944e-38, %v878
    %v880 = vsel %vm877, %v879, %v875
    %v881 = vmul.f32 1.0, %v880
    %v882 = vrcp.pop %v860
    %v883 = vmul.f32 %v860, %v882
    %v884 = vsub.f32 1.0, %v883
    %v885 = vmul.f32 %v882, %v884
    %v886 = vadd.f32 %v882, %v885
    %vm887 = vweird.f32 %v860
    %vm888 = vweird.f32 %v882
    %vm889 = vmor %vm887, %vm888
    %v890 = vsel %vm889, %v882, %v886
    %v891 = vand.u32 2147483647, %v860
    %vm892 = vcmp.eq.f32.partialorder %v891, 8.507059e+37
    %v893 = vand.u32 %v860, 2147483648
    %v894 = vor.u32 1.1754944e-38, %v893
    %v895 = vsel %vm892, %v894, %v890
    %v896 = vmul.f32 1.0, %v895
    %v897 = vrcp.pop %v861
    %v898 = vmul.f32 %v861, %v897
    %v899 = vsub.f32 1.0, %v898
    %v900 = vmul.f32 %v897, %v899
    %v901 = vadd.f32 %v897, %v900
    %vm902 = vweird.f32 %v861
    %vm903 = vweird.f32 %v897
    %vm904 = vmor %vm902, %vm903
    %v905 = vsel %vm904, %v897, %v901
    %v906 = vand.u32 2147483647, %v861
    %vm907 = vcmp.eq.f32.partialorder %v906, 8.507059e+37
    %v908 = vand.u32 %v861, 2147483648
    %v909 = vor.u32 1.1754944e-38, %v908
    %v910 = vsel %vm907, %v909, %v905
    %v911 = vmul.f32 1.0, %v910
    %v912 = vrcp.pop %v862
    %v913 = vmul.f32 %v862, %v912
    %v914 = vsub.f32 1.0, %v913
    %v915 = vmul.f32 %v912, %v914
    %v916 = vadd.f32 %v912, %v915
    %vm917 = vweird.f32 %v862
    %vm918 = vweird.f32 %v912
    %vm919 = vmor %vm917, %vm918
    %v920 = vsel %vm919, %v912, %v916
    %v921 = vand.u32 2147483647, %v862
    %vm922 = vcmp.eq.f32.partialorder %v921, 8.507059e+37
    %v923 = vand.u32 %v862, 2147483648
    %v924 = vor.u32 1.1754944e-38, %v923
    %v925 = vsel %vm922, %v924, %v920
    %v926 = vmul.f32 1.0, %v925
    %v927 = vrcp.pop %v863
    %v928 = vmul.f32 %v863, %v927
    %v929 = vsub.f32 1.0, %v928
    %v930 = vmul.f32 %v927, %v929
    %v931 = vadd.f32 %v927, %v930
    %vm932 = vweird.f32 %v863
    %vm933 = vweird.f32 %v927
    %vm934 = vmor %vm932, %vm933
    %v935 = vsel %vm934, %v927, %v931
    %v936 = vand.u32 2147483647, %v863
    %vm937 = vcmp.eq.f32.partialorder %v936, 8.507059e+37
    %v938 = vand.u32 %v863, 2147483648
    %v939 = vor.u32 1.1754944e-38, %v938
    %v940 = vsel %vm937, %v939, %v935
    %v941 = vmul.f32 1.0, %v940
    %v942 = vrcp.pop %v864
    %v943 = vmul.f32 %v864, %v942
    %v944 = vsub.f32 1.0, %v943
    %v945 = vmul.f32 %v942, %v944
    %v946 = vadd.f32 %v942, %v945
    %vm947 = vweird.f32 %v864
    %vm948 = vweird.f32 %v942
    %vm949 = vmor %vm947, %vm948
    %v950 = vsel %vm949, %v942, %v946
    %v951 = vand.u32 2147483647, %v864
    %vm952 = vcmp.eq.f32.partialorder %v951, 8.507059e+37
    %v953 = vand.u32 %v864, 2147483648
    %v954 = vor.u32 1.1754944e-38, %v953
    %v955 = vsel %vm952, %v954, %v950
    %v956 = vmul.f32 1.0, %v955
    %v957 = vrcp.pop %v865
    %v958 = vmul.f32 %v865, %v957
    %v959 = vsub.f32 1.0, %v958
    %v960 = vmul.f32 %v957, %v959
    %v961 = vadd.f32 %v957, %v960
    %vm962 = vweird.f32 %v865
    %vm963 = vweird.f32 %v957
    %vm964 = vmor %vm962, %vm963
    %v965 = vsel %vm964, %v957, %v961
    %v966 = vand.u32 2147483647, %v865
    %vm967 = vcmp.eq.f32.partialorder %v966, 8.507059e+37
    %v968 = vand.u32 %v865, 2147483648
    %v969 = vor.u32 1.1754944e-38, %v968
    %v970 = vsel %vm967, %v969, %v965
    %v971 = vmul.f32 1.0, %v970
    %v972 = vrcp.pop %v866
    %v973 = vmul.f32 %v866, %v972
    %v974 = vsub.f32 1.0, %v973
    %v975 = vmul.f32 %v972, %v974
    %v976 = vadd.f32 %v972, %v975
    %vm977 = vweird.f32 %v866
    %vm978 = vweird.f32 %v972
    %vm979 = vmor %vm977, %vm978
    %v980 = vsel %vm979, %v972, %v976
    %v981 = vand.u32 2147483647, %v866
    %vm982 = vcmp.eq.f32.partialorder %v981, 8.507059e+37
    %v983 = vand.u32 %v866, 2147483648
    %v984 = vor.u32 1.1754944e-38, %v983
    %v985 = vsel %vm982, %v984, %v980
    %v986 = vmul.f32 1.0, %v985
    %v987 = vtanh.pop %v523
    %v988 = vtanh.pop %v524
    %v989 = vtanh.pop %v525
    %v990 = vtanh.pop %v526
    %v991 = vtanh.pop %v527
    %v992 = vtanh.pop %v528
    %v993 = vtanh.pop %v529
    %v994 = vtanh.pop %v530
    %v995 = vmul.f32 %v881, %v187
    %v996 = vmul.f32 %v896, %v188
    %v997 = vmul.f32 %v911, %v189
    %v998 = vmul.f32 %v926, %v190
    %v999 = vmul.f32 %v941, %v191
    %v1000 = vmul.f32 %v956, %v192
    %v1001 = vmul.f32 %v971, %v193
    %v1002 = vmul.f32 %v986, %v194
    %1011 = vrot.lane.b32.xlu0 %v987, 96
    %v1012 = vpop.permute.xlu0 %1011
    %1013 = vrot.lane.b32.xlu0 %v988, 96
    %v1014 = vpop.permute.xlu0 %1013
    %1015 = vrot.lane.b32.xlu0 %v989, 96
    %v1016 = vpop.permute.xlu0 %1015
    %1017 = vrot.lane.b32.xlu0 %v990, 96
    %v1018 = vpop.permute.xlu0 %1017
    %1019 = vrot.lane.b32.xlu0 %v991, 96
    %v1020 = vpop.permute.xlu0 %1019
    %1021 = vrot.lane.b32.xlu0 %v992, 96
    %v1022 = vpop.permute.xlu0 %1021
    %1023 = vrot.lane.b32.xlu0 %v993, 96
    %v1024 = vpop.permute.xlu0 %1023
    %1025 = vrot.lane.b32.xlu0 %v994, 96
    %v1026 = vpop.permute.xlu0 %1025
    %v1035 = vmul.f32 %v881, %v1012
    %v1036 = vmul.f32 %v896, %v1014
    %v1037 = vmul.f32 %v911, %v1016
    %v1038 = vmul.f32 %v926, %v1018
    %v1039 = vmul.f32 %v941, %v1020
    %v1040 = vmul.f32 %v956, %v1022
    %v1041 = vmul.f32 %v971, %v1024
    %v1042 = vmul.f32 %v986, %v1026
    %1051 = vrot.lane.b32.xlu0 %v1035, 16
    %v1052 = vpop.permute.xlu0 %1051
    %1053 = vrot.lane.b32.xlu0 %v1036, 16
    %v1054 = vpop.permute.xlu0 %1053
    %1055 = vrot.lane.b32.xlu0 %v1037, 16
    %v1056 = vpop.permute.xlu0 %1055
    %1057 = vrot.lane.b32.xlu0 %v1038, 16
    %v1058 = vpop.permute.xlu0 %1057
    %1059 = vrot.lane.b32.xlu0 %v1039, 16
    %v1060 = vpop.permute.xlu0 %1059
    %1061 = vrot.lane.b32.xlu0 %v1040, 16
    %v1062 = vpop.permute.xlu0 %1061
    %1063 = vrot.lane.b32.xlu0 %v1041, 16
    %v1064 = vpop.permute.xlu0 %1063
    %1065 = vrot.lane.b32.xlu0 %v1042, 16
    %v1066 = vpop.permute.xlu0 %1065
    %v1075 = vadd.f32 %v995, %v1052
    %v1076 = vadd.f32 %v996, %v1054
    %v1077 = vadd.f32 %v997, %v1056
    %v1078 = vadd.f32 %v998, %v1058
    %v1079 = vadd.f32 %v999, %v1060
    %v1080 = vadd.f32 %v1000, %v1062
    %v1081 = vadd.f32 %v1001, %v1064
    %v1082 = vadd.f32 %v1002, %v1066
    %v1083 = vtanh.pop %v1075
    %v1084 = vtanh.pop %v1076
    %v1085 = vtanh.pop %v1077
    %v1086 = vtanh.pop %v1078
    %v1087 = vtanh.pop %v1079
    %v1088 = vtanh.pop %v1080
    %v1089 = vtanh.pop %v1081
    %v1090 = vtanh.pop %v1082
    %1099 = vrot.lane.b32.xlu0 %v1083, 32
    %v1100 = vpop.permute.xlu0 %1099
    %1101 = vrot.lane.b32.xlu0 %v1084, 32
    %v1102 = vpop.permute.xlu0 %1101
    %1103 = vrot.lane.b32.xlu0 %v1085, 32
    %v1104 = vpop.permute.xlu0 %1103
    %1105 = vrot.lane.b32.xlu0 %v1086, 32
    %v1106 = vpop.permute.xlu0 %1105
    %1107 = vrot.lane.b32.xlu0 %v1087, 32
    %v1108 = vpop.permute.xlu0 %1107
    %1109 = vrot.lane.b32.xlu0 %v1088, 32
    %v1110 = vpop.permute.xlu0 %1109
    %1111 = vrot.lane.b32.xlu0 %v1089, 32
    %v1112 = vpop.permute.xlu0 %1111
    %1113 = vrot.lane.b32.xlu0 %v1090, 32
    %v1114 = vpop.permute.xlu0 %1113
    %v1123 = vmul.f32 %v881, %v1100
    %v1124 = vmul.f32 %v896, %v1102
    %v1125 = vmul.f32 %v911, %v1104
    %v1126 = vmul.f32 %v926, %v1106
    %v1127 = vmul.f32 %v941, %v1108
    %v1128 = vmul.f32 %v956, %v1110
    %v1129 = vmul.f32 %v971, %v1112
    %v1130 = vmul.f32 %v986, %v1114
    %v1131 = vpack.c.bf16 %v1123, %v1123
    %v1132 = vpack.c.bf16 %v1124, %v1124
    %v1133 = vpack.c.bf16 %v1125, %v1125
    %v1134 = vpack.c.bf16 %v1126, %v1126
    %v1135 = vpack.c.bf16 %v1127, %v1127
    %v1136 = vpack.c.bf16 %v1128, %v1128
    %v1137 = vpack.c.bf16 %v1129, %v1129
    %v1138 = vpack.c.bf16 %v1130, %v1130
    %s1139 = smul.u32 %s158, 64
    %s1140 = scalar_lea.vmem %s6, %s1139
    %v1141 = vld [vmem:[%s1140] sm:$0xff]
    %v1142 = vld [vmem:[%s1140 + $0x8] sm:$0xff]
    %v1143 = vld [vmem:[%s1140 + $0x10] sm:$0xff]
    %v1144 = vld [vmem:[%s1140 + $0x18] sm:$0xff]
    %v1145 = vld [vmem:[%s1140 + $0x20] sm:$0xff]
    %v1146 = vld [vmem:[%s1140 + $0x28] sm:$0xff]
    %v1147 = vld [vmem:[%s1140 + $0x30] sm:$0xff]
    %v1148 = vld [vmem:[%s1140 + $0x38] sm:$0xff]
    %v1149 = vld [vmem:[%s4] sm:$0xf]
    %v1150 = vld [vmem:[%s4 + $0x4] sm:$0xf]
    %v1159 = vunpack.c.l.b16 %v827
    %v1160 = vunpack.c.l.b16 %v828
    %v1161 = vunpack.c.l.b16 %v829
    %v1162 = vunpack.c.l.b16 %v830
    %v1163 = vunpack.c.l.b16 %v831
    %v1164 = vunpack.c.l.b16 %v832
    %v1165 = vunpack.c.l.b16 %v833
    %v1166 = vunpack.c.l.b16 %v834
    %v1167 = vpack.c.b16 %v1160, %v1159
    %v1168 = vpack.c.b16 %v1162, %v1161
    %v1169 = vpack.c.b16 %v1164, %v1163
    %v1170 = vpack.c.b16 %v1166, %v1165
    %1171 = vrot.lane.b32.xlu0 %v1167, 80
    %v1172 = vpop.permute.xlu0 %1171
    %1173 = vrot.lane.b32.xlu0 %v1168, 80
    %v1174 = vpop.permute.xlu0 %1173
    %1175 = vrot.lane.b32.xlu0 %v1169, 80
    %v1176 = vpop.permute.xlu0 %1175
    %1177 = vrot.lane.b32.xlu0 %v1170, 80
    %v1178 = vpop.permute.xlu0 %1177
    %v1181 = vunpack.c.l.b16 %v1149
    %v1182 = vunpack.c.l.b16 %v1150
    %v1183 = vpack.c.b16 %v1182, %v1181
    %v1186 = vsel %vm255, %v1172, 0
    %v1189 = vsel %vm255, %v1174, 0
    %v1192 = vsel %vm255, %v1176, 0
    %v1195 = vsel %vm255, %v1178, 0
    %1197 = vmatpush.bf16.msra.mxu0 0
    %1198 = vmatpush.bf16.msra.mxu0 0
    %1199 = vmatpush.bf16.msra.mxu0 0
    %1200 = vmatpush.bf16.msra.mxu0 0
    %1201 = vmatpush.bf16.msra.mxu0 0
    %1202 = vmatpush.bf16.msra.mxu0 0
    %1203 = vmatpush.bf16.msra.mxu0 0
    %1204 = vmatpush.bf16.msra.mxu0 %v1183
    %1205 = vmatmul.bf16.gmra.mxu0 %v1186
    %v1206 = vpop.f32.mrf.mxu0
    %v1207 = vadd.f32 0.0, %v1206
    %v1208 = vpop.f32.mrf.mxu0
    %v1209 = vadd.f32 0.0, %v1208
    %1210 = vmatmul.bf16.gmra.mxu0 %v1189
    %v1211 = vpop.f32.mrf.mxu0
    %v1212 = vadd.f32 0.0, %v1211
    %v1213 = vpop.f32.mrf.mxu0
    %v1214 = vadd.f32 0.0, %v1213
    %1215 = vmatmul.bf16.gmra.mxu0 %v1192
    %v1216 = vpop.f32.mrf.mxu0
    %v1217 = vadd.f32 0.0, %v1216
    %v1218 = vpop.f32.mrf.mxu0
    %v1219 = vadd.f32 0.0, %v1218
    %1220 = vmatmul.bf16.gmra.mxu0 %v1195
    %v1221 = vpop.f32.mrf.mxu0
    %v1222 = vadd.f32 0.0, %v1221
    %v1223 = vpop.f32.mrf.mxu0
    %v1224 = vadd.f32 0.0, %v1223
    %1225 = vdwg.mxu0
    %v1226 = vadd.f32 %v1141, %v1207
    %v1227 = vadd.f32 %v1142, %v1209
    %v1228 = vadd.f32 %v1143, %v1212
    %v1229 = vadd.f32 %v1144, %v1214
    %v1230 = vadd.f32 %v1145, %v1217
    %v1231 = vadd.f32 %v1146, %v1219
    %v1232 = vadd.f32 %v1147, %v1222
    %v1233 = vadd.f32 %v1148, %v1224
    %1234 = vst.msk [vmem:[%s1140] sm:$0xff] %vm28, %v1226
    %1235 = vst.msk [vmem:[%s1140 + $0x8] sm:$0xff] %vm28, %v1227
    %1236 = vst.msk [vmem:[%s1140 + $0x10] sm:$0xff] %vm28, %v1228
    %1237 = vst.msk [vmem:[%s1140 + $0x18] sm:$0xff] %vm28, %v1229
    %1238 = vst.msk [vmem:[%s1140 + $0x20] sm:$0xff] %vm28, %v1230
    %1239 = vst.msk [vmem:[%s1140 + $0x28] sm:$0xff] %vm28, %v1231
    %1240 = vst.msk [vmem:[%s1140 + $0x30] sm:$0xff] %vm28, %v1232
    %1241 = vst.msk [vmem:[%s1140 + $0x38] sm:$0xff] %vm28, %v1233
    %s1242 = smul.u32 %s195, 64
    %s1243 = scalar_lea.vmem %s6, %s1242
    %v1244 = vld [vmem:[%s1243] sm:$0xff]
    %v1245 = vld [vmem:[%s1243 + $0x8] sm:$0xff]
    %v1246 = vld [vmem:[%s1243 + $0x10] sm:$0xff]
    %v1247 = vld [vmem:[%s1243 + $0x18] sm:$0xff]
    %v1248 = vld [vmem:[%s1243 + $0x20] sm:$0xff]
    %v1249 = vld [vmem:[%s1243 + $0x28] sm:$0xff]
    %v1250 = vld [vmem:[%s1243 + $0x30] sm:$0xff]
    %v1251 = vld [vmem:[%s1243 + $0x38] sm:$0xff]
    %s1252 = scalar_lea.vmem %s4, 8
    %v1253 = vld [vmem:[%s1252] sm:$0xf]
    %v1254 = vld [vmem:[%s1252 + $0x4] sm:$0xf]
    %v1263 = vunpack.c.l.b16 %v1131
    %v1264 = vunpack.c.l.b16 %v1132
    %v1265 = vunpack.c.l.b16 %v1133
    %v1266 = vunpack.c.l.b16 %v1134
    %v1267 = vunpack.c.l.b16 %v1135
    %v1268 = vunpack.c.l.b16 %v1136
    %v1269 = vunpack.c.l.b16 %v1137
    %v1270 = vunpack.c.l.b16 %v1138
    %v1271 = vpack.c.b16 %v1264, %v1263
    %v1272 = vpack.c.b16 %v1266, %v1265
    %v1273 = vpack.c.b16 %v1268, %v1267
    %v1274 = vpack.c.b16 %v1270, %v1269
    %1275 = vrot.lane.b32.xlu0 %v1271, 80
    %v1276 = vpop.permute.xlu0 %1275
    %1277 = vrot.lane.b32.xlu0 %v1272, 80
    %v1278 = vpop.permute.xlu0 %1277
    %1279 = vrot.lane.b32.xlu0 %v1273, 80
    %v1280 = vpop.permute.xlu0 %1279
    %1281 = vrot.lane.b32.xlu0 %v1274, 80
    %v1282 = vpop.permute.xlu0 %1281
    %v1285 = vunpack.c.l.b16 %v1253
    %v1286 = vunpack.c.l.b16 %v1254
    %v1287 = vpack.c.b16 %v1286, %v1285
    %v1290 = vsel %vm255, %v1276, 0
    %v1293 = vsel %vm255, %v1278, 0
    %v1296 = vsel %vm255, %v1280, 0
    %v1299 = vsel %vm255, %v1282, 0
    %1301 = vmatpush.bf16.msra.mxu0 0
    %1302 = vmatpush.bf16.msra.mxu0 0
    %1303 = vmatpush.bf16.msra.mxu0 0
    %1304 = vmatpush.bf16.msra.mxu0 0
    %1305 = vmatpush.bf16.msra.mxu0 0
    %1306 = vmatpush.bf16.msra.mxu0 0
    %1307 = vmatpush.bf16.msra.mxu0 0
    %1308 = vmatpush.bf16.msra.mxu0 %v1287
    %1309 = vmatmul.bf16.gmra.mxu0 %v1290
    %v1310 = vpop.f32.mrf.mxu0
    %v1311 = vadd.f32 0.0, %v1310
    %v1312 = vpop.f32.mrf.mxu0
    %v1313 = vadd.f32 0.0, %v1312
    %1314 = vmatmul.bf16.gmra.mxu0 %v1293
    %v1315 = vpop.f32.mrf.mxu0
    %v1316 = vadd.f32 0.0, %v1315
    %v1317 = vpop.f32.mrf.mxu0
    %v1318 = vadd.f32 0.0, %v1317
    %1319 = vmatmul.bf16.gmra.mxu0 %v1296
    %v1320 = vpop.f32.mrf.mxu0
    %v1321 = vadd.f32 0.0, %v1320
    %v1322 = vpop.f32.mrf.mxu0
    %v1323 = vadd.f32 0.0, %v1322
    %1324 = vmatmul.bf16.gmra.mxu0 %v1299
    %v1325 = vpop.f32.mrf.mxu0
    %v1326 = vadd.f32 0.0, %v1325
    %v1327 = vpop.f32.mrf.mxu0
    %v1328 = vadd.f32 0.0, %v1327
    %1329 = vdwg.mxu0
    %v1330 = vadd.f32 %v1244, %v1311
    %v1331 = vadd.f32 %v1245, %v1313
    %v1332 = vadd.f32 %v1246, %v1316
    %v1333 = vadd.f32 %v1247, %v1318
    %v1334 = vadd.f32 %v1248, %v1321
    %v1335 = vadd.f32 %v1249, %v1323
    %v1336 = vadd.f32 %v1250, %v1326
    %v1337 = vadd.f32 %v1251, %v1328
    %1338 = vst.msk [vmem:[%s1243] sm:$0xff] %vm28, %v1330
    %1339 = vst.msk [vmem:[%s1243 + $0x8] sm:$0xff] %vm28, %v1331
    %1340 = vst.msk [vmem:[%s1243 + $0x10] sm:$0xff] %vm28, %v1332
    %1341 = vst.msk [vmem:[%s1243 + $0x18] sm:$0xff] %vm28, %v1333
    %1342 = vst.msk [vmem:[%s1243 + $0x20] sm:$0xff] %vm28, %v1334
    %1343 = vst.msk [vmem:[%s1243 + $0x28] sm:$0xff] %vm28, %v1335
    %1344 = vst.msk [vmem:[%s1243 + $0x30] sm:$0xff] %vm28, %v1336
    %1345 = vst.msk [vmem:[%s1243 + $0x38] sm:$0xff] %vm28, %v1337
  $region30: #{dp_wrapper_forward.15} parent=0 // loop_footer
    %s162 = sadd.s32 1, %s158
  $region31: #{dp_wrapper_forward.15} parent=0 // loop_footer_branch
    %157 = sbr.rel target = $region27
  $region32: #{dp_wrapper_forward.15} parent=0 // loop_exit
    _
  // Predicated region
  $region33: #{dp_wrapper_forward.15} parent=0 // pred_check
    _
  $region34: #{dp_wrapper_forward.15} parent=0 // pred_check_branch
    %1347 = sbr.rel (0) target = $region36
  $region35: #{dp_wrapper_forward.15} parent=0 // pred_region
    _
  $region36: #{dp_wrapper_forward.15} parent=0 // pred_fallthru
    _
  // Predicated region
  $region37: #{dp_wrapper_forward.15} parent=0 // pred_check
    _
  $region38: #{dp_wrapper_forward.15} parent=0 // pred_check_branch
    %1349 = sbr.rel (0) target = $region40
  $region39: #{dp_wrapper_forward.15} parent=0 // pred_region
    _
  $region40: #{dp_wrapper_forward.15} parent=0 // pred_fallthru
    _

// kernel: dp_wrapper_forward.17
$region0: #{dp_wrapper_forward.17}
  #allocation0 [shape = 'u32[]', space=smem, size = 0x4, offset = 0x4, fixed_abs, tag = 'smem constant byte address 0x4 - core index']
  #allocation1 [shape = 'u32[72,128]{1,0:T(1,128)}', space=vmem, size = 0x9000, scoped, tag = 'internal scratch']
  %s0 = inlined_call_operand.vmem [shape: f32[2,16,128], index: 0, kind: input, shape index: {}]
  %s1 = inlined_call_operand.vmem [shape: f32[2,16,128], index: 1, kind: input, shape index: {}]
  %s2 = inlined_call_operand.vmem [shape: f32[2,16,1], index: 2, kind: input, shape index: {}]
  %s3 = inlined_call_operand.vmem [shape: f32[2,16,1], index: 3, kind: input, shape index: {}]
  %s4 = inlined_call_operand.vmem [shape: f32[2,16,128], index: 4, kind: output, shape index: {}]
  %s5 = sld [smem:[#allocation0]]
  $region49: #{dp_wrapper_forward.17} parent=0
    _
  %s7 = ssub.s32 1, %s5
  %s8 = scalar_select 0, %s7, %s5
  loop: start=0, step=1, limit=4
  $region2: #{dp_wrapper_forward.17} parent=0 // loop_pre_header
    _
  $region3: #{dp_wrapper_forward.17} parent=0 // loop_header
    %s10 = sphi 0, %s14
    %p11 = scmp.ge.s32.totalorder %s10, 4
    %s17 = sphi 0, %s29
    %s18 = sphi 0, %s25
    %s19 = sphi 0, %s17
    %s20 = sphi 0, %s18
    %s21 = sphi 0, %s19
    %s22 = sphi 0, %s20
    %s34 = sphi 0, %s36
    %s37 = sphi 0, %s34
    %s38 = sphi 0, %s37
    %s54 = sphi 0, %s38
    %s62 = sphi 0, %s64
    %s65 = sphi 0, %s62
    %s66 = sphi 0, %s65
    %s82 = sphi 0, %s66
    %s88 = sphi 0, %s90
    %s91 = sphi 0, %s88
    %s92 = sphi 0, %s91
    %s108 = sphi 0, %s92
    %s114 = sphi 0, %s116
    %s117 = sphi 0, %s114
    %s118 = sphi 0, %s117
    %s134 = sphi 0, %s118
    %s142 = sphi 0, %s144
    %s145 = sphi 0, %s142
    %s146 = sphi 0, %s145
    %s162 = sphi 0, %s146
  $region4: #{dp_wrapper_forward.17} parent=0 // loop_header_branch
    %13 = sbr.rel (%p11) target = $region8
  $region5: #{dp_wrapper_forward.17} parent=0 // loop_body
    %s15 = ssub.s32 %s10, 1
    %s16 = ssub.s32 %s10, 2
    %s23 = sadd.s32 1, %s18
    %p24 = scmp.ge.s32.totalorder %s23, 1
    %s25 = scalar_select %p24, 0, %s23
    %s26 = sadd.s32 1, %s17
    %s27 = scalar_select %p24, %s26, %s17
    %p28 = scmp.ge.s32.totalorder %s27, 2
    %s29 = scalar_select %p28, 0, %s27
    %s30 = ssub.s32 %s17, %s29
    %s31 = ssub.s32 %s18, %s25
    %s32 = sor.u32 %s30, %s31
    %p33 = scmp.eq.s32.totalorder %s32, 0
    %s35 = sadd.s32 %s34, 1
    %s36 = scalar_select %p33, %s34, %s35
    %p39 = pneg %p33
    %p40 = scmp.eq.s32.totalorder %s10, 1
    %p41 = por %p39, %p40
    %p42 = scmp.ne.s32.totalorder %s34, %s37
    %p43 = scmp.eq.s32.totalorder %s10, 0
    %p44 = por %p42, %p43
    %p45 = scmp.ne.s32.totalorder %s34, %s37
    %p46 = scmp.eq.s32.totalorder %s15, 1
    %p47 = por %p45, %p46
    %p48 = scmp.ne.s32.totalorder %s37, %s38
    %p49 = scmp.eq.s32.totalorder %s15, 0
    %p50 = por %p48, %p49
    %p51 = scmp.ne.s32.totalorder %s37, %s38
    %p52 = scmp.eq.s32.totalorder %s16, 1
    %p53 = por %p51, %p52
    %p55 = scmp.ne.s32.totalorder %s38, %s54
    %p56 = scmp.eq.s32.totalorder %s16, 0
    %p57 = por %p55, %p56
    %s58 = ssub.s32 %s17, %s29
    %s59 = ssub.s32 %s18, %s25
    %s60 = sor.u32 %s58, %s59
    %p61 = scmp.eq.s32.totalorder %s60, 0
    %s63 = sadd.s32 %s62, 1
    %s64 = scalar_select %p61, %s62, %s63
    %p67 = pneg %p61
    %p68 = scmp.eq.s32.totalorder %s10, 1
    %p69 = por %p67, %p68
    %p70 = scmp.ne.s32.totalorder %s62, %s65
    %p71 = scmp.eq.s32.totalorder %s10, 0
    %p72 = por %p70, %p71
    %p73 = scmp.ne.s32.totalorder %s62, %s65
    %p74 = scmp.eq.s32.totalorder %s15, 1
    %p75 = por %p73, %p74
    %p76 = scmp.ne.s32.totalorder %s65, %s66
    %p77 = scmp.eq.s32.totalorder %s15, 0
    %p78 = por %p76, %p77
    %p79 = scmp.ne.s32.totalorder %s65, %s66
    %p80 = scmp.eq.s32.totalorder %s16, 1
    %p81 = por %p79, %p80
    %p83 = scmp.ne.s32.totalorder %s66, %s82
    %p84 = scmp.eq.s32.totalorder %s16, 0
    %p85 = por %p83, %p84
    %s86 = ssub.s32 %s17, %s29
    %p87 = scmp.eq.s32.totalorder %s86, 0
    %s89 = sadd.s32 %s88, 1
    %s90 = scalar_select %p87, %s88, %s89
    %p93 = pneg %p87
    %p94 = scmp.eq.s32.totalorder %s10, 1
    %p95 = por %p93, %p94
    %p96 = scmp.ne.s32.totalorder %s88, %s91
    %p97 = scmp.eq.s32.totalorder %s10, 0
    %p98 = por %p96, %p97
    %p99 = scmp.ne.s32.totalorder %s88, %s91
    %p100 = scmp.eq.s32.totalorder %s15, 1
    %p101 = por %p99, %p100
    %p102 = scmp.ne.s32.totalorder %s91, %s92
    %p103 = scmp.eq.s32.totalorder %s15, 0
    %p104 = por %p102, %p103
    %p105 = scmp.ne.s32.totalorder %s91, %s92
    %p106 = scmp.eq.s32.totalorder %s16, 1
    %p107 = por %p105, %p106
    %p109 = scmp.ne.s32.totalorder %s92, %s108
    %p110 = scmp.eq.s32.totalorder %s16, 0
    %p111 = por %p109, %p110
    %s112 = ssub.s32 %s17, %s29
    %p113 = scmp.eq.s32.totalorder %s112, 0
    %s115 = sadd.s32 %s114, 1
    %s116 = scalar_select %p113, %s114, %s115
    %p119 = pneg %p113
    %p120 = scmp.eq.s32.totalorder %s10, 1
    %p121 = por %p119, %p120
    %p122 = scmp.ne.s32.totalorder %s114, %s117
    %p123 = scmp.eq.s32.totalorder %s10, 0
    %p124 = por %p122, %p123
    %p125 = scmp.ne.s32.totalorder %s114, %s117
    %p126 = scmp.eq.s32.totalorder %s15, 1
    %p127 = por %p125, %p126
    %p128 = scmp.ne.s32.totalorder %s117, %s118
    %p129 = scmp.eq.s32.totalorder %s15, 0
    %p130 = por %p128, %p129
    %p131 = scmp.ne.s32.totalorder %s117, %s118
    %p132 = scmp.eq.s32.totalorder %s16, 1
    %p133 = por %p131, %p132
    %p135 = scmp.ne.s32.totalorder %s118, %s134
    %p136 = scmp.eq.s32.totalorder %s16, 0
    %p137 = por %p135, %p136
    %s138 = ssub.s32 %s17, %s29
    %s139 = ssub.s32 %s18, %s25
    %s140 = sor.u32 %s138, %s139
    %p141 = scmp.eq.s32.totalorder %s140, 0
    %s143 = sadd.s32 %s142, 1
    %s144 = scalar_select %p141, %s142, %s143
    %p147 = pneg %p141
    %p148 = scmp.eq.s32.totalorder %s10, 1
    %p149 = por %p147, %p148
    %p150 = scmp.ne.s32.totalorder %s142, %s145
    %p151 = scmp.eq.s32.totalorder %s10, 0
    %p152 = por %p150, %p151
    %p153 = scmp.ne.s32.totalorder %s142, %s145
    %p154 = scmp.eq.s32.totalorder %s15, 1
    %p155 = por %p153, %p154
    %p156 = scmp.ne.s32.totalorder %s145, %s146
    %p157 = scmp.eq.s32.totalorder %s15, 0
    %p158 = por %p156, %p157
    %p159 = scmp.ne.s32.totalorder %s145, %s146
    %p160 = scmp.eq.s32.totalorder %s16, 1
    %p161 = por %p159, %p160
    %p163 = scmp.ne.s32.totalorder %s146, %s162
    %p164 = scmp.eq.s32.totalorder %s16, 0
    %p165 = por %p163, %p164
    %p166 = scmp.le.s32.totalorder 1, %s10
    %p167 = scmp.lt.s32.totalorder %s10, 3
    %p168 = pnand %p166, %p167
    %p169 = pneg %p168
    // Predicated region
    $region9: #{dp_wrapper_forward.17} parent=5 // pred_check
      _
    $region10: #{dp_wrapper_forward.17} parent=5 // pred_check_branch
      %171 = sbr.rel (%p168) target = $region12
    $region11: #{dp_wrapper_forward.17} parent=5 // pred_region
      %s172 = ssub.s32 %s10, 1
    $region12: #{dp_wrapper_forward.17} parent=5 // pred_fallthru
      _
    %p173 = scmp.lt.s32.totalorder %s10, 2
    // Predicated region
    $region13: #{dp_wrapper_forward.17} parent=5 // pred_check
      %p174 = pneg %p173
    $region14: #{dp_wrapper_forward.17} parent=5 // pred_check_branch
      %176 = sbr.rel (%p174) target = $region16
    $region15: #{dp_wrapper_forward.17} parent=5 // pred_region
      // Predicated region
      $region17: #{dp_wrapper_forward.17} parent=15 // pred_check
        %p177 = pneg %p44
      $region18: #{dp_wrapper_forward.17} parent=15 // pred_check_branch
        %179 = sbr.rel (%p177) target = $region20
      $region19: #{dp_wrapper_forward.17} parent=15 // pred_region
        %p180 = scmp.lt.s32.totalorder %s17, 1
        %s181 = scalar_select %p180, %s17, 1
        %p182 = scmp.lt.s32.totalorder %s18, 0
        %s183 = scalar_select %p182, %s18, 0
        %s184 = smul.addr %s181, 2
        %s185 = sadd.s32 %s183, %s184
        %s186 = smul.addr %s185, 8
        %s187 = scalar_lea.vmem %s0, %s186
      $region20: #{dp_wrapper_forward.17} parent=15 // pred_fallthru
        _
      // Predicated region
      $region21: #{dp_wrapper_forward.17} parent=15 // pred_check
        %p188 = pneg %p72
      $region22: #{dp_wrapper_forward.17} parent=15 // pred_check_branch
        %190 = sbr.rel (%p188) target = $region24
      $region23: #{dp_wrapper_forward.17} parent=15 // pred_region
        %p191 = scmp.lt.s32.totalorder %s17, 1
        %s192 = scalar_select %p191, %s17, 1
        %p193 = scmp.lt.s32.totalorder %s18, 0
        %s194 = scalar_select %p193, %s18, 0
        %s195 = smul.addr %s192, 2
        %s196 = sadd.s32 %s194, %s195
        %s197 = smul.addr %s196, 8
        %s198 = scalar_lea.vmem %s1, %s197
      $region24: #{dp_wrapper_forward.17} parent=15 // pred_fallthru
        _
      // Predicated region
      $region25: #{dp_wrapper_forward.17} parent=15 // pred_check
        %p199 = pneg %p98
      $region26: #{dp_wrapper_forward.17} parent=15 // pred_check_branch
        %201 = sbr.rel (%p199) target = $region28
      $region27: #{dp_wrapper_forward.17} parent=15 // pred_region
        %p202 = scmp.lt.s32.totalorder %s17, 1
        %s203 = scalar_select %p202, %s17, 1
        %s204 = smul.addr %s203, 2
        %s205 = smul.addr %s204, 8
        %s206 = scalar_lea.vmem %s2, %s205
      $region28: #{dp_wrapper_forward.17} parent=15 // pred_fallthru
        _
      // Predicated region
      $region29: #{dp_wrapper_forward.17} parent=15 // pred_check
        %p207 = pneg %p124
      $region30: #{dp_wrapper_forward.17} parent=15 // pred_check_branch
        %209 = sbr.rel (%p207) target = $region32
      $region31: #{dp_wrapper_forward.17} parent=15 // pred_region
        %p210 = scmp.lt.s32.totalorder %s17, 1
        %s211 = scalar_select %p210, %s17, 1
        %s212 = smul.addr %s211, 2
        %s213 = smul.addr %s212, 8
        %s214 = scalar_lea.vmem %s3, %s213
      $region32: #{dp_wrapper_forward.17} parent=15 // pred_fallthru
        _
    $region16: #{dp_wrapper_forward.17} parent=5 // pred_fallthru
      _
    %p215 = scmp.le.s32.totalorder 1, %s10
    %p216 = scmp.lt.s32.totalorder %s10, 3
    %p217 = pnand %p215, %p216
    %p218 = pneg %p217
    // Predicated region
    $region33: #{dp_wrapper_forward.17} parent=5 // pred_check
      _
    $region34: #{dp_wrapper_forward.17} parent=5 // pred_check_branch
      %220 = sbr.rel (%p217) target = $region36
    $region35: #{dp_wrapper_forward.17} parent=5 // pred_region
      %s221 = ssub.s32 %s10, 1
      %p222 = scmp.lt.s32.totalorder %s19, 1
      %s223 = scalar_select %p222, %s19, 1
      %p224 = scmp.lt.s32.totalorder %s20, 0
      %s225 = scalar_select %p224, %s20, 0
      %s226 = smul.addr %s223, 2
      %s227 = sadd.s32 %s225, %s226
      %s228 = smul.addr %s227, 8
      %s229 = scalar_lea.vmem %s0, %s228
      %p230 = pneg %p50
      %p231 = pneg %p47
      %p232 = scmp.lt.s32.totalorder %s19, 1
      %s233 = scalar_select %p232, %s19, 1
      %p234 = scmp.lt.s32.totalorder %s20, 0
      %s235 = scalar_select %p234, %s20, 0
      %s236 = smul.addr %s233, 2
      %s237 = sadd.s32 %s235, %s236
      %s238 = smul.addr %s237, 8
      %s239 = scalar_lea.vmem %s1, %s238
      %p240 = pneg %p78
      %p241 = pneg %p75
      %p242 = scmp.lt.s32.totalorder %s19, 1
      %s243 = scalar_select %p242, %s19, 1
      %s244 = smul.addr %s243, 2
      %s245 = smul.addr %s244, 8
      %s246 = scalar_lea.vmem %s2, %s245
      %p247 = pneg %p104
      %p248 = pneg %p101
      %p249 = scmp.lt.s32.totalorder %s19, 1
      %s250 = scalar_select %p249, %s19, 1
      %s251 = smul.addr %s250, 2
      %s252 = smul.addr %s251, 8
      %s253 = scalar_lea.vmem %s3, %s252
      %p254 = pneg %p130
      %p255 = pneg %p127
      %p256 = pneg %p158
      %p257 = pneg %p155
      %p258 = scmp.lt.s32.totalorder %s19, 1
      %s259 = scalar_select %p258, %s19, 1
      %p260 = scmp.lt.s32.totalorder %s20, 0
      %s261 = scalar_select %p260, %s20, 0
      %s262 = smul.addr %s259, 2
      %s263 = sadd.s32 %s261, %s262
      %s264 = smul.addr %s263, 8
      %s265 = scalar_lea.vmem %s4, %s264
      %p266 = scmp.lt.s32.totalorder %s19, 1
      %s267 = scalar_select %p266, %s19, 1
      %p268 = scmp.lt.s32.totalorder %s20, 0
      %s269 = scalar_select %p268, %s20, 0
      %s270 = smul.addr %s267, 2
      %s271 = sadd.s32 %s269, %s270
      %s272 = smul.addr %s271, 8
      %s273 = scalar_lea.vmem %s0, %s272
      %p274 = scmp.lt.s32.totalorder %s19, 1
      %s275 = scalar_select %p274, %s19, 1
      %p276 = scmp.lt.s32.totalorder %s20, 0
      %s277 = scalar_select %p276, %s20, 0
      %s278 = smul.addr %s275, 2
      %s279 = sadd.s32 %s277, %s278
      %s280 = smul.addr %s279, 8
      %s281 = scalar_lea.vmem %s1, %s280
      %p282 = scmp.lt.s32.totalorder %s19, 1
      %s283 = scalar_select %p282, %s19, 1
      %s284 = smul.addr %s283, 2
      %s285 = smul.addr %s284, 8
      %s286 = scalar_lea.vmem %s2, %s285
      %p287 = scmp.lt.s32.totalorder %s19, 1
      %s288 = scalar_select %p287, %s19, 1
      %s289 = smul.addr %s288, 2
      %s290 = smul.addr %s289, 8
      %s291 = scalar_lea.vmem %s3, %s290
      %p292 = scmp.lt.s32.totalorder %s19, 1
      %s293 = scalar_select %p292, %s19, 1
      %p294 = scmp.lt.s32.totalorder %s20, 0
      %s295 = scalar_select %p294, %s20, 0
      %s296 = smul.addr %s293, 2
      %s297 = sadd.s32 %s295, %s296
      %s298 = smul.addr %s297, 8
      %s299 = scalar_lea.vmem %s4, %s298
      %v300 = vld [vmem:[%s273] sm:$0xff]
      %v301 = vld [vmem:[%s273 + $0x8] sm:$0xff]
      %v302 = vld [vmem:[%s281] sm:$0xff]
      %v303 = vld [vmem:[%s281 + $0x8] sm:$0xff]
      %v304 = vld [vmem:[%s286] sm:$0xff]
      %v305 = vld [vmem:[%s286 + $0x8] sm:$0xff]
      %307 = vset.pattern.permute.xlu0 0
      %308 = vperm.xlu0 %307, %v304
      %v309 = vpop.permute.xlu0 %308
      %312 = vset.pattern.permute.xlu0 0
      %313 = vperm.xlu0 %312, %v305
      %v314 = vpop.permute.xlu0 %313
      %v316 = vmul.f32 %v302, %v309
      %v317 = vmul.f32 %v303, %v314
      %v318 = vadd.f32 %v300, %v316
      %v319 = vadd.f32 %v301, %v317
      %v320 = vld [vmem:[%s291] sm:$0xff]
      %v321 = vld [vmem:[%s291 + $0x8] sm:$0xff]
      %323 = vset.pattern.permute.xlu0 0
      %324 = vperm.xlu0 %323, %v320
      %v325 = vpop.permute.xlu0 %324
      %328 = vset.pattern.permute.xlu0 0
      %329 = vperm.xlu0 %328, %v321
      %v330 = vpop.permute.xlu0 %329
      %v332 = vadd.f32 %v318, %v325
      %v333 = vadd.f32 %v319, %v330
      %334 = vst [vmem:[%s299] sm:$0xff] %v332
      %335 = vst [vmem:[%s299 + $0x8] sm:$0xff] %v333
      %p336 = scmp.lt.s32.totalorder %s19, 1
      %s337 = scalar_select %p336, %s19, 1
      %p338 = scmp.lt.s32.totalorder %s20, 0
      %s339 = scalar_select %p338, %s20, 0
      %s340 = smul.addr %s337, 2
      %s341 = sadd.s32 %s339, %s340
      %s342 = smul.addr %s341, 8
      %s343 = scalar_lea.vmem %s4, %s342
      // Predicated region
      $region37: #{dp_wrapper_forward.17} parent=35 // pred_check
        %p344 = pneg %p155
      $region38: #{dp_wrapper_forward.17} parent=35 // pred_check_branch
        %346 = sbr.rel (%p344) target = $region40
      $region39: #{dp_wrapper_forward.17} parent=35 // pred_region
        _
      $region40: #{dp_wrapper_forward.17} parent=35 // pred_fallthru
        _
    $region36: #{dp_wrapper_forward.17} parent=5 // pred_fallthru
      _
    %p347 = scmp.le.s32.totalorder 2, %s10
    // Predicated region
    $region41: #{dp_wrapper_forward.17} parent=5 // pred_check
      %p348 = pneg %p347
    $region42: #{dp_wrapper_forward.17} parent=5 // pred_check_branch
      %350 = sbr.rel (%p348) target = $region44
    $region43: #{dp_wrapper_forward.17} parent=5 // pred_region
      %s351 = ssub.s32 %s10, 2
      // Predicated region
      $region45: #{dp_wrapper_forward.17} parent=43 // pred_check
        %p352 = pneg %p161
      $region46: #{dp_wrapper_forward.17} parent=43 // pred_check_branch
        %354 = sbr.rel (%p352) target = $region48
      $region47: #{dp_wrapper_forward.17} parent=43 // pred_region
        %p355 = scmp.lt.s32.totalorder %s21, 1
        %s356 = scalar_select %p355, %s21, 1
        %p357 = scmp.lt.s32.totalorder %s22, 0
        %s358 = scalar_select %p357, %s22, 0
        %s359 = smul.addr %s356, 2
        %s360 = sadd.s32 %s358, %s359
        %s361 = smul.addr %s360, 8
        %s362 = scalar_lea.vmem %s4, %s361
      $region48: #{dp_wrapper_forward.17} parent=43 // pred_fallthru
        _
    $region44: #{dp_wrapper_forward.17} parent=5 // pred_fallthru
      _
  $region6: #{dp_wrapper_forward.17} parent=0 // loop_footer
    %s14 = sadd.s32 1, %s10
  $region7: #{dp_wrapper_forward.17} parent=0 // loop_footer_branch
    %9 = sbr.rel target = $region3
  $region8: #{dp_wrapper_forward.17} parent=0 // loop_exit
    _

// kernel: dp_wrapper_forward.21
$region0: #{dp_wrapper_forward.21}
  #allocation0 [shape = 'u32[]', space=smem, size = 0x4, offset = 0x4, fixed_abs, tag = 'smem constant byte address 0x4 - core index']
  #allocation1 [shape = 'u32[72,128]{1,0:T(1,128)}', space=vmem, size = 0x9000, scoped, tag = 'internal scratch']
  #allocation2 [shape = 'f32[1]{0:T(128)S(6)}', space=smem, size = 0x200, scoped, tag = 'scoped memory for dp_wrapper_forward.21']
  %s0 = inlined_call_operand.vmem [shape: f32[2,16,128], index: 0, kind: input, shape index: {}]
  %s1 = inlined_call_operand.vmem [shape: bf16[4,4], index: 1, kind: input, shape index: {}]
  %s2 = inlined_call_operand.vmem [shape: f32[4,1], index: 2, kind: input, shape index: {}]
  %s3 = inlined_call_operand.<no memory space> [shape: f32[1], index: 3, kind: input, shape index: {}]
  %s4 = inlined_call_operand.vmem [shape: f32[2,16,128], index: 4, kind: output, shape index: {}]
  %s5 = sld [smem:[#allocation0]]
  $region49: #{dp_wrapper_forward.21} parent=0
    _
  %s7 = ssub.s32 1, %s5
  %s8 = scalar_select 0, %s7, %s5
  %9 = sst [smem:[#allocation2]] %s3
  loop: start=0, step=1, limit=4
  $region2: #{dp_wrapper_forward.21} parent=0 // loop_pre_header
    _
  $region3: #{dp_wrapper_forward.21} parent=0 // loop_header
    %s11 = sphi 0, %s15
    %p12 = scmp.ge.s32.totalorder %s11, 4
    %s18 = sphi 0, %s30
    %s19 = sphi 0, %s26
    %s20 = sphi 0, %s18
    %s21 = sphi 0, %s19
    %s22 = sphi 0, %s20
    %s23 = sphi 0, %s21
    %s35 = sphi 0, %s37
    %s38 = sphi 0, %s35
    %s39 = sphi 0, %s38
    %s55 = sphi 0, %s39
    %s59 = sphi 0, %s59
    %s61 = sphi 0, %s59
    %s62 = sphi 0, %s61
    %s76 = sphi 0, %s62
    %s80 = sphi 0, %s80
    %s82 = sphi 0, %s80
    %s83 = sphi 0, %s82
    %s97 = sphi 0, %s83
    %s101 = sphi 0, %s101
    %s103 = sphi 0, %s101
    %s104 = sphi 0, %s103
    %s118 = sphi 0, %s104
    %s126 = sphi 0, %s128
    %s129 = sphi 0, %s126
    %s130 = sphi 0, %s129
    %s146 = sphi 0, %s130
  $region4: #{dp_wrapper_forward.21} parent=0 // loop_header_branch
    %14 = sbr.rel (%p12) target = $region8
  $region5: #{dp_wrapper_forward.21} parent=0 // loop_body
    %s16 = ssub.s32 %s11, 1
    %s17 = ssub.s32 %s11, 2
    %s24 = sadd.s32 1, %s19
    %p25 = scmp.ge.s32.totalorder %s24, 1
    %s26 = scalar_select %p25, 0, %s24
    %s27 = sadd.s32 1, %s18
    %s28 = scalar_select %p25, %s27, %s18
    %p29 = scmp.ge.s32.totalorder %s28, 2
    %s30 = scalar_select %p29, 0, %s28
    %s31 = ssub.s32 %s18, %s30
    %s32 = ssub.s32 %s19, %s26
    %s33 = sor.u32 %s31, %s32
    %p34 = scmp.eq.s32.totalorder %s33, 0
    %s36 = sadd.s32 %s35, 1
    %s37 = scalar_select %p34, %s35, %s36
    %p40 = pneg %p34
    %p41 = scmp.eq.s32.totalorder %s11, 1
    %p42 = por %p40, %p41
    %p43 = scmp.ne.s32.totalorder %s35, %s38
    %p44 = scmp.eq.s32.totalorder %s11, 0
    %p45 = por %p43, %p44
    %p46 = scmp.ne.s32.totalorder %s35, %s38
    %p47 = scmp.eq.s32.totalorder %s16, 1
    %p48 = por %p46, %p47
    %p49 = scmp.ne.s32.totalorder %s38, %s39
    %p50 = scmp.eq.s32.totalorder %s16, 0
    %p51 = por %p49, %p50
    %p52 = scmp.ne.s32.totalorder %s38, %s39
    %p53 = scmp.eq.s32.totalorder %s17, 1
    %p54 = por %p52, %p53
    %p56 = scmp.ne.s32.totalorder %s39, %s55
    %p57 = scmp.eq.s32.totalorder %s17, 0
    %p58 = por %p56, %p57
    %s60 = sadd.s32 %s59, 1
    %p63 = scmp.eq.s32.totalorder %s11, 1
    %p64 = scmp.ne.s32.totalorder %s59, %s61
    %p65 = scmp.eq.s32.totalorder %s11, 0
    %p66 = por %p64, %p65
    %p67 = scmp.ne.s32.totalorder %s59, %s61
    %p68 = scmp.eq.s32.totalorder %s16, 1
    %p69 = por %p67, %p68
    %p70 = scmp.ne.s32.totalorder %s61, %s62
    %p71 = scmp.eq.s32.totalorder %s16, 0
    %p72 = por %p70, %p71
    %p73 = scmp.ne.s32.totalorder %s61, %s62
    %p74 = scmp.eq.s32.totalorder %s17, 1
    %p75 = por %p73, %p74
    %p77 = scmp.ne.s32.totalorder %s62, %s76
    %p78 = scmp.eq.s32.totalorder %s17, 0
    %p79 = por %p77, %p78
    %s81 = sadd.s32 %s80, 1
    %p84 = scmp.eq.s32.totalorder %s11, 1
    %p85 = scmp.ne.s32.totalorder %s80, %s82
    %p86 = scmp.eq.s32.totalorder %s11, 0
    %p87 = por %p85, %p86
    %p88 = scmp.ne.s32.totalorder %s80, %s82
    %p89 = scmp.eq.s32.totalorder %s16, 1
    %p90 = por %p88, %p89
    %p91 = scmp.ne.s32.totalorder %s82, %s83
    %p92 = scmp.eq.s32.totalorder %s16, 0
    %p93 = por %p91, %p92
    %p94 = scmp.ne.s32.totalorder %s82, %s83
    %p95 = scmp.eq.s32.totalorder %s17, 1
    %p96 = por %p94, %p95
    %p98 = scmp.ne.s32.totalorder %s83, %s97
    %p99 = scmp.eq.s32.totalorder %s17, 0
    %p100 = por %p98, %p99
    %s102 = sadd.s32 %s101, 1
    %p105 = scmp.eq.s32.totalorder %s11, 1
    %p106 = scmp.ne.s32.totalorder %s101, %s103
    %p107 = scmp.eq.s32.totalorder %s11, 0
    %p108 = por %p106, %p107
    %p109 = scmp.ne.s32.totalorder %s101, %s103
    %p110 = scmp.eq.s32.totalorder %s16, 1
    %p111 = por %p109, %p110
    %p112 = scmp.ne.s32.totalorder %s103, %s104
    %p113 = scmp.eq.s32.totalorder %s16, 0
    %p114 = por %p112, %p113
    %p115 = scmp.ne.s32.totalorder %s103, %s104
    %p116 = scmp.eq.s32.totalorder %s17, 1
    %p117 = por %p115, %p116
    %p119 = scmp.ne.s32.totalorder %s104, %s118
    %p120 = scmp.eq.s32.totalorder %s17, 0
    %p121 = por %p119, %p120
    %s122 = ssub.s32 %s18, %s30
    %s123 = ssub.s32 %s19, %s26
    %s124 = sor.u32 %s122, %s123
    %p125 = scmp.eq.s32.totalorder %s124, 0
    %s127 = sadd.s32 %s126, 1
    %s128 = scalar_select %p125, %s126, %s127
    %p131 = pneg %p125
    %p132 = scmp.eq.s32.totalorder %s11, 1
    %p133 = por %p131, %p132
    %p134 = scmp.ne.s32.totalorder %s126, %s129
    %p135 = scmp.eq.s32.totalorder %s11, 0
    %p136 = por %p134, %p135
    %p137 = scmp.ne.s32.totalorder %s126, %s129
    %p138 = scmp.eq.s32.totalorder %s16, 1
    %p139 = por %p137, %p138
    %p140 = scmp.ne.s32.totalorder %s129, %s130
    %p141 = scmp.eq.s32.totalorder %s16, 0
    %p142 = por %p140, %p141
    %p143 = scmp.ne.s32.totalorder %s129, %s130
    %p144 = scmp.eq.s32.totalorder %s17, 1
    %p145 = por %p143, %p144
    %p147 = scmp.ne.s32.totalorder %s130, %s146
    %p148 = scmp.eq.s32.totalorder %s17, 0
    %p149 = por %p147, %p148
    %p150 = scmp.le.s32.totalorder 1, %s11
    %p151 = scmp.lt.s32.totalorder %s11, 3
    %p152 = pnand %p150, %p151
    %p153 = pneg %p152
    // Predicated region
    $region9: #{dp_wrapper_forward.21} parent=5 // pred_check
      _
    $region10: #{dp_wrapper_forward.21} parent=5 // pred_check_branch
      %155 = sbr.rel (%p152) target = $region12
    $region11: #{dp_wrapper_forward.21} parent=5 // pred_region
      %s156 = ssub.s32 %s11, 1
      // Predicated region
      $region13: #{dp_wrapper_forward.21} parent=11 // pred_check
        %p157 = pneg %p72
      $region14: #{dp_wrapper_forward.21} parent=11 // pred_check_branch
        %159 = sbr.rel (%p157) target = $region16
      $region15: #{dp_wrapper_forward.21} parent=11 // pred_region
        _
      $region16: #{dp_wrapper_forward.21} parent=11 // pred_fallthru
        _
      // Predicated region
      $region17: #{dp_wrapper_forward.21} parent=11 // pred_check
        %p160 = pneg %p93
      $region18: #{dp_wrapper_forward.21} parent=11 // pred_check_branch
        %162 = sbr.rel (%p160) target = $region20
      $region19: #{dp_wrapper_forward.21} parent=11 // pred_region
        _
      $region20: #{dp_wrapper_forward.21} parent=11 // pred_fallthru
        _
      // Predicated region
      $region21: #{dp_wrapper_forward.21} parent=11 // pred_check
        %p163 = pneg %p114
      $region22: #{dp_wrapper_forward.21} parent=11 // pred_check_branch
        %165 = sbr.rel (%p163) target = $region24
      $region23: #{dp_wrapper_forward.21} parent=11 // pred_region
        _
      $region24: #{dp_wrapper_forward.21} parent=11 // pred_fallthru
        _
    $region12: #{dp_wrapper_forward.21} parent=5 // pred_fallthru
      _
    %p166 = scmp.lt.s32.totalorder %s11, 2
    // Predicated region
    $region25: #{dp_wrapper_forward.21} parent=5 // pred_check
      %p167 = pneg %p166
    $region26: #{dp_wrapper_forward.21} parent=5 // pred_check_branch
      %169 = sbr.rel (%p167) target = $region28
    $region27: #{dp_wrapper_forward.21} parent=5 // pred_region
      // Predicated region
      $region29: #{dp_wrapper_forward.21} parent=27 // pred_check
        %p170 = pneg %p45
      $region30: #{dp_wrapper_forward.21} parent=27 // pred_check_branch
        %172 = sbr.rel (%p170) target = $region32
      $region31: #{dp_wrapper_forward.21} parent=27 // pred_region
        %p173 = scmp.lt.s32.totalorder %s18, 1
        %s174 = scalar_select %p173, %s18, 1
        %p175 = scmp.lt.s32.totalorder %s19, 0
        %s176 = scalar_select %p175, %s19, 0
        %s177 = smul.addr %s174, 2
        %s178 = sadd.s32 %s176, %s177
        %s179 = smul.addr %s178, 8
        %s180 = scalar_lea.vmem %s0, %s179
      $region32: #{dp_wrapper_forward.21} parent=27 // pred_fallthru
        _
    $region28: #{dp_wrapper_forward.21} parent=5 // pred_fallthru
      _
    %p181 = scmp.le.s32.totalorder 1, %s11
    %p182 = scmp.lt.s32.totalorder %s11, 3
    %p183 = pnand %p181, %p182
    %p184 = pneg %p183
    // Predicated region
    $region33: #{dp_wrapper_forward.21} parent=5 // pred_check
      _
    $region34: #{dp_wrapper_forward.21} parent=5 // pred_check_branch
      %186 = sbr.rel (%p183) target = $region36
    $region35: #{dp_wrapper_forward.21} parent=5 // pred_region
      %s187 = ssub.s32 %s11, 1
      %p188 = scmp.lt.s32.totalorder %s20, 1
      %s189 = scalar_select %p188, %s20, 1
      %p190 = scmp.lt.s32.totalorder %s21, 0
      %s191 = scalar_select %p190, %s21, 0
      %s192 = smul.addr %s189, 2
      %s193 = sadd.s32 %s191, %s192
      %s194 = smul.addr %s193, 8
      %s195 = scalar_lea.vmem %s0, %s194
      %p196 = pneg %p51
      %p197 = pneg %p48
      %p198 = pneg %p72
      %p199 = pneg %p69
      %p200 = pneg %p93
      %p201 = pneg %p90
      %p202 = pneg %p114
      %p203 = pneg %p111
      %p204 = pneg %p142
      %p205 = pneg %p139
      %p206 = scmp.lt.s32.totalorder %s20, 1
      %s207 = scalar_select %p206, %s20, 1
      %p208 = scmp.lt.s32.totalorder %s21, 0
      %s209 = scalar_select %p208, %s21, 0
      %s210 = smul.addr %s207, 2
      %s211 = sadd.s32 %s209, %s210
      %s212 = smul.addr %s211, 8
      %s213 = scalar_lea.vmem %s4, %s212
      %p214 = scmp.lt.s32.totalorder %s20, 1
      %s215 = scalar_select %p214, %s20, 1
      %p216 = scmp.lt.s32.totalorder %s21, 0
      %s217 = scalar_select %p216, %s21, 0
      %s218 = smul.addr %s215, 2
      %s219 = sadd.s32 %s217, %s218
      %s220 = smul.addr %s219, 8
      %s221 = scalar_lea.vmem %s0, %s220
      %p222 = scmp.lt.s32.totalorder %s20, 1
      %s223 = scalar_select %p222, %s20, 1
      %p224 = scmp.lt.s32.totalorder %s21, 0
      %s225 = scalar_select %p224, %s21, 0
      %s226 = smul.addr %s223, 2
      %s227 = sadd.s32 %s225, %s226
      %s228 = smul.addr %s227, 8
      %s229 = scalar_lea.vmem %s4, %s228
      %s231 = sld [smem:[#allocation2]]
      %v232 = vld [vmem:[%s221] sm:$0xff]
      %v233 = vld [vmem:[%s221 + $0x8] sm:$0xff]
      %v235 = vrot.slane %v232, 4
      %v237 = vadd.f32 %v232, %v235
      %v238 = vadd.f32 %v237, %v233
      %v240 = vrot.slane %v233, 4
      %v242 = vadd.f32 %v238, %v240
      %v243 = vmul.f32 %v242, 0.25
      %v244 = vld [vmem:[%s1] sm:$0x3]
      %v245 = vpack.c.bf16 %v243, %v243
      %v246 = vld [vmem:[%s2] sm:$0xf]
      %248 = vset.pattern.permute.xlu0 0
      %249 = vperm.xlu0 %248, %v246
      %v250 = vpop.permute.xlu0 %249
      %vm252 = vcmask 31744
      %v254 = vsel %vm252, %v244, 0
      %vm256 = vcmask 1041408
      %v258 = vsel %vm256, %v245, 0
      %260 = vmatpush.bf16.msra.mxu0 0
      %261 = vmatpush.bf16.msra.mxu0 0
      %262 = vmatpush.bf16.msra.mxu0 0
      %263 = vmatpush.bf16.msra.mxu0 0
      %264 = vmatpush.bf16.msra.mxu0 0
      %265 = vmatpush.bf16.msra.mxu0 0
      %266 = vmatpush.bf16.msra.mxu0 0
      %267 = vmatpush.bf16.msra.mxu0 %v258
      %268 = vmatmul.bf16.gmra.mxu0 %v254
      %v269 = vpop.f32.mrf.mxu0
      %v270 = vadd.f32 %v250, %v269
      %v271 = vpop.f32.mrf.mxu0
      %272 = vdwg.mxu0
      %vm273 = vcmp.ge.f32.partialorder %v270, 0.0
      %v274 = vstv %s231
      %v275 = vmul.f32 %v274, %v270
      %v276 = vsel %vm273, %v270, %v275
      %v277 = vadd.f32 %v232, %v276
      %278 = vst [vmem:[%s229] sm:$0xf] %v277
      %v280 = vrot.slane %v276, 4
      %v282 = vadd.f32 %v232, %v280
      %283 = vst [vmem:[%s229] sm:$0xf0] %v282
      %v284 = vadd.f32 %v233, %v276
      %285 = vst [vmem:[%s229 + $0x8] sm:$0xf] %v284
      %v286 = vadd.f32 %v233, %v280
      %287 = vst [vmem:[%s229 + $0x8] sm:$0xf0] %v286
      %p288 = scmp.lt.s32.totalorder %s20, 1
      %s289 = scalar_select %p288, %s20, 1
      %p290 = scmp.lt.s32.totalorder %s21, 0
      %s291 = scalar_select %p290, %s21, 0
      %s292 = smul.addr %s289, 2
      %s293 = sadd.s32 %s291, %s292
      %s294 = smul.addr %s293, 8
      %s295 = scalar_lea.vmem %s4, %s294
      // Predicated region
      $region37: #{dp_wrapper_forward.21} parent=35 // pred_check
        %p296 = pneg %p139
      $region38: #{dp_wrapper_forward.21} parent=35 // pred_check_branch
        %298 = sbr.rel (%p296) target = $region40
      $region39: #{dp_wrapper_forward.21} parent=35 // pred_region
        _
      $region40: #{dp_wrapper_forward.21} parent=35 // pred_fallthru
        _
    $region36: #{dp_wrapper_forward.21} parent=5 // pred_fallthru
      _
    %p299 = scmp.le.s32.totalorder 2, %s11
    // Predicated region
    $region41: #{dp_wrapper_forward.21} parent=5 // pred_check
      %p300 = pneg %p299
    $region42: #{dp_wrapper_forward.21} parent=5 // pred_check_branch
      %302 = sbr.rel (%p300) target = $region44
    $region43: #{dp_wrapper_forward.21} parent=5 // pred_region
      %s303 = ssub.s32 %s11, 2
      // Predicated region
      $region45: #{dp_wrapper_forward.21} parent=43 // pred_check
        %p304 = pneg %p145
      $region46: #{dp_wrapper_forward.21} parent=43 // pred_check_branch
        %306 = sbr.rel (%p304) target = $region48
      $region47: #{dp_wrapper_forward.21} parent=43 // pred_region
        %p307 = scmp.lt.s32.totalorder %s22, 1
        %s308 = scalar_select %p307, %s22, 1
        %p309 = scmp.lt.s32.totalorder %s23, 0
        %s310 = scalar_select %p309, %s23, 0
        %s311 = smul.addr %s308, 2
        %s312 = sadd.s32 %s310, %s311
        %s313 = smul.addr %s312, 8
        %s314 = scalar_lea.vmem %s4, %s313
      $region48: #{dp_wrapper_forward.21} parent=43 // pred_fallthru
        _
    $region44: #{dp_wrapper_forward.21} parent=5 // pred_fallthru
      _
  $region6: #{dp_wrapper_forward.21} parent=0 // loop_footer
    %s15 = sadd.s32 1, %s11
  $region7: #{dp_wrapper_forward.21} parent=0 // loop_footer_branch
    %10 = sbr.rel target = $region3
  $region8: #{dp_wrapper_forward.21} parent=0 // loop_exit
    _

// kernel: dp_wrapper_forward.18
$region0: #{dp_wrapper_forward.18}
  #allocation0 [shape = 'u32[]', space=smem, size = 0x4, offset = 0x4, fixed_abs, tag = 'smem constant byte address 0x4 - core index']
  #allocation1 [shape = 'u32[72,128]{1,0:T(1,128)}', space=vmem, size = 0x9000, scoped, tag = 'internal scratch']
  %s0 = inlined_call_operand.vmem [shape: bf16[8,128,4], index: 0, kind: input, shape index: {}]
  %s1 = inlined_call_operand.vmem [shape: bf16[2,4,64], index: 1, kind: input, shape index: {}]
  %s2 = inlined_call_operand.vmem [shape: bf16[2,16,64], index: 2, kind: input, shape index: {}]
  %s3 = inlined_call_operand.vmem [shape: f32[2,1,64], index: 3, kind: input, shape index: {}]
  %s4 = inlined_call_operand.vmem [shape: bf16[2,16,4], index: 4, kind: input, shape index: {}]
  %s5 = inlined_call_operand.vmem [shape: f32[1,4], index: 5, kind: input, shape index: {}]
  %s6 = inlined_call_operand.vmem [shape: f32[8,128,4], index: 6, kind: output, shape index: {}]
  %s7 = sld [smem:[#allocation0]]
  $region41: #{dp_wrapper_forward.18} parent=0
    _
  %s9 = ssub.s32 1, %s7
  %s10 = scalar_select 0, %s9, %s7
  // Predicated region
  $region2: #{dp_wrapper_forward.18} parent=0 // pred_check
    _
  $region3: #{dp_wrapper_forward.18} parent=0 // pred_check_branch
    %12 = sbr.rel (0) target = $region5
  $region4: #{dp_wrapper_forward.18} parent=0 // pred_region
    _
  $region5: #{dp_wrapper_forward.18} parent=0 // pred_fallthru
    _
  // Predicated region
  $region6: #{dp_wrapper_forward.18} parent=0 // pred_check
    _
  $region7: #{dp_wrapper_forward.18} parent=0 // pred_check_branch
    %14 = sbr.rel (0) target = $region9
  $region8: #{dp_wrapper_forward.18} parent=0 // pred_region
    _
  $region9: #{dp_wrapper_forward.18} parent=0 // pred_fallthru
    _
  // Predicated region
  $region10: #{dp_wrapper_forward.18} parent=0 // pred_check
    _
  $region11: #{dp_wrapper_forward.18} parent=0 // pred_check_branch
    %16 = sbr.rel (0) target = $region13
  $region12: #{dp_wrapper_forward.18} parent=0 // pred_region
    _
  $region13: #{dp_wrapper_forward.18} parent=0 // pred_fallthru
    _
  // Predicated region
  $region14: #{dp_wrapper_forward.18} parent=0 // pred_check
    _
  $region15: #{dp_wrapper_forward.18} parent=0 // pred_check_branch
    %18 = sbr.rel (0) target = $region17
  $region16: #{dp_wrapper_forward.18} parent=0 // pred_region
    _
  $region17: #{dp_wrapper_forward.18} parent=0 // pred_fallthru
    _
  // Predicated region
  $region18: #{dp_wrapper_forward.18} parent=0 // pred_check
    _
  $region19: #{dp_wrapper_forward.18} parent=0 // pred_check_branch
    %20 = sbr.rel (0) target = $region21
  $region20: #{dp_wrapper_forward.18} parent=0 // pred_region
    _
  $region21: #{dp_wrapper_forward.18} parent=0 // pred_fallthru
    _
  // Predicated region
  $region22: #{dp_wrapper_forward.18} parent=0 // pred_check
    _
  $region23: #{dp_wrapper_forward.18} parent=0 // pred_check_branch
    %22 = sbr.rel (0) target = $region25
  $region24: #{dp_wrapper_forward.18} parent=0 // pred_region
    _
  $region25: #{dp_wrapper_forward.18} parent=0 // pred_fallthru
    _
  %v24 = vld [vmem:[%s5] sm:$0x1]
  %v26 = vperm.slane %v24, 0
  %vm28 = vcmask 31744
  %29 = vst.msk [vmem:[%s6] sm:$0xff] %vm28, %v26
  %30 = vst.msk [vmem:[%s6 + $0x8] sm:$0xff] %vm28, %v26
  %31 = vst.msk [vmem:[%s6 + $0x10] sm:$0xff] %vm28, %v26
  %32 = vst.msk [vmem:[%s6 + $0x18] sm:$0xff] %vm28, %v26
  %33 = vst.msk [vmem:[%s6 + $0x20] sm:$0xff] %vm28, %v26
  %34 = vst.msk [vmem:[%s6 + $0x28] sm:$0xff] %vm28, %v26
  %35 = vst.msk [vmem:[%s6 + $0x30] sm:$0xff] %vm28, %v26
  %36 = vst.msk [vmem:[%s6 + $0x38] sm:$0xff] %vm28, %v26
  %37 = vst.msk [vmem:[%s6 + $0x40] sm:$0xff] %vm28, %v26
  %38 = vst.msk [vmem:[%s6 + $0x48] sm:$0xff] %vm28, %v26
  %39 = vst.msk [vmem:[%s6 + $0x50] sm:$0xff] %vm28, %v26
  %40 = vst.msk [vmem:[%s6 + $0x58] sm:$0xff] %vm28, %v26
  %41 = vst.msk [vmem:[%s6 + $0x60] sm:$0xff] %vm28, %v26
  %42 = vst.msk [vmem:[%s6 + $0x68] sm:$0xff] %vm28, %v26
  %43 = vst.msk [vmem:[%s6 + $0x70] sm:$0xff] %vm28, %v26
  %44 = vst.msk [vmem:[%s6 + $0x78] sm:$0xff] %vm28, %v26
  %45 = vst.msk [vmem:[%s6 + $0x80] sm:$0xff] %vm28, %v26
  %46 = vst.msk [vmem:[%s6 + $0x88] sm:$0xff] %vm28, %v26
  %47 = vst.msk [vmem:[%s6 + $0x90] sm:$0xff] %vm28, %v26
  %48 = vst.msk [vmem:[%s6 + $0x98] sm:$0xff] %vm28, %v26
  %49 = vst.msk [vmem:[%s6 + $0xa0] sm:$0xff] %vm28, %v26
  %50 = vst.msk [vmem:[%s6 + $0xa8] sm:$0xff] %vm28, %v26
  %51 = vst.msk [vmem:[%s6 + $0xb0] sm:$0xff] %vm28, %v26
  %52 = vst.msk [vmem:[%s6 + $0xb8] sm:$0xff] %vm28, %v26
  %53 = vst.msk [vmem:[%s6 + $0xc0] sm:$0xff] %vm28, %v26
  %54 = vst.msk [vmem:[%s6 + $0xc8] sm:$0xff] %vm28, %v26
  %55 = vst.msk [vmem:[%s6 + $0xd0] sm:$0xff] %vm28, %v26
  %56 = vst.msk [vmem:[%s6 + $0xd8] sm:$0xff] %vm28, %v26
  %57 = vst.msk [vmem:[%s6 + $0xe0] sm:$0xff] %vm28, %v26
  %58 = vst.msk [vmem:[%s6 + $0xe8] sm:$0xff] %vm28, %v26
  %59 = vst.msk [vmem:[%s6 + $0xf0] sm:$0xff] %vm28, %v26
  %60 = vst.msk [vmem:[%s6 + $0xf8] sm:$0xff] %vm28, %v26
  %61 = vst.msk [vmem:[%s6 + $0x100] sm:$0xff] %vm28, %v26
  %62 = vst.msk [vmem:[%s6 + $0x108] sm:$0xff] %vm28, %v26
  %63 = vst.msk [vmem:[%s6 + $0x110] sm:$0xff] %vm28, %v26
  %64 = vst.msk [vmem:[%s6 + $0x118] sm:$0xff] %vm28, %v26
  %65 = vst.msk [vmem:[%s6 + $0x120] sm:$0xff] %vm28, %v26
  %66 = vst.msk [vmem:[%s6 + $0x128] sm:$0xff] %vm28, %v26
  %67 = vst.msk [vmem:[%s6 + $0x130] sm:$0xff] %vm28, %v26
  %68 = vst.msk [vmem:[%s6 + $0x138] sm:$0xff] %vm28, %v26
  %69 = vst.msk [vmem:[%s6 + $0x140] sm:$0xff] %vm28, %v26
  %70 = vst.msk [vmem:[%s6 + $0x148] sm:$0xff] %vm28, %v26
  %71 = vst.msk [vmem:[%s6 + $0x150] sm:$0xff] %vm28, %v26
  %72 = vst.msk [vmem:[%s6 + $0x158] sm:$0xff] %vm28, %v26
  %73 = vst.msk [vmem:[%s6 + $0x160] sm:$0xff] %vm28, %v26
  %74 = vst.msk [vmem:[%s6 + $0x168] sm:$0xff] %vm28, %v26
  %75 = vst.msk [vmem:[%s6 + $0x170] sm:$0xff] %vm28, %v26
  %76 = vst.msk [vmem:[%s6 + $0x178] sm:$0xff] %vm28, %v26
  %77 = vst.msk [vmem:[%s6 + $0x180] sm:$0xff] %vm28, %v26
  %78 = vst.msk [vmem:[%s6 + $0x188] sm:$0xff] %vm28, %v26
  %79 = vst.msk [vmem:[%s6 + $0x190] sm:$0xff] %vm28, %v26
  %80 = vst.msk [vmem:[%s6 + $0x198] sm:$0xff] %vm28, %v26
  %81 = vst.msk [vmem:[%s6 + $0x1a0] sm:$0xff] %vm28, %v26
  %82 = vst.msk [vmem:[%s6 + $0x1a8] sm:$0xff] %vm28, %v26
  %83 = vst.msk [vmem:[%s6 + $0x1b0] sm:$0xff] %vm28, %v26
  %84 = vst.msk [vmem:[%s6 + $0x1b8] sm:$0xff] %vm28, %v26
  %85 = vst.msk [vmem:[%s6 + $0x1c0] sm:$0xff] %vm28, %v26
  %86 = vst.msk [vmem:[%s6 + $0x1c8] sm:$0xff] %vm28, %v26
  %87 = vst.msk [vmem:[%s6 + $0x1d0] sm:$0xff] %vm28, %v26
  %88 = vst.msk [vmem:[%s6 + $0x1d8] sm:$0xff] %vm28, %v26
  %89 = vst.msk [vmem:[%s6 + $0x1e0] sm:$0xff] %vm28, %v26
  %90 = vst.msk [vmem:[%s6 + $0x1e8] sm:$0xff] %vm28, %v26
  %91 = vst.msk [vmem:[%s6 + $0x1f0] sm:$0xff] %vm28, %v26
  %92 = vst.msk [vmem:[%s6 + $0x1f8] sm:$0xff] %vm28, %v26
  %93 = vst.msk [vmem:[%s6 + $0x200] sm:$0xff] %vm28, %v26
  %94 = vst.msk [vmem:[%s6 + $0x208] sm:$0xff] %vm28, %v26
  %95 = vst.msk [vmem:[%s6 + $0x210] sm:$0xff] %vm28, %v26
  %96 = vst.msk [vmem:[%s6 + $0x218] sm:$0xff] %vm28, %v26
  %97 = vst.msk [vmem:[%s6 + $0x220] sm:$0xff] %vm28, %v26
  %98 = vst.msk [vmem:[%s6 + $0x228] sm:$0xff] %vm28, %v26
  %99 = vst.msk [vmem:[%s6 + $0x230] sm:$0xff] %vm28, %v26
  %100 = vst.msk [vmem:[%s6 + $0x238] sm:$0xff] %vm28, %v26
  %101 = vst.msk [vmem:[%s6 + $0x240] sm:$0xff] %vm28, %v26
  %102 = vst.msk [vmem:[%s6 + $0x248] sm:$0xff] %vm28, %v26
  %103 = vst.msk [vmem:[%s6 + $0x250] sm:$0xff] %vm28, %v26
  %104 = vst.msk [vmem:[%s6 + $0x258] sm:$0xff] %vm28, %v26
  %105 = vst.msk [vmem:[%s6 + $0x260] sm:$0xff] %vm28, %v26
  %106 = vst.msk [vmem:[%s6 + $0x268] sm:$0xff] %vm28, %v26
  %107 = vst.msk [vmem:[%s6 + $0x270] sm:$0xff] %vm28, %v26
  %108 = vst.msk [vmem:[%s6 + $0x278] sm:$0xff] %vm28, %v26
  %109 = vst.msk [vmem:[%s6 + $0x280] sm:$0xff] %vm28, %v26
  %110 = vst.msk [vmem:[%s6 + $0x288] sm:$0xff] %vm28, %v26
  %111 = vst.msk [vmem:[%s6 + $0x290] sm:$0xff] %vm28, %v26
  %112 = vst.msk [vmem:[%s6 + $0x298] sm:$0xff] %vm28, %v26
  %113 = vst.msk [vmem:[%s6 + $0x2a0] sm:$0xff] %vm28, %v26
  %114 = vst.msk [vmem:[%s6 + $0x2a8] sm:$0xff] %vm28, %v26
  %115 = vst.msk [vmem:[%s6 + $0x2b0] sm:$0xff] %vm28, %v26
  %116 = vst.msk [vmem:[%s6 + $0x2b8] sm:$0xff] %vm28, %v26
  %117 = vst.msk [vmem:[%s6 + $0x2c0] sm:$0xff] %vm28, %v26
  %118 = vst.msk [vmem:[%s6 + $0x2c8] sm:$0xff] %vm28, %v26
  %119 = vst.msk [vmem:[%s6 + $0x2d0] sm:$0xff] %vm28, %v26
  %120 = vst.msk [vmem:[%s6 + $0x2d8] sm:$0xff] %vm28, %v26
  %121 = vst.msk [vmem:[%s6 + $0x2e0] sm:$0xff] %vm28, %v26
  %122 = vst.msk [vmem:[%s6 + $0x2e8] sm:$0xff] %vm28, %v26
  %123 = vst.msk [vmem:[%s6 + $0x2f0] sm:$0xff] %vm28, %v26
  %124 = vst.msk [vmem:[%s6 + $0x2f8] sm:$0xff] %vm28, %v26
  %125 = vst.msk [vmem:[%s6 + $0x300] sm:$0xff] %vm28, %v26
  %126 = vst.msk [vmem:[%s6 + $0x308] sm:$0xff] %vm28, %v26
  %127 = vst.msk [vmem:[%s6 + $0x310] sm:$0xff] %vm28, %v26
  %128 = vst.msk [vmem:[%s6 + $0x318] sm:$0xff] %vm28, %v26
  %129 = vst.msk [vmem:[%s6 + $0x320] sm:$0xff] %vm28, %v26
  %130 = vst.msk [vmem:[%s6 + $0x328] sm:$0xff] %vm28, %v26
  %131 = vst.msk [vmem:[%s6 + $0x330] sm:$0xff] %vm28, %v26
  %132 = vst.msk [vmem:[%s6 + $0x338] sm:$0xff] %vm28, %v26
  %133 = vst.msk [vmem:[%s6 + $0x340] sm:$0xff] %vm28, %v26
  %134 = vst.msk [vmem:[%s6 + $0x348] sm:$0xff] %vm28, %v26
  %135 = vst.msk [vmem:[%s6 + $0x350] sm:$0xff] %vm28, %v26
  %136 = vst.msk [vmem:[%s6 + $0x358] sm:$0xff] %vm28, %v26
  %137 = vst.msk [vmem:[%s6 + $0x360] sm:$0xff] %vm28, %v26
  %138 = vst.msk [vmem:[%s6 + $0x368] sm:$0xff] %vm28, %v26
  %139 = vst.msk [vmem:[%s6 + $0x370] sm:$0xff] %vm28, %v26
  %140 = vst.msk [vmem:[%s6 + $0x378] sm:$0xff] %vm28, %v26
  %141 = vst.msk [vmem:[%s6 + $0x380] sm:$0xff] %vm28, %v26
  %142 = vst.msk [vmem:[%s6 + $0x388] sm:$0xff] %vm28, %v26
  %143 = vst.msk [vmem:[%s6 + $0x390] sm:$0xff] %vm28, %v26
  %144 = vst.msk [vmem:[%s6 + $0x398] sm:$0xff] %vm28, %v26
  %145 = vst.msk [vmem:[%s6 + $0x3a0] sm:$0xff] %vm28, %v26
  %146 = vst.msk [vmem:[%s6 + $0x3a8] sm:$0xff] %vm28, %v26
  %147 = vst.msk [vmem:[%s6 + $0x3b0] sm:$0xff] %vm28, %v26
  %148 = vst.msk [vmem:[%s6 + $0x3b8] sm:$0xff] %vm28, %v26
  %149 = vst.msk [vmem:[%s6 + $0x3c0] sm:$0xff] %vm28, %v26
  %150 = vst.msk [vmem:[%s6 + $0x3c8] sm:$0xff] %vm28, %v26
  %151 = vst.msk [vmem:[%s6 + $0x3d0] sm:$0xff] %vm28, %v26
  %152 = vst.msk [vmem:[%s6 + $0x3d8] sm:$0xff] %vm28, %v26
  %153 = vst.msk [vmem:[%s6 + $0x3e0] sm:$0xff] %vm28, %v26
  %154 = vst.msk [vmem:[%s6 + $0x3e8] sm:$0xff] %vm28, %v26
  %155 = vst.msk [vmem:[%s6 + $0x3f0] sm:$0xff] %vm28, %v26
  %156 = vst.msk [vmem:[%s6 + $0x3f8] sm:$0xff] %vm28, %v26
  loop: start=0, step=1, limit=8
  $region26: #{dp_wrapper_forward.18} parent=0 // loop_pre_header
    _
  $region27: #{dp_wrapper_forward.18} parent=0 // loop_header
    %s158 = sphi 0, %s162
    %p159 = scmp.ge.s32.totalorder %s158, 8
    %v163 = vphi 0, %v1411
    %v164 = vphi 0, %v1412
    %v165 = vphi 0, %v1413
    %v166 = vphi 0, %v1414
    %v167 = vphi 0, %v1415
    %v168 = vphi 0, %v1416
    %v169 = vphi 0, %v1417
    %v170 = vphi 0, %v1418
    %v171 = vphi 0, %v1419
    %v172 = vphi 0, %v1420
    %v173 = vphi 0, %v1421
    %v174 = vphi 0, %v1422
    %v175 = vphi 0, %v1423
    %v176 = vphi 0, %v1424
    %v177 = vphi 0, %v1425
    %v178 = vphi 0, %v1426
    %v179 = vphi 0.0, %v1299
    %v180 = vphi 0.0, %v1300
    %v181 = vphi 0.0, %v1301
    %v182 = vphi 0.0, %v1302
    %v183 = vphi 0.0, %v1303
    %v184 = vphi 0.0, %v1304
    %v185 = vphi 0.0, %v1305
    %v186 = vphi 0.0, %v1306
    %v187 = vphi 0.0, %v1307
    %v188 = vphi 0.0, %v1308
    %v189 = vphi 0.0, %v1309
    %v190 = vphi 0.0, %v1310
    %v191 = vphi 0.0, %v1311
    %v192 = vphi 0.0, %v1312
    %v193 = vphi 0.0, %v1313
    %v194 = vphi 0.0, %v1314
    %v195 = vphi 0, %v2019
    %v196 = vphi 0, %v2020
    %v197 = vphi 0, %v2021
    %v198 = vphi 0, %v2022
    %v199 = vphi 0, %v2023
    %v200 = vphi 0, %v2024
    %v201 = vphi 0, %v2025
    %v202 = vphi 0, %v2026
    %v203 = vphi 0, %v2027
    %v204 = vphi 0, %v2028
    %v205 = vphi 0, %v2029
    %v206 = vphi 0, %v2030
    %v207 = vphi 0, %v2031
    %v208 = vphi 0, %v2032
    %v209 = vphi 0, %v2033
    %v210 = vphi 0, %v2034
    %v211 = vphi 0.0, %v1907
    %v212 = vphi 0.0, %v1908
    %v213 = vphi 0.0, %v1909
    %v214 = vphi 0.0, %v1910
    %v215 = vphi 0.0, %v1911
    %v216 = vphi 0.0, %v1912
    %v217 = vphi 0.0, %v1913
    %v218 = vphi 0.0, %v1914
    %v219 = vphi 0.0, %v1915
    %v220 = vphi 0.0, %v1916
    %v221 = vphi 0.0, %v1917
    %v222 = vphi 0.0, %v1918
    %v223 = vphi 0.0, %v1919
    %v224 = vphi 0.0, %v1920
    %v225 = vphi 0.0, %v1921
    %v226 = vphi 0.0, %v1922
  $region28: #{dp_wrapper_forward.18} parent=0 // loop_header_branch
    %161 = sbr.rel (%p159) target = $region32
  $region29: #{dp_wrapper_forward.18} parent=0 // loop_body
    %s227 = ssub.s32 7, %s158
    %s228 = smul.u32 %s158, 16
    %s229 = smul.addr %s228, 4
    %s230 = scalar_lea.vmem %s0, %s229
    %v231 = vld [vmem:[%s230] sm:$0xf]
    %v232 = vld [vmem:[%s230 + $0x4] sm:$0xf]
    %v233 = vld [vmem:[%s230 + $0x8] sm:$0xf]
    %v234 = vld [vmem:[%s230 + $0xc] sm:$0xf]
    %v235 = vld [vmem:[%s230 + $0x10] sm:$0xf]
    %v236 = vld [vmem:[%s230 + $0x14] sm:$0xf]
    %v237 = vld [vmem:[%s230 + $0x18] sm:$0xf]
    %v238 = vld [vmem:[%s230 + $0x1c] sm:$0xf]
    %v239 = vld [vmem:[%s230 + $0x20] sm:$0xf]
    %v240 = vld [vmem:[%s230 + $0x24] sm:$0xf]
    %v241 = vld [vmem:[%s230 + $0x28] sm:$0xf]
    %v242 = vld [vmem:[%s230 + $0x2c] sm:$0xf]
    %v243 = vld [vmem:[%s230 + $0x30] sm:$0xf]
    %v244 = vld [vmem:[%s230 + $0x34] sm:$0xf]
    %v245 = vld [vmem:[%s230 + $0x38] sm:$0xf]
    %v246 = vld [vmem:[%s230 + $0x3c] sm:$0xf]
    %s247 = smul.u32 %s227, 16
    %s248 = smul.addr %s247, 4
    %s249 = scalar_lea.vmem %s0, %s248
    %v250 = vld [vmem:[%s249] sm:$0xf]
    %v251 = vld [vmem:[%s249 + $0x4] sm:$0xf]
    %v252 = vld [vmem:[%s249 + $0x8] sm:$0xf]
    %v253 = vld [vmem:[%s249 + $0xc] sm:$0xf]
    %v254 = vld [vmem:[%s249 + $0x10] sm:$0xf]
    %v255 = vld [vmem:[%s249 + $0x14] sm:$0xf]
    %v256 = vld [vmem:[%s249 + $0x18] sm:$0xf]
    %v257 = vld [vmem:[%s249 + $0x1c] sm:$0xf]
    %v258 = vld [vmem:[%s249 + $0x20] sm:$0xf]
    %v259 = vld [vmem:[%s249 + $0x24] sm:$0xf]
    %v260 = vld [vmem:[%s249 + $0x28] sm:$0xf]
    %v261 = vld [vmem:[%s249 + $0x2c] sm:$0xf]
    %v262 = vld [vmem:[%s249 + $0x30] sm:$0xf]
    %v263 = vld [vmem:[%s249 + $0x34] sm:$0xf]
    %v264 = vld [vmem:[%s249 + $0x38] sm:$0xf]
    %v265 = vld [vmem:[%s249 + $0x3c] sm:$0xf]
    %v266 = vld [vmem:[%s1] sm:$0x3]
    %v267 = vld [vmem:[%s2] sm:$0xf]
    %v268 = vld [vmem:[%s2 + $0x4] sm:$0xf]
    %v285 = vunpack.c.l.b16 %v163
    %v286 = vunpack.c.l.b16 %v164
    %v287 = vunpack.c.l.b16 %v165
    %v288 = vunpack.c.l.b16 %v166
    %v289 = vunpack.c.l.b16 %v167
    %v290 = vunpack.c.l.b16 %v168
    %v291 = vunpack.c.l.b16 %v169
    %v292 = vunpack.c.l.b16 %v170
    %v293 = vunpack.c.l.b16 %v171
    %v294 = vunpack.c.l.b16 %v172
    %v295 = vunpack.c.l.b16 %v173
    %v296 = vunpack.c.l.b16 %v174
    %v297 = vunpack.c.l.b16 %v175
    %v298 = vunpack.c.l.b16 %v176
    %v299 = vunpack.c.l.b16 %v177
    %v300 = vunpack.c.l.b16 %v178
    %v301 = vpack.c.b16 %v286, %v285
    %v302 = vpack.c.b16 %v288, %v287
    %v303 = vpack.c.b16 %v290, %v289
    %v304 = vpack.c.b16 %v292, %v291
    %v305 = vpack.c.b16 %v294, %v293
    %v306 = vpack.c.b16 %v296, %v295
    %v307 = vpack.c.b16 %v298, %v297
    %v308 = vpack.c.b16 %v300, %v299
    %309 = vrot.lane.b32.xlu0 %v301, 80
    %v310 = vpop.permute.xlu0 %309
    %311 = vrot.lane.b32.xlu0 %v302, 80
    %v312 = vpop.permute.xlu0 %311
    %313 = vrot.lane.b32.xlu0 %v303, 80
    %v314 = vpop.permute.xlu0 %313
    %315 = vrot.lane.b32.xlu0 %v304, 80
    %v316 = vpop.permute.xlu0 %315
    %317 = vrot.lane.b32.xlu0 %v305, 80
    %v318 = vpop.permute.xlu0 %317
    %319 = vrot.lane.b32.xlu0 %v306, 80
    %v320 = vpop.permute.xlu0 %319
    %321 = vrot.lane.b32.xlu0 %v307, 80
    %v322 = vpop.permute.xlu0 %321
    %323 = vrot.lane.b32.xlu0 %v308, 80
    %v324 = vpop.permute.xlu0 %323
    %v327 = vunpack.c.l.b16 %v267
    %v328 = vunpack.c.l.b16 %v268
    %v329 = vpack.c.b16 %v328, %v327
    %vm331 = vcmask 130048
    %v333 = vsel %vm331, %v310, 0
    %v336 = vsel %vm331, %v312, 0
    %v339 = vsel %vm331, %v314, 0
    %v342 = vsel %vm331, %v316, 0
    %v345 = vsel %vm331, %v318, 0
    %v348 = vsel %vm331, %v320, 0
    %v351 = vsel %vm331, %v322, 0
    %v354 = vsel %vm331, %v324, 0
    %356 = vmatpush.bf16.msra.mxu0 0
    %357 = vmatpush.bf16.msra.mxu0 0
    %358 = vmatpush.bf16.msra.mxu0 0
    %359 = vmatpush.bf16.msra.mxu0 0
    %360 = vmatpush.bf16.msra.mxu0 0
    %361 = vmatpush.bf16.msra.mxu0 0
    %362 = vmatpush.bf16.msra.mxu0 0
    %363 = vmatpush.bf16.msra.mxu0 %v329
    %364 = vmatmul.bf16.gmra.mxu0 %v333
    %v365 = vpop.f32.mrf.mxu0
    %v366 = vadd.f32 0.0, %v365
    %v367 = vpop.f32.mrf.mxu0
    %v368 = vadd.f32 0.0, %v367
    %369 = vmatmul.bf16.gmra.mxu0 %v336
    %v370 = vpop.f32.mrf.mxu0
    %v371 = vadd.f32 0.0, %v370
    %v372 = vpop.f32.mrf.mxu0
    %v373 = vadd.f32 0.0, %v372
    %374 = vmatmul.bf16.gmra.mxu0 %v339
    %v375 = vpop.f32.mrf.mxu0
    %v376 = vadd.f32 0.0, %v375
    %v377 = vpop.f32.mrf.mxu0
    %v378 = vadd.f32 0.0, %v377
    %379 = vmatmul.bf16.gmra.mxu0 %v342
    %v380 = vpop.f32.mrf.mxu0
    %v381 = vadd.f32 0.0, %v380
    %v382 = vpop.f32.mrf.mxu0
    %v383 = vadd.f32 0.0, %v382
    %384 = vmatmul.bf16.gmra.mxu0 %v345
    %v385 = vpop.f32.mrf.mxu0
    %v386 = vadd.f32 0.0, %v385
    %v387 = vpop.f32.mrf.mxu0
    %v388 = vadd.f32 0.0, %v387
    %389 = vmatmul.bf16.gmra.mxu0 %v348
    %v390 = vpop.f32.mrf.mxu0
    %v391 = vadd.f32 0.0, %v390
    %v392 = vpop.f32.mrf.mxu0
    %v393 = vadd.f32 0.0, %v392
    %394 = vmatmul.bf16.gmra.mxu0 %v351
    %v395 = vpop.f32.mrf.mxu0
    %v396 = vadd.f32 0.0, %v395
    %v397 = vpop.f32.mrf.mxu0
    %v398 = vadd.f32 0.0, %v397
    %399 = vmatmul.bf16.gmra.mxu0 %v354
    %v400 = vpop.f32.mrf.mxu0
    %v401 = vadd.f32 0.0, %v400
    %v402 = vpop.f32.mrf.mxu0
    %v403 = vadd.f32 0.0, %v402
    %404 = vdwg.mxu0
    %v421 = vunpack.c.l.b16 %v231
    %v422 = vunpack.c.l.b16 %v232
    %v423 = vunpack.c.l.b16 %v233
    %v424 = vunpack.c.l.b16 %v234
    %v425 = vunpack.c.l.b16 %v235
    %v426 = vunpack.c.l.b16 %v236
    %v427 = vunpack.c.l.b16 %v237
    %v428 = vunpack.c.l.b16 %v238
    %v429 = vunpack.c.l.b16 %v239
    %v430 = vunpack.c.l.b16 %v240
    %v431 = vunpack.c.l.b16 %v241
    %v432 = vunpack.c.l.b16 %v242
    %v433 = vunpack.c.l.b16 %v243
    %v434 = vunpack.c.l.b16 %v244
    %v435 = vunpack.c.l.b16 %v245
    %v436 = vunpack.c.l.b16 %v246
    %v437 = vpack.c.b16 %v422, %v421
    %v438 = vpack.c.b16 %v424, %v423
    %v439 = vpack.c.b16 %v426, %v425
    %v440 = vpack.c.b16 %v428, %v427
    %v441 = vpack.c.b16 %v430, %v429
    %v442 = vpack.c.b16 %v432, %v431
    %v443 = vpack.c.b16 %v434, %v433
    %v444 = vpack.c.b16 %v436, %v435
    %v446 = vsel %vm28, %v437, 0
    %v449 = vsel %vm28, %v438, 0
    %v452 = vsel %vm28, %v439, 0
    %v455 = vsel %vm28, %v440, 0
    %v458 = vsel %vm28, %v441, 0
    %v461 = vsel %vm28, %v442, 0
    %v464 = vsel %vm28, %v443, 0
    %v467 = vsel %vm28, %v444, 0
    %vm469 = vcmask 1041408
    %v471 = vsel %vm469, %v266, 0
    %473 = vmatpush.bf16.msra.mxu0 0
    %474 = vmatpush.bf16.msra.mxu0 0
    %475 = vmatpush.bf16.msra.mxu0 0
    %476 = vmatpush.bf16.msra.mxu0 0
    %477 = vmatpush.bf16.msra.mxu0 0
    %478 = vmatpush.bf16.msra.mxu0 0
    %479 = vmatpush.bf16.msra.mxu0 0
    %480 = vmatpush.bf16.msra.mxu0 %v471
    %481 = vmatmul.bf16.gmra.mxu0 %v446
    %v482 = vpop.f32.mrf.mxu0
    %v483 = vadd.f32 %v366, %v482
    %v484 = vpop.f32.mrf.mxu0
    %v485 = vadd.f32 %v368, %v484
    %486 = vmatmul.bf16.gmra.mxu0 %v449
    %v487 = vpop.f32.mrf.mxu0
    %v488 = vadd.f32 %v371, %v487
    %v489 = vpop.f32.mrf.mxu0
    %v490 = vadd.f32 %v373, %v489
    %491 = vmatmul.bf16.gmra.mxu0 %v452
    %v492 = vpop.f32.mrf.mxu0
    %v493 = vadd.f32 %v376, %v492
    %v494 = vpop.f32.mrf.mxu0
    %v495 = vadd.f32 %v378, %v494
    %496 = vmatmul.bf16.gmra.mxu0 %v455
    %v497 = vpop.f32.mrf.mxu0
    %v498 = vadd.f32 %v381, %v497
    %v499 = vpop.f32.mrf.mxu0
    %v500 = vadd.f32 %v383, %v499
    %501 = vmatmul.bf16.gmra.mxu0 %v458
    %v502 = vpop.f32.mrf.mxu0
    %v503 = vadd.f32 %v386, %v502
    %v504 = vpop.f32.mrf.mxu0
    %v505 = vadd.f32 %v388, %v504
    %506 = vmatmul.bf16.gmra.mxu0 %v461
    %v507 = vpop.f32.mrf.mxu0
    %v508 = vadd.f32 %v391, %v507
    %v509 = vpop.f32.mrf.mxu0
    %v510 = vadd.f32 %v393, %v509
    %511 = vmatmul.bf16.gmra.mxu0 %v464
    %v512 = vpop.f32.mrf.mxu0
    %v513 = vadd.f32 %v396, %v512
    %v514 = vpop.f32.mrf.mxu0
    %v515 = vadd.f32 %v398, %v514
    %516 = vmatmul.bf16.gmra.mxu0 %v467
    %v517 = vpop.f32.mrf.mxu0
    %v518 = vadd.f32 %v401, %v517
    %v519 = vpop.f32.mrf.mxu0
    %v520 = vadd.f32 %v403, %v519
    %521 = vdwg.mxu0
    %v522 = vld [vmem:[%s3] sm:$0x1]
    %v524 = vperm.slane %v522, 0
    %v526 = vadd.f32 %v483, %v524
    %v527 = vadd.f32 %v485, %v524
    %v528 = vadd.f32 %v488, %v524
    %v529 = vadd.f32 %v490, %v524
    %v530 = vadd.f32 %v493, %v524
    %v531 = vadd.f32 %v495, %v524
    %v532 = vadd.f32 %v498, %v524
    %v533 = vadd.f32 %v500, %v524
    %v534 = vadd.f32 %v503, %v524
    %v535 = vadd.f32 %v505, %v524
    %v536 = vadd.f32 %v508, %v524
    %v537 = vadd.f32 %v510, %v524
    %v538 = vadd.f32 %v513, %v524
    %v539 = vadd.f32 %v515, %v524
    %v540 = vadd.f32 %v518, %v524
    %v541 = vadd.f32 %v520, %v524
    %s542 = scalar_lea.vmem %s1, 2
    %v543 = vld [vmem:[%s542] sm:$0x3]
    %s544 = scalar_lea.vmem %s2, 8
    %v545 = vld [vmem:[%s544] sm:$0xf]
    %v546 = vld [vmem:[%s544 + $0x4] sm:$0xf]
    %v563 = vunpack.c.l.b16 %v195
    %v564 = vunpack.c.l.b16 %v196
    %v565 = vunpack.c.l.b16 %v197
    %v566 = vunpack.c.l.b16 %v198
    %v567 = vunpack.c.l.b16 %v199
    %v568 = vunpack.c.l.b16 %v200
    %v569 = vunpack.c.l.b16 %v201
    %v570 = vunpack.c.l.b16 %v202
    %v571 = vunpack.c.l.b16 %v203
    %v572 = vunpack.c.l.b16 %v204
    %v573 = vunpack.c.l.b16 %v205
    %v574 = vunpack.c.l.b16 %v206
    %v575 = vunpack.c.l.b16 %v207
    %v576 = vunpack.c.l.b16 %v208
    %v577 = vunpack.c.l.b16 %v209
    %v578 = vunpack.c.l.b16 %v210
    %v579 = vpack.c.b16 %v564, %v563
    %v580 = vpack.c.b16 %v566, %v565
    %v581 = vpack.c.b16 %v568, %v567
    %v582 = vpack.c.b16 %v570, %v569
    %v583 = vpack.c.b16 %v572, %v571
    %v584 = vpack.c.b16 %v574, %v573
    %v585 = vpack.c.b16 %v576, %v575
    %v586 = vpack.c.b16 %v578, %v577
    %587 = vrot.lane.b32.xlu0 %v579, 80
    %v588 = vpop.permute.xlu0 %587
    %589 = vrot.lane.b32.xlu0 %v580, 80
    %v590 = vpop.permute.xlu0 %589
    %591 = vrot.lane.b32.xlu0 %v581, 80
    %v592 = vpop.permute.xlu0 %591
    %593 = vrot.lane.b32.xlu0 %v582, 80
    %v594 = vpop.permute.xlu0 %593
    %595 = vrot.lane.b32.xlu0 %v583, 80
    %v596 = vpop.permute.xlu0 %595
    %597 = vrot.lane.b32.xlu0 %v584, 80
    %v598 = vpop.permute.xlu0 %597
    %599 = vrot.lane.b32.xlu0 %v585, 80
    %v600 = vpop.permute.xlu0 %599
    %601 = vrot.lane.b32.xlu0 %v586, 80
    %v602 = vpop.permute.xlu0 %601
    %v605 = vunpack.c.l.b16 %v545
    %v606 = vunpack.c.l.b16 %v546
    %v607 = vpack.c.b16 %v606, %v605
    %v610 = vsel %vm331, %v588, 0
    %v613 = vsel %vm331, %v590, 0
    %v616 = vsel %vm331, %v592, 0
    %v619 = vsel %vm331, %v594, 0
    %v622 = vsel %vm331, %v596, 0
    %v625 = vsel %vm331, %v598, 0
    %v628 = vsel %vm331, %v600, 0
    %v631 = vsel %vm331, %v602, 0
    %633 = vmatpush.bf16.msra.mxu0 0
    %634 = vmatpush.bf16.msra.mxu0 0
    %635 = vmatpush.bf16.msra.mxu0 0
    %636 = vmatpush.bf16.msra.mxu0 0
    %637 = vmatpush.bf16.msra.mxu0 0
    %638 = vmatpush.bf16.msra.mxu0 0
    %639 = vmatpush.bf16.msra.mxu0 0
    %640 = vmatpush.bf16.msra.mxu0 %v607
    %641 = vmatmul.bf16.gmra.mxu0 %v610
    %v642 = vpop.f32.mrf.mxu0
    %v643 = vadd.f32 0.0, %v642
    %v644 = vpop.f32.mrf.mxu0
    %v645 = vadd.f32 0.0, %v644
    %646 = vmatmul.bf16.gmra.mxu0 %v613
    %v647 = vpop.f32.mrf.mxu0
    %v648 = vadd.f32 0.0, %v647
    %v649 = vpop.f32.mrf.mxu0
    %v650 = vadd.f32 0.0, %v649
    %651 = vmatmul.bf16.gmra.mxu0 %v616
    %v652 = vpop.f32.mrf.mxu0
    %v653 = vadd.f32 0.0, %v652
    %v654 = vpop.f32.mrf.mxu0
    %v655 = vadd.f32 0.0, %v654
    %656 = vmatmul.bf16.gmra.mxu0 %v619
    %v657 = vpop.f32.mrf.mxu0
    %v658 = vadd.f32 0.0, %v657
    %v659 = vpop.f32.mrf.mxu0
    %v660 = vadd.f32 0.0, %v659
    %661 = vmatmul.bf16.gmra.mxu0 %v622
    %v662 = vpop.f32.mrf.mxu0
    %v663 = vadd.f32 0.0, %v662
    %v664 = vpop.f32.mrf.mxu0
    %v665 = vadd.f32 0.0, %v664
    %666 = vmatmul.bf16.gmra.mxu0 %v625
    %v667 = vpop.f32.mrf.mxu0
    %v668 = vadd.f32 0.0, %v667
    %v669 = vpop.f32.mrf.mxu0
    %v670 = vadd.f32 0.0, %v669
    %671 = vmatmul.bf16.gmra.mxu0 %v628
    %v672 = vpop.f32.mrf.mxu0
    %v673 = vadd.f32 0.0, %v672
    %v674 = vpop.f32.mrf.mxu0
    %v675 = vadd.f32 0.0, %v674
    %676 = vmatmul.bf16.gmra.mxu0 %v631
    %v677 = vpop.f32.mrf.mxu0
    %v678 = vadd.f32 0.0, %v677
    %v679 = vpop.f32.mrf.mxu0
    %v680 = vadd.f32 0.0, %v679
    %681 = vdwg.mxu0
    %v698 = vunpack.c.l.b16 %v250
    %v699 = vunpack.c.l.b16 %v251
    %v700 = vunpack.c.l.b16 %v252
    %v701 = vunpack.c.l.b16 %v253
    %v702 = vunpack.c.l.b16 %v254
    %v703 = vunpack.c.l.b16 %v255
    %v704 = vunpack.c.l.b16 %v256
    %v705 = vunpack.c.l.b16 %v257
    %v706 = vunpack.c.l.b16 %v258
    %v707 = vunpack.c.l.b16 %v259
    %v708 = vunpack.c.l.b16 %v260
    %v709 = vunpack.c.l.b16 %v261
    %v710 = vunpack.c.l.b16 %v262
    %v711 = vunpack.c.l.b16 %v263
    %v712 = vunpack.c.l.b16 %v264
    %v713 = vunpack.c.l.b16 %v265
    %v714 = vpack.c.b16 %v699, %v698
    %v715 = vpack.c.b16 %v701, %v700
    %v716 = vpack.c.b16 %v703, %v702
    %v717 = vpack.c.b16 %v705, %v704
    %v718 = vpack.c.b16 %v707, %v706
    %v719 = vpack.c.b16 %v709, %v708
    %v720 = vpack.c.b16 %v711, %v710
    %v721 = vpack.c.b16 %v713, %v712
    %v723 = vsel %vm28, %v714, 0
    %v726 = vsel %vm28, %v715, 0
    %v729 = vsel %vm28, %v716, 0
    %v732 = vsel %vm28, %v717, 0
    %v735 = vsel %vm28, %v718, 0
    %v738 = vsel %vm28, %v719, 0
    %v741 = vsel %vm28, %v720, 0
    %v744 = vsel %vm28, %v721, 0
    %v747 = vsel %vm469, %v543, 0
    %749 = vmatpush.bf16.msra.mxu0 0
    %750 = vmatpush.bf16.msra.mxu0 0
    %751 = vmatpush.bf16.msra.mxu0 0
    %752 = vmatpush.bf16.msra.mxu0 0
    %753 = vmatpush.bf16.msra.mxu0 0
    %754 = vmatpush.bf16.msra.mxu0 0
    %755 = vmatpush.bf16.msra.mxu0 0
    %756 = vmatpush.bf16.msra.mxu0 %v747
    %757 = vmatmul.bf16.gmra.mxu0 %v723
    %v758 = vpop.f32.mrf.mxu0
    %v759 = vadd.f32 %v643, %v758
    %v760 = vpop.f32.mrf.mxu0
    %v761 = vadd.f32 %v645, %v760
    %762 = vmatmul.bf16.gmra.mxu0 %v726
    %v763 = vpop.f32.mrf.mxu0
    %v764 = vadd.f32 %v648, %v763
    %v765 = vpop.f32.mrf.mxu0
    %v766 = vadd.f32 %v650, %v765
    %767 = vmatmul.bf16.gmra.mxu0 %v729
    %v768 = vpop.f32.mrf.mxu0
    %v769 = vadd.f32 %v653, %v768
    %v770 = vpop.f32.mrf.mxu0
    %v771 = vadd.f32 %v655, %v770
    %772 = vmatmul.bf16.gmra.mxu0 %v732
    %v773 = vpop.f32.mrf.mxu0
    %v774 = vadd.f32 %v658, %v773
    %v775 = vpop.f32.mrf.mxu0
    %v776 = vadd.f32 %v660, %v775
    %777 = vmatmul.bf16.gmra.mxu0 %v735
    %v778 = vpop.f32.mrf.mxu0
    %v779 = vadd.f32 %v663, %v778
    %v780 = vpop.f32.mrf.mxu0
    %v781 = vadd.f32 %v665, %v780
    %782 = vmatmul.bf16.gmra.mxu0 %v738
    %v783 = vpop.f32.mrf.mxu0
    %v784 = vadd.f32 %v668, %v783
    %v785 = vpop.f32.mrf.mxu0
    %v786 = vadd.f32 %v670, %v785
    %787 = vmatmul.bf16.gmra.mxu0 %v741
    %v788 = vpop.f32.mrf.mxu0
    %v789 = vadd.f32 %v673, %v788
    %v790 = vpop.f32.mrf.mxu0
    %v791 = vadd.f32 %v675, %v790
    %792 = vmatmul.bf16.gmra.mxu0 %v744
    %v793 = vpop.f32.mrf.mxu0
    %v794 = vadd.f32 %v678, %v793
    %v795 = vpop.f32.mrf.mxu0
    %v796 = vadd.f32 %v680, %v795
    %797 = vdwg.mxu0
    %s798 = scalar_lea.vmem %s3, 1
    %v799 = vld [vmem:[%s798] sm:$0x1]
    %v801 = vperm.slane %v799, 0
    %v803 = vadd.f32 %v759, %v801
    %v804 = vadd.f32 %v761, %v801
    %v805 = vadd.f32 %v764, %v801
    %v806 = vadd.f32 %v766, %v801
    %v807 = vadd.f32 %v769, %v801
    %v808 = vadd.f32 %v771, %v801
    %v809 = vadd.f32 %v774, %v801
    %v810 = vadd.f32 %v776, %v801
    %v811 = vadd.f32 %v779, %v801
    %v812 = vadd.f32 %v781, %v801
    %v813 = vadd.f32 %v784, %v801
    %v814 = vadd.f32 %v786, %v801
    %v815 = vadd.f32 %v789, %v801
    %v816 = vadd.f32 %v791, %v801
    %v817 = vadd.f32 %v794, %v801
    %v818 = vadd.f32 %v796, %v801
    %v819 = vxor.u32 %v526, 2147483648
    %v820 = vxor.u32 %v527, 2147483648
    %v821 = vxor.u32 %v528, 2147483648
    %v822 = vxor.u32 %v529, 2147483648
    %v823 = vxor.u32 %v530, 2147483648
    %v824 = vxor.u32 %v531, 2147483648
    %v825 = vxor.u32 %v532, 2147483648
    %v826 = vxor.u32 %v533, 2147483648
    %v827 = vxor.u32 %v534, 2147483648
    %v828 = vxor.u32 %v535, 2147483648
    %v829 = vxor.u32 %v536, 2147483648
    %v830 = vxor.u32 %v537, 2147483648
    %v831 = vxor.u32 %v538, 2147483648
    %v832 = vxor.u32 %v539, 2147483648
    %v833 = vxor.u32 %v540, 2147483648
    %v834 = vxor.u32 %v541, 2147483648
    %v835 = vmul.f32 %v819, 1.442695
    %v836 = vpow.pop %v835
    %v837 = vmul.f32 %v820, 1.442695
    %v838 = vpow.pop %v837
    %v839 = vmul.f32 %v821, 1.442695
    %v840 = vpow.pop %v839
    %v841 = vmul.f32 %v822, 1.442695
    %v842 = vpow.pop %v841
    %v843 = vmul.f32 %v823, 1.442695
    %v844 = vpow.pop %v843
    %v845 = vmul.f32 %v824, 1.442695
    %v846 = vpow.pop %v845
    %v847 = vmul.f32 %v825, 1.442695
    %v848 = vpow.pop %v847
    %v849 = vmul.f32 %v826, 1.442695
    %v850 = vpow.pop %v849
    %v851 = vmul.f32 %v827, 1.442695
    %v852 = vpow.pop %v851
    %v853 = vmul.f32 %v828, 1.442695
    %v854 = vpow.pop %v853
    %v855 = vmul.f32 %v829, 1.442695
    %v856 = vpow.pop %v855
    %v857 = vmul.f32 %v830, 1.442695
    %v858 = vpow.pop %v857
    %v859 = vmul.f32 %v831, 1.442695
    %v860 = vpow.pop %v859
    %v861 = vmul.f32 %v832, 1.442695
    %v862 = vpow.pop %v861
    %v863 = vmul.f32 %v833, 1.442695
    %v864 = vpow.pop %v863
    %v865 = vmul.f32 %v834, 1.442695
    %v866 = vpow.pop %v865
    %v867 = vadd.f32 %v836, 1.0
    %v868 = vadd.f32 %v838, 1.0
    %v869 = vadd.f32 %v840, 1.0
    %v870 = vadd.f32 %v842, 1.0
    %v871 = vadd.f32 %v844, 1.0
    %v872 = vadd.f32 %v846, 1.0
    %v873 = vadd.f32 %v848, 1.0
    %v874 = vadd.f32 %v850, 1.0
    %v875 = vadd.f32 %v852, 1.0
    %v876 = vadd.f32 %v854, 1.0
    %v877 = vadd.f32 %v856, 1.0
    %v878 = vadd.f32 %v858, 1.0
    %v879 = vadd.f32 %v860, 1.0
    %v880 = vadd.f32 %v862, 1.0
    %v881 = vadd.f32 %v864, 1.0
    %v882 = vadd.f32 %v866, 1.0
    %v883 = vrcp.pop %v867
    %v884 = vmul.f32 %v867, %v883
    %v885 = vsub.f32 1.0, %v884
    %v886 = vmul.f32 %v883, %v885
    %v887 = vadd.f32 %v883, %v886
    %vm888 = vweird.f32 %v867
    %vm889 = vweird.f32 %v883
    %vm890 = vmor %vm888, %vm889
    %v891 = vsel %vm890, %v883, %v887
    %v892 = vand.u32 2147483647, %v867
    %vm893 = vcmp.eq.f32.partialorder %v892, 8.507059e+37
    %v894 = vand.u32 %v867, 2147483648
    %v895 = vor.u32 1.1754944e-38, %v894
    %v896 = vsel %vm893, %v895, %v891
    %v897 = vmul.f32 1.0, %v896
    %v898 = vrcp.pop %v868
    %v899 = vmul.f32 %v868, %v898
    %v900 = vsub.f32 1.0, %v899
    %v901 = vmul.f32 %v898, %v900
    %v902 = vadd.f32 %v898, %v901
    %vm903 = vweird.f32 %v868
    %vm904 = vweird.f32 %v898
    %vm905 = vmor %vm903, %vm904
    %v906 = vsel %vm905, %v898, %v902
    %v907 = vand.u32 2147483647, %v868
    %vm908 = vcmp.eq.f32.partialorder %v907, 8.507059e+37
    %v909 = vand.u32 %v868, 2147483648
    %v910 = vor.u32 1.1754944e-38, %v909
    %v911 = vsel %vm908, %v910, %v906
    %v912 = vmul.f32 1.0, %v911
    %v913 = vrcp.pop %v869
    %v914 = vmul.f32 %v869, %v913
    %v915 = vsub.f32 1.0, %v914
    %v916 = vmul.f32 %v913, %v915
    %v917 = vadd.f32 %v913, %v916
    %vm918 = vweird.f32 %v869
    %vm919 = vweird.f32 %v913
    %vm920 = vmor %vm918, %vm919
    %v921 = vsel %vm920, %v913, %v917
    %v922 = vand.u32 2147483647, %v869
    %vm923 = vcmp.eq.f32.partialorder %v922, 8.507059e+37
    %v924 = vand.u32 %v869, 2147483648
    %v925 = vor.u32 1.1754944e-38, %v924
    %v926 = vsel %vm923, %v925, %v921
    %v927 = vmul.f32 1.0, %v926
    %v928 = vrcp.pop %v870
    %v929 = vmul.f32 %v870, %v928
    %v930 = vsub.f32 1.0, %v929
    %v931 = vmul.f32 %v928, %v930
    %v932 = vadd.f32 %v928, %v931
    %vm933 = vweird.f32 %v870
    %vm934 = vweird.f32 %v928
    %vm935 = vmor %vm933, %vm934
    %v936 = vsel %vm935, %v928, %v932
    %v937 = vand.u32 2147483647, %v870
    %vm938 = vcmp.eq.f32.partialorder %v937, 8.507059e+37
    %v939 = vand.u32 %v870, 2147483648
    %v940 = vor.u32 1.1754944e-38, %v939
    %v941 = vsel %vm938, %v940, %v936
    %v942 = vmul.f32 1.0, %v941
    %v943 = vrcp.pop %v871
    %v944 = vmul.f32 %v871, %v943
    %v945 = vsub.f32 1.0, %v944
    %v946 = vmul.f32 %v943, %v945
    %v947 = vadd.f32 %v943, %v946
    %vm948 = vweird.f32 %v871
    %vm949 = vweird.f32 %v943
    %vm950 = vmor %vm948, %vm949
    %v951 = vsel %vm950, %v943, %v947
    %v952 = vand.u32 2147483647, %v871
    %vm953 = vcmp.eq.f32.partialorder %v952, 8.507059e+37
    %v954 = vand.u32 %v871, 2147483648
    %v955 = vor.u32 1.1754944e-38, %v954
    %v956 = vsel %vm953, %v955, %v951
    %v957 = vmul.f32 1.0, %v956
    %v958 = vrcp.pop %v872
    %v959 = vmul.f32 %v872, %v958
    %v960 = vsub.f32 1.0, %v959
    %v961 = vmul.f32 %v958, %v960
    %v962 = vadd.f32 %v958, %v961
    %vm963 = vweird.f32 %v872
    %vm964 = vweird.f32 %v958
    %vm965 = vmor %vm963, %vm964
    %v966 = vsel %vm965, %v958, %v962
    %v967 = vand.u32 2147483647, %v872
    %vm968 = vcmp.eq.f32.partialorder %v967, 8.507059e+37
    %v969 = vand.u32 %v872, 2147483648
    %v970 = vor.u32 1.1754944e-38, %v969
    %v971 = vsel %vm968, %v970, %v966
    %v972 = vmul.f32 1.0, %v971
    %v973 = vrcp.pop %v873
    %v974 = vmul.f32 %v873, %v973
    %v975 = vsub.f32 1.0, %v974
    %v976 = vmul.f32 %v973, %v975
    %v977 = vadd.f32 %v973, %v976
    %vm978 = vweird.f32 %v873
    %vm979 = vweird.f32 %v973
    %vm980 = vmor %vm978, %vm979
    %v981 = vsel %vm980, %v973, %v977
    %v982 = vand.u32 2147483647, %v873
    %vm983 = vcmp.eq.f32.partialorder %v982, 8.507059e+37
    %v984 = vand.u32 %v873, 2147483648
    %v985 = vor.u32 1.1754944e-38, %v984
    %v986 = vsel %vm983, %v985, %v981
    %v987 = vmul.f32 1.0, %v986
    %v988 = vrcp.pop %v874
    %v989 = vmul.f32 %v874, %v988
    %v990 = vsub.f32 1.0, %v989
    %v991 = vmul.f32 %v988, %v990
    %v992 = vadd.f32 %v988, %v991
    %vm993 = vweird.f32 %v874
    %vm994 = vweird.f32 %v988
    %vm995 = vmor %vm993, %vm994
    %v996 = vsel %vm995, %v988, %v992
    %v997 = vand.u32 2147483647, %v874
    %vm998 = vcmp.eq.f32.partialorder %v997, 8.507059e+37
    %v999 = vand.u32 %v874, 2147483648
    %v1000 = vor.u32 1.1754944e-38, %v999
    %v1001 = vsel %vm998, %v1000, %v996
    %v1002 = vmul.f32 1.0, %v1001
    %v1003 = vrcp.pop %v875
    %v1004 = vmul.f32 %v875, %v1003
    %v1005 = vsub.f32 1.0, %v1004
    %v1006 = vmul.f32 %v1003, %v1005
    %v1007 = vadd.f32 %v1003, %v1006
    %vm1008 = vweird.f32 %v875
    %vm1009 = vweird.f32 %v1003
    %vm1010 = vmor %vm1008, %vm1009
    %v1011 = vsel %vm1010, %v1003, %v1007
    %v1012 = vand.u32 2147483647, %v875
    %vm1013 = vcmp.eq.f32.partialorder %v1012, 8.507059e+37
    %v1014 = vand.u32 %v875, 2147483648
    %v1015 = vor.u32 1.1754944e-38, %v1014
    %v1016 = vsel %vm1013, %v1015, %v1011
    %v1017 = vmul.f32 1.0, %v1016
    %v1018 = vrcp.pop %v876
    %v1019 = vmul.f32 %v876, %v1018
    %v1020 = vsub.f32 1.0, %v1019
    %v1021 = vmul.f32 %v1018, %v1020
    %v1022 = vadd.f32 %v1018, %v1021
    %vm1023 = vweird.f32 %v876
    %vm1024 = vweird.f32 %v1018
    %vm1025 = vmor %vm1023, %vm1024
    %v1026 = vsel %vm1025, %v1018, %v1022
    %v1027 = vand.u32 2147483647, %v876
    %vm1028 = vcmp.eq.f32.partialorder %v1027, 8.507059e+37
    %v1029 = vand.u32 %v876, 2147483648
    %v1030 = vor.u32 1.1754944e-38, %v1029
    %v1031 = vsel %vm1028, %v1030, %v1026
    %v1032 = vmul.f32 1.0, %v1031
    %v1033 = vrcp.pop %v877
    %v1034 = vmul.f32 %v877, %v1033
    %v1035 = vsub.f32 1.0, %v1034
    %v1036 = vmul.f32 %v1033, %v1035
    %v1037 = vadd.f32 %v1033, %v1036
    %vm1038 = vweird.f32 %v877
    %vm1039 = vweird.f32 %v1033
    %vm1040 = vmor %vm1038, %vm1039
    %v1041 = vsel %vm1040, %v1033, %v1037
    %v1042 = vand.u32 2147483647, %v877
    %vm1043 = vcmp.eq.f32.partialorder %v1042, 8.507059e+37
    %v1044 = vand.u32 %v877, 2147483648
    %v1045 = vor.u32 1.1754944e-38, %v1044
    %v1046 = vsel %vm1043, %v1045, %v1041
    %v1047 = vmul.f32 1.0, %v1046
    %v1048 = vrcp.pop %v878
    %v1049 = vmul.f32 %v878, %v1048
    %v1050 = vsub.f32 1.0, %v1049
    %v1051 = vmul.f32 %v1048, %v1050
    %v1052 = vadd.f32 %v1048, %v1051
    %vm1053 = vweird.f32 %v878
    %vm1054 = vweird.f32 %v1048
    %vm1055 = vmor %vm1053, %vm1054
    %v1056 = vsel %vm1055, %v1048, %v1052
    %v1057 = vand.u32 2147483647, %v878
    %vm1058 = vcmp.eq.f32.partialorder %v1057, 8.507059e+37
    %v1059 = vand.u32 %v878, 2147483648
    %v1060 = vor.u32 1.1754944e-38, %v1059
    %v1061 = vsel %vm1058, %v1060, %v1056
    %v1062 = vmul.f32 1.0, %v1061
    %v1063 = vrcp.pop %v879
    %v1064 = vmul.f32 %v879, %v1063
    %v1065 = vsub.f32 1.0, %v1064
    %v1066 = vmul.f32 %v1063, %v1065
    %v1067 = vadd.f32 %v1063, %v1066
    %vm1068 = vweird.f32 %v879
    %vm1069 = vweird.f32 %v1063
    %vm1070 = vmor %vm1068, %vm1069
    %v1071 = vsel %vm1070, %v1063, %v1067
    %v1072 = vand.u32 2147483647, %v879
    %vm1073 = vcmp.eq.f32.partialorder %v1072, 8.507059e+37
    %v1074 = vand.u32 %v879, 2147483648
    %v1075 = vor.u32 1.1754944e-38, %v1074
    %v1076 = vsel %vm1073, %v1075, %v1071
    %v1077 = vmul.f32 1.0, %v1076
    %v1078 = vrcp.pop %v880
    %v1079 = vmul.f32 %v880, %v1078
    %v1080 = vsub.f32 1.0, %v1079
    %v1081 = vmul.f32 %v1078, %v1080
    %v1082 = vadd.f32 %v1078, %v1081
    %vm1083 = vweird.f32 %v880
    %vm1084 = vweird.f32 %v1078
    %vm1085 = vmor %vm1083, %vm1084
    %v1086 = vsel %vm1085, %v1078, %v1082
    %v1087 = vand.u32 2147483647, %v880
    %vm1088 = vcmp.eq.f32.partialorder %v1087, 8.507059e+37
    %v1089 = vand.u32 %v880, 2147483648
    %v1090 = vor.u32 1.1754944e-38, %v1089
    %v1091 = vsel %vm1088, %v1090, %v1086
    %v1092 = vmul.f32 1.0, %v1091
    %v1093 = vrcp.pop %v881
    %v1094 = vmul.f32 %v881, %v1093
    %v1095 = vsub.f32 1.0, %v1094
    %v1096 = vmul.f32 %v1093, %v1095
    %v1097 = vadd.f32 %v1093, %v1096
    %vm1098 = vweird.f32 %v881
    %vm1099 = vweird.f32 %v1093
    %vm1100 = vmor %vm1098, %vm1099
    %v1101 = vsel %vm1100, %v1093, %v1097
    %v1102 = vand.u32 2147483647, %v881
    %vm1103 = vcmp.eq.f32.partialorder %v1102, 8.507059e+37
    %v1104 = vand.u32 %v881, 2147483648
    %v1105 = vor.u32 1.1754944e-38, %v1104
    %v1106 = vsel %vm1103, %v1105, %v1101
    %v1107 = vmul.f32 1.0, %v1106
    %v1108 = vrcp.pop %v882
    %v1109 = vmul.f32 %v882, %v1108
    %v1110 = vsub.f32 1.0, %v1109
    %v1111 = vmul.f32 %v1108, %v1110
    %v1112 = vadd.f32 %v1108, %v1111
    %vm1113 = vweird.f32 %v882
    %vm1114 = vweird.f32 %v1108
    %vm1115 = vmor %vm1113, %vm1114
    %v1116 = vsel %vm1115, %v1108, %v1112
    %v1117 = vand.u32 2147483647, %v882
    %vm1118 = vcmp.eq.f32.partialorder %v1117, 8.507059e+37
    %v1119 = vand.u32 %v882, 2147483648
    %v1120 = vor.u32 1.1754944e-38, %v1119
    %v1121 = vsel %vm1118, %v1120, %v1116
    %v1122 = vmul.f32 1.0, %v1121
    %v1123 = vtanh.pop %v526
    %v1124 = vtanh.pop %v527
    %v1125 = vtanh.pop %v528
    %v1126 = vtanh.pop %v529
    %v1127 = vtanh.pop %v530
    %v1128 = vtanh.pop %v531
    %v1129 = vtanh.pop %v532
    %v1130 = vtanh.pop %v533
    %v1131 = vtanh.pop %v534
    %v1132 = vtanh.pop %v535
    %v1133 = vtanh.pop %v536
    %v1134 = vtanh.pop %v537
    %v1135 = vtanh.pop %v538
    %v1136 = vtanh.pop %v539
    %v1137 = vtanh.pop %v540
    %v1138 = vtanh.pop %v541
    %v1139 = vmul.f32 %v897, %v179
    %v1140 = vmul.f32 %v912, %v180
    %v1141 = vmul.f32 %v927, %v181
    %v1142 = vmul.f32 %v942, %v182
    %v1143 = vmul.f32 %v957, %v183
    %v1144 = vmul.f32 %v972, %v184
    %v1145 = vmul.f32 %v987, %v185
    %v1146 = vmul.f32 %v1002, %v186
    %v1147 = vmul.f32 %v1017, %v187
    %v1148 = vmul.f32 %v1032, %v188
    %v1149 = vmul.f32 %v1047, %v189
    %v1150 = vmul.f32 %v1062, %v190
    %v1151 = vmul.f32 %v1077, %v191
    %v1152 = vmul.f32 %v1092, %v192
    %v1153 = vmul.f32 %v1107, %v193
    %v1154 = vmul.f32 %v1122, %v194
    %1171 = vrot.lane.b32.xlu0 %v1123, 96
    %v1172 = vpop.permute.xlu0 %1171
    %1173 = vrot.lane.b32.xlu0 %v1124, 96
    %v1174 = vpop.permute.xlu0 %1173
    %1175 = vrot.lane.b32.xlu0 %v1125, 96
    %v1176 = vpop.permute.xlu0 %1175
    %1177 = vrot.lane.b32.xlu0 %v1126, 96
    %v1178 = vpop.permute.xlu0 %1177
    %1179 = vrot.lane.b32.xlu0 %v1127, 96
    %v1180 = vpop.permute.xlu0 %1179
    %1181 = vrot.lane.b32.xlu0 %v1128, 96
    %v1182 = vpop.permute.xlu0 %1181
    %1183 = vrot.lane.b32.xlu0 %v1129, 96
    %v1184 = vpop.permute.xlu0 %1183
    %1185 = vrot.lane.b32.xlu0 %v1130, 96
    %v1186 = vpop.permute.xlu0 %1185
    %1187 = vrot.lane.b32.xlu0 %v1131, 96
    %v1188 = vpop.permute.xlu0 %1187
    %1189 = vrot.lane.b32.xlu0 %v1132, 96
    %v1190 = vpop.permute.xlu0 %1189
    %1191 = vrot.lane.b32.xlu0 %v1133, 96
    %v1192 = vpop.permute.xlu0 %1191
    %1193 = vrot.lane.b32.xlu0 %v1134, 96
    %v1194 = vpop.permute.xlu0 %1193
    %1195 = vrot.lane.b32.xlu0 %v1135, 96
    %v1196 = vpop.permute.xlu0 %1195
    %1197 = vrot.lane.b32.xlu0 %v1136, 96
    %v1198 = vpop.permute.xlu0 %1197
    %1199 = vrot.lane.b32.xlu0 %v1137, 96
    %v1200 = vpop.permute.xlu0 %1199
    %1201 = vrot.lane.b32.xlu0 %v1138, 96
    %v1202 = vpop.permute.xlu0 %1201
    %v1219 = vmul.f32 %v897, %v1172
    %v1220 = vmul.f32 %v912, %v1174
    %v1221 = vmul.f32 %v927, %v1176
    %v1222 = vmul.f32 %v942, %v1178
    %v1223 = vmul.f32 %v957, %v1180
    %v1224 = vmul.f32 %v972, %v1182
    %v1225 = vmul.f32 %v987, %v1184
    %v1226 = vmul.f32 %v1002, %v1186
    %v1227 = vmul.f32 %v1017, %v1188
    %v1228 = vmul.f32 %v1032, %v1190
    %v1229 = vmul.f32 %v1047, %v1192
    %v1230 = vmul.f32 %v1062, %v1194
    %v1231 = vmul.f32 %v1077, %v1196
    %v1232 = vmul.f32 %v1092, %v1198
    %v1233 = vmul.f32 %v1107, %v1200
    %v1234 = vmul.f32 %v1122, %v1202
    %1251 = vrot.lane.b32.xlu0 %v1219, 16
    %v1252 = vpop.permute.xlu0 %1251
    %1253 = vrot.lane.b32.xlu0 %v1220, 16
    %v1254 = vpop.permute.xlu0 %1253
    %1255 = vrot.lane.b32.xlu0 %v1221, 16
    %v1256 = vpop.permute.xlu0 %1255
    %1257 = vrot.lane.b32.xlu0 %v1222, 16
    %v1258 = vpop.permute.xlu0 %1257
    %1259 = vrot.lane.b32.xlu0 %v1223, 16
    %v1260 = vpop.permute.xlu0 %1259
    %1261 = vrot.lane.b32.xlu0 %v1224, 16
    %v1262 = vpop.permute.xlu0 %1261
    %1263 = vrot.lane.b32.xlu0 %v1225, 16
    %v1264 = vpop.permute.xlu0 %1263
    %1265 = vrot.lane.b32.xlu0 %v1226, 16
    %v1266 = vpop.permute.xlu0 %1265
    %1267 = vrot.lane.b32.xlu0 %v1227, 16
    %v1268 = vpop.permute.xlu0 %1267
    %1269 = vrot.lane.b32.xlu0 %v1228, 16
    %v1270 = vpop.permute.xlu0 %1269
    %1271 = vrot.lane.b32.xlu0 %v1229, 16
    %v1272 = vpop.permute.xlu0 %1271
    %1273 = vrot.lane.b32.xlu0 %v1230, 16
    %v1274 = vpop.permute.xlu0 %1273
    %1275 = vrot.lane.b32.xlu0 %v1231, 16
    %v1276 = vpop.permute.xlu0 %1275
    %1277 = vrot.lane.b32.xlu0 %v1232, 16
    %v1278 = vpop.permute.xlu0 %1277
    %1279 = vrot.lane.b32.xlu0 %v1233, 16
    %v1280 = vpop.permute.xlu0 %1279
    %1281 = vrot.lane.b32.xlu0 %v1234, 16
    %v1282 = vpop.permute.xlu0 %1281
    %v1299 = vadd.f32 %v1139, %v1252
    %v1300 = vadd.f32 %v1140, %v1254
    %v1301 = vadd.f32 %v1141, %v1256
    %v1302 = vadd.f32 %v1142, %v1258
    %v1303 = vadd.f32 %v1143, %v1260
    %v1304 = vadd.f32 %v1144, %v1262
    %v1305 = vadd.f32 %v1145, %v1264
    %v1306 = vadd.f32 %v1146, %v1266
    %v1307 = vadd.f32 %v1147, %v1268
    %v1308 = vadd.f32 %v1148, %v1270
    %v1309 = vadd.f32 %v1149, %v1272
    %v1310 = vadd.f32 %v1150, %v1274
    %v1311 = vadd.f32 %v1151, %v1276
    %v1312 = vadd.f32 %v1152, %v1278
    %v1313 = vadd.f32 %v1153, %v1280
    %v1314 = vadd.f32 %v1154, %v1282
    %v1315 = vtanh.pop %v1299
    %v1316 = vtanh.pop %v1300
    %v1317 = vtanh.pop %v1301
    %v1318 = vtanh.pop %v1302
    %v1319 = vtanh.pop %v1303
    %v1320 = vtanh.pop %v1304
    %v1321 = vtanh.pop %v1305
    %v1322 = vtanh.pop %v1306
    %v1323 = vtanh.pop %v1307
    %v1324 = vtanh.pop %v1308
    %v1325 = vtanh.pop %v1309
    %v1326 = vtanh.pop %v1310
    %v1327 = vtanh.pop %v1311
    %v1328 = vtanh.pop %v1312
    %v1329 = vtanh.pop %v1313
    %v1330 = vtanh.pop %v1314
    %1347 = vrot.lane.b32.xlu0 %v1315, 32
    %v1348 = vpop.permute.xlu0 %1347
    %1349 = vrot.lane.b32.xlu0 %v1316, 32
    %v1350 = vpop.permute.xlu0 %1349
    %1351 = vrot.lane.b32.xlu0 %v1317, 32
    %v1352 = vpop.permute.xlu0 %1351
    %1353 = vrot.lane.b32.xlu0 %v1318, 32
    %v1354 = vpop.permute.xlu0 %1353
    %1355 = vrot.lane.b32.xlu0 %v1319, 32
    %v1356 = vpop.permute.xlu0 %1355
    %1357 = vrot.lane.b32.xlu0 %v1320, 32
    %v1358 = vpop.permute.xlu0 %1357
    %1359 = vrot.lane.b32.xlu0 %v1321, 32
    %v1360 = vpop.permute.xlu0 %1359
    %1361 = vrot.lane.b32.xlu0 %v1322, 32
    %v1362 = vpop.permute.xlu0 %1361
    %1363 = vrot.lane.b32.xlu0 %v1323, 32
    %v1364 = vpop.permute.xlu0 %1363
    %1365 = vrot.lane.b32.xlu0 %v1324, 32
    %v1366 = vpop.permute.xlu0 %1365
    %1367 = vrot.lane.b32.xlu0 %v1325, 32
    %v1368 = vpop.permute.xlu0 %1367
    %1369 = vrot.lane.b32.xlu0 %v1326, 32
    %v1370 = vpop.permute.xlu0 %1369
    %1371 = vrot.lane.b32.xlu0 %v1327, 32
    %v1372 = vpop.permute.xlu0 %1371
    %1373 = vrot.lane.b32.xlu0 %v1328, 32
    %v1374 = vpop.permute.xlu0 %1373
    %1375 = vrot.lane.b32.xlu0 %v1329, 32
    %v1376 = vpop.permute.xlu0 %1375
    %1377 = vrot.lane.b32.xlu0 %v1330, 32
    %v1378 = vpop.permute.xlu0 %1377
    %v1395 = vmul.f32 %v897, %v1348
    %v1396 = vmul.f32 %v912, %v1350
    %v1397 = vmul.f32 %v927, %v1352
    %v1398 = vmul.f32 %v942, %v1354
    %v1399 = vmul.f32 %v957, %v1356
    %v1400 = vmul.f32 %v972, %v1358
    %v1401 = vmul.f32 %v987, %v1360
    %v1402 = vmul.f32 %v1002, %v1362
    %v1403 = vmul.f32 %v1017, %v1364
    %v1404 = vmul.f32 %v1032, %v1366
    %v1405 = vmul.f32 %v1047, %v1368
    %v1406 = vmul.f32 %v1062, %v1370
    %v1407 = vmul.f32 %v1077, %v1372
    %v1408 = vmul.f32 %v1092, %v1374
    %v1409 = vmul.f32 %v1107, %v1376
    %v1410 = vmul.f32 %v1122, %v1378
    %v1411 = vpack.c.bf16 %v1395, %v1395
    %v1412 = vpack.c.bf16 %v1396, %v1396
    %v1413 = vpack.c.bf16 %v1397, %v1397
    %v1414 = vpack.c.bf16 %v1398, %v1398
    %v1415 = vpack.c.bf16 %v1399, %v1399
    %v1416 = vpack.c.bf16 %v1400, %v1400
    %v1417 = vpack.c.bf16 %v1401, %v1401
    %v1418 = vpack.c.bf16 %v1402, %v1402
    %v1419 = vpack.c.bf16 %v1403, %v1403
    %v1420 = vpack.c.bf16 %v1404, %v1404
    %v1421 = vpack.c.bf16 %v1405, %v1405
    %v1422 = vpack.c.bf16 %v1406, %v1406
    %v1423 = vpack.c.bf16 %v1407, %v1407
    %v1424 = vpack.c.bf16 %v1408, %v1408
    %v1425 = vpack.c.bf16 %v1409, %v1409
    %v1426 = vpack.c.bf16 %v1410, %v1410
    %v1427 = vxor.u32 %v803, 2147483648
    %v1428 = vxor.u32 %v804, 2147483648
    %v1429 = vxor.u32 %v805, 2147483648
    %v1430 = vxor.u32 %v806, 2147483648
    %v1431 = vxor.u32 %v807, 2147483648
    %v1432 = vxor.u32 %v808, 2147483648
    %v1433 = vxor.u32 %v809, 2147483648
    %v1434 = vxor.u32 %v810, 2147483648
    %v1435 = vxor.u32 %v811, 2147483648
    %v1436 = vxor.u32 %v812, 2147483648
    %v1437 = vxor.u32 %v813, 2147483648
    %v1438 = vxor.u32 %v814, 2147483648
    %v1439 = vxor.u32 %v815, 2147483648
    %v1440 = vxor.u32 %v816, 2147483648
    %v1441 = vxor.u32 %v817, 2147483648
    %v1442 = vxor.u32 %v818, 2147483648
    %v1443 = vmul.f32 %v1427, 1.442695
    %v1444 = vpow.pop %v1443
    %v1445 = vmul.f32 %v1428, 1.442695
    %v1446 = vpow.pop %v1445
    %v1447 = vmul.f32 %v1429, 1.442695
    %v1448 = vpow.pop %v1447
    %v1449 = vmul.f32 %v1430, 1.442695
    %v1450 = vpow.pop %v1449
    %v1451 = vmul.f32 %v1431, 1.442695
    %v1452 = vpow.pop %v1451
    %v1453 = vmul.f32 %v1432, 1.442695
    %v1454 = vpow.pop %v1453
    %v1455 = vmul.f32 %v1433, 1.442695
    %v1456 = vpow.pop %v1455
    %v1457 = vmul.f32 %v1434, 1.442695
    %v1458 = vpow.pop %v1457
    %v1459 = vmul.f32 %v1435, 1.442695
    %v1460 = vpow.pop %v1459
    %v1461 = vmul.f32 %v1436, 1.442695
    %v1462 = vpow.pop %v1461
    %v1463 = vmul.f32 %v1437, 1.442695
    %v1464 = vpow.pop %v1463
    %v1465 = vmul.f32 %v1438, 1.442695
    %v1466 = vpow.pop %v1465
    %v1467 = vmul.f32 %v1439, 1.442695
    %v1468 = vpow.pop %v1467
    %v1469 = vmul.f32 %v1440, 1.442695
    %v1470 = vpow.pop %v1469
    %v1471 = vmul.f32 %v1441, 1.442695
    %v1472 = vpow.pop %v1471
    %v1473 = vmul.f32 %v1442, 1.442695
    %v1474 = vpow.pop %v1473
    %v1475 = vadd.f32 %v1444, 1.0
    %v1476 = vadd.f32 %v1446, 1.0
    %v1477 = vadd.f32 %v1448, 1.0
    %v1478 = vadd.f32 %v1450, 1.0
    %v1479 = vadd.f32 %v1452, 1.0
    %v1480 = vadd.f32 %v1454, 1.0
    %v1481 = vadd.f32 %v1456, 1.0
    %v1482 = vadd.f32 %v1458, 1.0
    %v1483 = vadd.f32 %v1460, 1.0
    %v1484 = vadd.f32 %v1462, 1.0
    %v1485 = vadd.f32 %v1464, 1.0
    %v1486 = vadd.f32 %v1466, 1.0
    %v1487 = vadd.f32 %v1468, 1.0
    %v1488 = vadd.f32 %v1470, 1.0
    %v1489 = vadd.f32 %v1472, 1.0
    %v1490 = vadd.f32 %v1474, 1.0
    %v1491 = vrcp.pop %v1475
    %v1492 = vmul.f32 %v1475, %v1491
    %v1493 = vsub.f32 1.0, %v1492
    %v1494 = vmul.f32 %v1491, %v1493
    %v1495 = vadd.f32 %v1491, %v1494
    %vm1496 = vweird.f32 %v1475
    %vm1497 = vweird.f32 %v1491
    %vm1498 = vmor %vm1496, %vm1497
    %v1499 = vsel %vm1498, %v1491, %v1495
    %v1500 = vand.u32 2147483647, %v1475
    %vm1501 = vcmp.eq.f32.partialorder %v1500, 8.507059e+37
    %v1502 = vand.u32 %v1475, 2147483648
    %v1503 = vor.u32 1.1754944e-38, %v1502
    %v1504 = vsel %vm1501, %v1503, %v1499
    %v1505 = vmul.f32 1.0, %v1504
    %v1506 = vrcp.pop %v1476
    %v1507 = vmul.f32 %v1476, %v1506
    %v1508 = vsub.f32 1.0, %v1507
    %v1509 = vmul.f32 %v1506, %v1508
    %v1510 = vadd.f32 %v1506, %v1509
    %vm1511 = vweird.f32 %v1476
    %vm1512 = vweird.f32 %v1506
    %vm1513 = vmor %vm1511, %vm1512
    %v1514 = vsel %vm1513, %v1506, %v1510
    %v1515 = vand.u32 2147483647, %v1476
    %vm1516 = vcmp.eq.f32.partialorder %v1515, 8.507059e+37
    %v1517 = vand.u32 %v1476, 2147483648
    %v1518 = vor.u32 1.1754944e-38, %v1517
    %v1519 = vsel %vm1516, %v1518, %v1514
    %v1520 = vmul.f32 1.0, %v1519
    %v1521 = vrcp.pop %v1477
    %v1522 = vmul.f32 %v1477, %v1521
    %v1523 = vsub.f32 1.0, %v1522
    %v1524 = vmul.f32 %v1521, %v1523
    %v1525 = vadd.f32 %v1521, %v1524
    %vm1526 = vweird.f32 %v1477
    %vm1527 = vweird.f32 %v1521
    %vm1528 = vmor %vm1526, %vm1527
    %v1529 = vsel %vm1528, %v1521, %v1525
    %v1530 = vand.u32 2147483647, %v1477
    %vm1531 = vcmp.eq.f32.partialorder %v1530, 8.507059e+37
    %v1532 = vand.u32 %v1477, 2147483648
    %v1533 = vor.u32 1.1754944e-38, %v1532
    %v1534 = vsel %vm1531, %v1533, %v1529
    %v1535 = vmul.f32 1.0, %v1534
    %v1536 = vrcp.pop %v1478
    %v1537 = vmul.f32 %v1478, %v1536
    %v1538 = vsub.f32 1.0, %v1537
    %v1539 = vmul.f32 %v1536, %v1538
    %v1540 = vadd.f32 %v1536, %v1539
    %vm1541 = vweird.f32 %v1478
    %vm1542 = vweird.f32 %v1536
    %vm1543 = vmor %vm1541, %vm1542
    %v1544 = vsel %vm1543, %v1536, %v1540
    %v1545 = vand.u32 2147483647, %v1478
    %vm1546 = vcmp.eq.f32.partialorder %v1545, 8.507059e+37
    %v1547 = vand.u32 %v1478, 2147483648
    %v1548 = vor.u32 1.1754944e-38, %v1547
    %v1549 = vsel %vm1546, %v1548, %v1544
    %v1550 = vmul.f32 1.0, %v1549
    %v1551 = vrcp.pop %v1479
    %v1552 = vmul.f32 %v1479, %v1551
    %v1553 = vsub.f32 1.0, %v1552
    %v1554 = vmul.f32 %v1551, %v1553
    %v1555 = vadd.f32 %v1551, %v1554
    %vm1556 = vweird.f32 %v1479
    %vm1557 = vweird.f32 %v1551
    %vm1558 = vmor %vm1556, %vm1557
    %v1559 = vsel %vm1558, %v1551, %v1555
    %v1560 = vand.u32 2147483647, %v1479
    %vm1561 = vcmp.eq.f32.partialorder %v1560, 8.507059e+37
    %v1562 = vand.u32 %v1479, 2147483648
    %v1563 = vor.u32 1.1754944e-38, %v1562
    %v1564 = vsel %vm1561, %v1563, %v1559
    %v1565 = vmul.f32 1.0, %v1564
    %v1566 = vrcp.pop %v1480
    %v1567 = vmul.f32 %v1480, %v1566
    %v1568 = vsub.f32 1.0, %v1567
    %v1569 = vmul.f32 %v1566, %v1568
    %v1570 = vadd.f32 %v1566, %v1569
    %vm1571 = vweird.f32 %v1480
    %vm1572 = vweird.f32 %v1566
    %vm1573 = vmor %vm1571, %vm1572
    %v1574 = vsel %vm1573, %v1566, %v1570
    %v1575 = vand.u32 2147483647, %v1480
    %vm1576 = vcmp.eq.f32.partialorder %v1575, 8.507059e+37
    %v1577 = vand.u32 %v1480, 2147483648
    %v1578 = vor.u32 1.1754944e-38, %v1577
    %v1579 = vsel %vm1576, %v1578, %v1574
    %v1580 = vmul.f32 1.0, %v1579
    %v1581 = vrcp.pop %v1481
    %v1582 = vmul.f32 %v1481, %v1581
    %v1583 = vsub.f32 1.0, %v1582
    %v1584 = vmul.f32 %v1581, %v1583
    %v1585 = vadd.f32 %v1581, %v1584
    %vm1586 = vweird.f32 %v1481
    %vm1587 = vweird.f32 %v1581
    %vm1588 = vmor %vm1586, %vm1587
    %v1589 = vsel %vm1588, %v1581, %v1585
    %v1590 = vand.u32 2147483647, %v1481
    %vm1591 = vcmp.eq.f32.partialorder %v1590, 8.507059e+37
    %v1592 = vand.u32 %v1481, 2147483648
    %v1593 = vor.u32 1.1754944e-38, %v1592
    %v1594 = vsel %vm1591, %v1593, %v1589
    %v1595 = vmul.f32 1.0, %v1594
    %v1596 = vrcp.pop %v1482
    %v1597 = vmul.f32 %v1482, %v1596
    %v1598 = vsub.f32 1.0, %v1597
    %v1599 = vmul.f32 %v1596, %v1598
    %v1600 = vadd.f32 %v1596, %v1599
    %vm1601 = vweird.f32 %v1482
    %vm1602 = vweird.f32 %v1596
    %vm1603 = vmor %vm1601, %vm1602
    %v1604 = vsel %vm1603, %v1596, %v1600
    %v1605 = vand.u32 2147483647, %v1482
    %vm1606 = vcmp.eq.f32.partialorder %v1605, 8.507059e+37
    %v1607 = vand.u32 %v1482, 2147483648
    %v1608 = vor.u32 1.1754944e-38, %v1607
    %v1609 = vsel %vm1606, %v1608, %v1604
    %v1610 = vmul.f32 1.0, %v1609
    %v1611 = vrcp.pop %v1483
    %v1612 = vmul.f32 %v1483, %v1611
    %v1613 = vsub.f32 1.0, %v1612
    %v1614 = vmul.f32 %v1611, %v1613
    %v1615 = vadd.f32 %v1611, %v1614
    %vm1616 = vweird.f32 %v1483
    %vm1617 = vweird.f32 %v1611
    %vm1618 = vmor %vm1616, %vm1617
    %v1619 = vsel %vm1618, %v1611, %v1615
    %v1620 = vand.u32 2147483647, %v1483
    %vm1621 = vcmp.eq.f32.partialorder %v1620, 8.507059e+37
    %v1622 = vand.u32 %v1483, 2147483648
    %v1623 = vor.u32 1.1754944e-38, %v1622
    %v1624 = vsel %vm1621, %v1623, %v1619
    %v1625 = vmul.f32 1.0, %v1624
    %v1626 = vrcp.pop %v1484
    %v1627 = vmul.f32 %v1484, %v1626
    %v1628 = vsub.f32 1.0, %v1627
    %v1629 = vmul.f32 %v1626, %v1628
    %v1630 = vadd.f32 %v1626, %v1629
    %vm1631 = vweird.f32 %v1484
    %vm1632 = vweird.f32 %v1626
    %vm1633 = vmor %vm1631, %vm1632
    %v1634 = vsel %vm1633, %v1626, %v1630
    %v1635 = vand.u32 2147483647, %v1484
    %vm1636 = vcmp.eq.f32.partialorder %v1635, 8.507059e+37
    %v1637 = vand.u32 %v1484, 2147483648
    %v1638 = vor.u32 1.1754944e-38, %v1637
    %v1639 = vsel %vm1636, %v1638, %v1634
    %v1640 = vmul.f32 1.0, %v1639
    %v1641 = vrcp.pop %v1485
    %v1642 = vmul.f32 %v1485, %v1641
    %v1643 = vsub.f32 1.0, %v1642
    %v1644 = vmul.f32 %v1641, %v1643
    %v1645 = vadd.f32 %v1641, %v1644
    %vm1646 = vweird.f32 %v1485
    %vm1647 = vweird.f32 %v1641
    %vm1648 = vmor %vm1646, %vm1647
    %v1649 = vsel %vm1648, %v1641, %v1645
    %v1650 = vand.u32 2147483647, %v1485
    %vm1651 = vcmp.eq.f32.partialorder %v1650, 8.507059e+37
    %v1652 = vand.u32 %v1485, 2147483648
    %v1653 = vor.u32 1.1754944e-38, %v1652
    %v1654 = vsel %vm1651, %v1653, %v1649
    %v1655 = vmul.f32 1.0, %v1654
    %v1656 = vrcp.pop %v1486
    %v1657 = vmul.f32 %v1486, %v1656
    %v1658 = vsub.f32 1.0, %v1657
    %v1659 = vmul.f32 %v1656, %v1658
    %v1660 = vadd.f32 %v1656, %v1659
    %vm1661 = vweird.f32 %v1486
    %vm1662 = vweird.f32 %v1656
    %vm1663 = vmor %vm1661, %vm1662
    %v1664 = vsel %vm1663, %v1656, %v1660
    %v1665 = vand.u32 2147483647, %v1486
    %vm1666 = vcmp.eq.f32.partialorder %v1665, 8.507059e+37
    %v1667 = vand.u32 %v1486, 2147483648
    %v1668 = vor.u32 1.1754944e-38, %v1667
    %v1669 = vsel %vm1666, %v1668, %v1664
    %v1670 = vmul.f32 1.0, %v1669
    %v1671 = vrcp.pop %v1487
    %v1672 = vmul.f32 %v1487, %v1671
    %v1673 = vsub.f32 1.0, %v1672
    %v1674 = vmul.f32 %v1671, %v1673
    %v1675 = vadd.f32 %v1671, %v1674
    %vm1676 = vweird.f32 %v1487
    %vm1677 = vweird.f32 %v1671
    %vm1678 = vmor %vm1676, %vm1677
    %v1679 = vsel %vm1678, %v1671, %v1675
    %v1680 = vand.u32 2147483647, %v1487
    %vm1681 = vcmp.eq.f32.partialorder %v1680, 8.507059e+37
    %v1682 = vand.u32 %v1487, 2147483648
    %v1683 = vor.u32 1.1754944e-38, %v1682
    %v1684 = vsel %vm1681, %v1683, %v1679
    %v1685 = vmul.f32 1.0, %v1684
    %v1686 = vrcp.pop %v1488
    %v1687 = vmul.f32 %v1488, %v1686
    %v1688 = vsub.f32 1.0, %v1687
    %v1689 = vmul.f32 %v1686, %v1688
    %v1690 = vadd.f32 %v1686, %v1689
    %vm1691 = vweird.f32 %v1488
    %vm1692 = vweird.f32 %v1686
    %vm1693 = vmor %vm1691, %vm1692
    %v1694 = vsel %vm1693, %v1686, %v1690
    %v1695 = vand.u32 2147483647, %v1488
    %vm1696 = vcmp.eq.f32.partialorder %v1695, 8.507059e+37
    %v1697 = vand.u32 %v1488, 2147483648
    %v1698 = vor.u32 1.1754944e-38, %v1697
    %v1699 = vsel %vm1696, %v1698, %v1694
    %v1700 = vmul.f32 1.0, %v1699
    %v1701 = vrcp.pop %v1489
    %v1702 = vmul.f32 %v1489, %v1701
    %v1703 = vsub.f32 1.0, %v1702
    %v1704 = vmul.f32 %v1701, %v1703
    %v1705 = vadd.f32 %v1701, %v1704
    %vm1706 = vweird.f32 %v1489
    %vm1707 = vweird.f32 %v1701
    %vm1708 = vmor %vm1706, %vm1707
    %v1709 = vsel %vm1708, %v1701, %v1705
    %v1710 = vand.u32 2147483647, %v1489
    %vm1711 = vcmp.eq.f32.partialorder %v1710, 8.507059e+37
    %v1712 = vand.u32 %v1489, 2147483648
    %v1713 = vor.u32 1.1754944e-38, %v1712
    %v1714 = vsel %vm1711, %v1713, %v1709
    %v1715 = vmul.f32 1.0, %v1714
    %v1716 = vrcp.pop %v1490
    %v1717 = vmul.f32 %v1490, %v1716
    %v1718 = vsub.f32 1.0, %v1717
    %v1719 = vmul.f32 %v1716, %v1718
    %v1720 = vadd.f32 %v1716, %v1719
    %vm1721 = vweird.f32 %v1490
    %vm1722 = vweird.f32 %v1716
    %vm1723 = vmor %vm1721, %vm1722
    %v1724 = vsel %vm1723, %v1716, %v1720
    %v1725 = vand.u32 2147483647, %v1490
    %vm1726 = vcmp.eq.f32.partialorder %v1725, 8.507059e+37
    %v1727 = vand.u32 %v1490, 2147483648
    %v1728 = vor.u32 1.1754944e-38, %v1727
    %v1729 = vsel %vm1726, %v1728, %v1724
    %v1730 = vmul.f32 1.0, %v1729
    %v1731 = vtanh.pop %v803
    %v1732 = vtanh.pop %v804
    %v1733 = vtanh.pop %v805
    %v1734 = vtanh.pop %v806
    %v1735 = vtanh.pop %v807
    %v1736 = vtanh.pop %v808
    %v1737 = vtanh.pop %v809
    %v1738 = vtanh.pop %v810
    %v1739 = vtanh.pop %v811
    %v1740 = vtanh.pop %v812
    %v1741 = vtanh.pop %v813
    %v1742 = vtanh.pop %v814
    %v1743 = vtanh.pop %v815
    %v1744 = vtanh.pop %v816
    %v1745 = vtanh.pop %v817
    %v1746 = vtanh.pop %v818
    %v1747 = vmul.f32 %v1505, %v211
    %v1748 = vmul.f32 %v1520, %v212
    %v1749 = vmul.f32 %v1535, %v213
    %v1750 = vmul.f32 %v1550, %v214
    %v1751 = vmul.f32 %v1565, %v215
    %v1752 = vmul.f32 %v1580, %v216
    %v1753 = vmul.f32 %v1595, %v217
    %v1754 = vmul.f32 %v1610, %v218
    %v1755 = vmul.f32 %v1625, %v219
    %v1756 = vmul.f32 %v1640, %v220
    %v1757 = vmul.f32 %v1655, %v221
    %v1758 = vmul.f32 %v1670, %v222
    %v1759 = vmul.f32 %v1685, %v223
    %v1760 = vmul.f32 %v1700, %v224
    %v1761 = vmul.f32 %v1715, %v225
    %v1762 = vmul.f32 %v1730, %v226
    %1779 = vrot.lane.b32.xlu0 %v1731, 96
    %v1780 = vpop.permute.xlu0 %1779
    %1781 = vrot.lane.b32.xlu0 %v1732, 96
    %v1782 = vpop.permute.xlu0 %1781
    %1783 = vrot.lane.b32.xlu0 %v1733, 96
    %v1784 = vpop.permute.xlu0 %1783
    %1785 = vrot.lane.b32.xlu0 %v1734, 96
    %v1786 = vpop.permute.xlu0 %1785
    %1787 = vrot.lane.b32.xlu0 %v1735, 96
    %v1788 = vpop.permute.xlu0 %1787
    %1789 = vrot.lane.b32.xlu0 %v1736, 96
    %v1790 = vpop.permute.xlu0 %1789
    %1791 = vrot.lane.b32.xlu0 %v1737, 96
    %v1792 = vpop.permute.xlu0 %1791
    %1793 = vrot.lane.b32.xlu0 %v1738, 96
    %v1794 = vpop.permute.xlu0 %1793
    %1795 = vrot.lane.b32.xlu0 %v1739, 96
    %v1796 = vpop.permute.xlu0 %1795
    %1797 = vrot.lane.b32.xlu0 %v1740, 96
    %v1798 = vpop.permute.xlu0 %1797
    %1799 = vrot.lane.b32.xlu0 %v1741, 96
    %v1800 = vpop.permute.xlu0 %1799
    %1801 = vrot.lane.b32.xlu0 %v1742, 96
    %v1802 = vpop.permute.xlu0 %1801
    %1803 = vrot.lane.b32.xlu0 %v1743, 96
    %v1804 = vpop.permute.xlu0 %1803
    %1805 = vrot.lane.b32.xlu0 %v1744, 96
    %v1806 = vpop.permute.xlu0 %1805
    %1807 = vrot.lane.b32.xlu0 %v1745, 96
    %v1808 = vpop.permute.xlu0 %1807
    %1809 = vrot.lane.b32.xlu0 %v1746, 96
    %v1810 = vpop.permute.xlu0 %1809
    %v1827 = vmul.f32 %v1505, %v1780
    %v1828 = vmul.f32 %v1520, %v1782
    %v1829 = vmul.f32 %v1535, %v1784
    %v1830 = vmul.f32 %v1550, %v1786
    %v1831 = vmul.f32 %v1565, %v1788
    %v1832 = vmul.f32 %v1580, %v1790
    %v1833 = vmul.f32 %v1595, %v1792
    %v1834 = vmul.f32 %v1610, %v1794
    %v1835 = vmul.f32 %v1625, %v1796
    %v1836 = vmul.f32 %v1640, %v1798
    %v1837 = vmul.f32 %v1655, %v1800
    %v1838 = vmul.f32 %v1670, %v1802
    %v1839 = vmul.f32 %v1685, %v1804
    %v1840 = vmul.f32 %v1700, %v1806
    %v1841 = vmul.f32 %v1715, %v1808
    %v1842 = vmul.f32 %v1730, %v1810
    %1859 = vrot.lane.b32.xlu0 %v1827, 16
    %v1860 = vpop.permute.xlu0 %1859
    %1861 = vrot.lane.b32.xlu0 %v1828, 16
    %v1862 = vpop.permute.xlu0 %1861
    %1863 = vrot.lane.b32.xlu0 %v1829, 16
    %v1864 = vpop.permute.xlu0 %1863
    %1865 = vrot.lane.b32.xlu0 %v1830, 16
    %v1866 = vpop.permute.xlu0 %1865
    %1867 = vrot.lane.b32.xlu0 %v1831, 16
    %v1868 = vpop.permute.xlu0 %1867
    %1869 = vrot.lane.b32.xlu0 %v1832, 16
    %v1870 = vpop.permute.xlu0 %1869
    %1871 = vrot.lane.b32.xlu0 %v1833, 16
    %v1872 = vpop.permute.xlu0 %1871
    %1873 = vrot.lane.b32.xlu0 %v1834, 16
    %v1874 = vpop.permute.xlu0 %1873
    %1875 = vrot.lane.b32.xlu0 %v1835, 16
    %v1876 = vpop.permute.xlu0 %1875
    %1877 = vrot.lane.b32.xlu0 %v1836, 16
    %v1878 = vpop.permute.xlu0 %1877
    %1879 = vrot.lane.b32.xlu0 %v1837, 16
    %v1880 = vpop.permute.xlu0 %1879
    %1881 = vrot.lane.b32.xlu0 %v1838, 16
    %v1882 = vpop.permute.xlu0 %1881
    %1883 = vrot.lane.b32.xlu0 %v1839, 16
    %v1884 = vpop.permute.xlu0 %1883
    %1885 = vrot.lane.b32.xlu0 %v1840, 16
    %v1886 = vpop.permute.xlu0 %1885
    %1887 = vrot.lane.b32.xlu0 %v1841, 16
    %v1888 = vpop.permute.xlu0 %1887
    %1889 = vrot.lane.b32.xlu0 %v1842, 16
    %v1890 = vpop.permute.xlu0 %1889
    %v1907 = vadd.f32 %v1747, %v1860
    %v1908 = vadd.f32 %v1748, %v1862
    %v1909 = vadd.f32 %v1749, %v1864
    %v1910 = vadd.f32 %v1750, %v1866
    %v1911 = vadd.f32 %v1751, %v1868
    %v1912 = vadd.f32 %v1752, %v1870
    %v1913 = vadd.f32 %v1753, %v1872
    %v1914 = vadd.f32 %v1754, %v1874
    %v1915 = vadd.f32 %v1755, %v1876
    %v1916 = vadd.f32 %v1756, %v1878
    %v1917 = vadd.f32 %v1757, %v1880
    %v1918 = vadd.f32 %v1758, %v1882
    %v1919 = vadd.f32 %v1759, %v1884
    %v1920 = vadd.f32 %v1760, %v1886
    %v1921 = vadd.f32 %v1761, %v1888
    %v1922 = vadd.f32 %v1762, %v1890
    %v1923 = vtanh.pop %v1907
    %v1924 = vtanh.pop %v1908
    %v1925 = vtanh.pop %v1909
    %v1926 = vtanh.pop %v1910
    %v1927 = vtanh.pop %v1911
    %v1928 = vtanh.pop %v1912
    %v1929 = vtanh.pop %v1913
    %v1930 = vtanh.pop %v1914
    %v1931 = vtanh.pop %v1915
    %v1932 = vtanh.pop %v1916
    %v1933 = vtanh.pop %v1917
    %v1934 = vtanh.pop %v1918
    %v1935 = vtanh.pop %v1919
    %v1936 = vtanh.pop %v1920
    %v1937 = vtanh.pop %v1921
    %v1938 = vtanh.pop %v1922
    %1955 = vrot.lane.b32.xlu0 %v1923, 32
    %v1956 = vpop.permute.xlu0 %1955
    %1957 = vrot.lane.b32.xlu0 %v1924, 32
    %v1958 = vpop.permute.xlu0 %1957
    %1959 = vrot.lane.b32.xlu0 %v1925, 32
    %v1960 = vpop.permute.xlu0 %1959
    %1961 = vrot.lane.b32.xlu0 %v1926, 32
    %v1962 = vpop.permute.xlu0 %1961
    %1963 = vrot.lane.b32.xlu0 %v1927, 32
    %v1964 = vpop.permute.xlu0 %1963
    %1965 = vrot.lane.b32.xlu0 %v1928, 32
    %v1966 = vpop.permute.xlu0 %1965
    %1967 = vrot.lane.b32.xlu0 %v1929, 32
    %v1968 = vpop.permute.xlu0 %1967
    %1969 = vrot.lane.b32.xlu0 %v1930, 32
    %v1970 = vpop.permute.xlu0 %1969
    %1971 = vrot.lane.b32.xlu0 %v1931, 32
    %v1972 = vpop.permute.xlu0 %1971
    %1973 = vrot.lane.b32.xlu0 %v1932, 32
    %v1974 = vpop.permute.xlu0 %1973
    %1975 = vrot.lane.b32.xlu0 %v1933, 32
    %v1976 = vpop.permute.xlu0 %1975
    %1977 = vrot.lane.b32.xlu0 %v1934, 32
    %v1978 = vpop.permute.xlu0 %1977
    %1979 = vrot.lane.b32.xlu0 %v1935, 32
    %v1980 = vpop.permute.xlu0 %1979
    %1981 = vrot.lane.b32.xlu0 %v1936, 32
    %v1982 = vpop.permute.xlu0 %1981
    %1983 = vrot.lane.b32.xlu0 %v1937, 32
    %v1984 = vpop.permute.xlu0 %1983
    %1985 = vrot.lane.b32.xlu0 %v1938, 32
    %v1986 = vpop.permute.xlu0 %1985
    %v2003 = vmul.f32 %v1505, %v1956
    %v2004 = vmul.f32 %v1520, %v1958
    %v2005 = vmul.f32 %v1535, %v1960
    %v2006 = vmul.f32 %v1550, %v1962
    %v2007 = vmul.f32 %v1565, %v1964
    %v2008 = vmul.f32 %v1580, %v1966
    %v2009 = vmul.f32 %v1595, %v1968
    %v2010 = vmul.f32 %v1610, %v1970
    %v2011 = vmul.f32 %v1625, %v1972
    %v2012 = vmul.f32 %v1640, %v1974
    %v2013 = vmul.f32 %v1655, %v1976
    %v2014 = vmul.f32 %v1670, %v1978
    %v2015 = vmul.f32 %v1685, %v1980
    %v2016 = vmul.f32 %v1700, %v1982
    %v2017 = vmul.f32 %v1715, %v1984
    %v2018 = vmul.f32 %v1730, %v1986
    %v2019 = vpack.c.bf16 %v2003, %v2003
    %v2020 = vpack.c.bf16 %v2004, %v2004
    %v2021 = vpack.c.bf16 %v2005, %v2005
    %v2022 = vpack.c.bf16 %v2006, %v2006
    %v2023 = vpack.c.bf16 %v2007, %v2007
    %v2024 = vpack.c.bf16 %v2008, %v2008
    %v2025 = vpack.c.bf16 %v2009, %v2009
    %v2026 = vpack.c.bf16 %v2010, %v2010
    %v2027 = vpack.c.bf16 %v2011, %v2011
    %v2028 = vpack.c.bf16 %v2012, %v2012
    %v2029 = vpack.c.bf16 %v2013, %v2013
    %v2030 = vpack.c.bf16 %v2014, %v2014
    %v2031 = vpack.c.bf16 %v2015, %v2015
    %v2032 = vpack.c.bf16 %v2016, %v2016
    %v2033 = vpack.c.bf16 %v2017, %v2017
    %v2034 = vpack.c.bf16 %v2018, %v2018
    %s2035 = smul.u32 %s158, 128
    %s2036 = scalar_lea.vmem %s6, %s2035
    %v2037 = vld [vmem:[%s2036] sm:$0xff]
    %v2038 = vld [vmem:[%s2036 + $0x8] sm:$0xff]
    %v2039 = vld [vmem:[%s2036 + $0x10] sm:$0xff]
    %v2040 = vld [vmem:[%s2036 + $0x18] sm:$0xff]
    %v2041 = vld [vmem:[%s2036 + $0x20] sm:$0xff]
    %v2042 = vld [vmem:[%s2036 + $0x28] sm:$0xff]
    %v2043 = vld [vmem:[%s2036 + $0x30] sm:$0xff]
    %v2044 = vld [vmem:[%s2036 + $0x38] sm:$0xff]
    %v2045 = vld [vmem:[%s2036 + $0x40] sm:$0xff]
    %v2046 = vld [vmem:[%s2036 + $0x48] sm:$0xff]
    %v2047 = vld [vmem:[%s2036 + $0x50] sm:$0xff]
    %v2048 = vld [vmem:[%s2036 + $0x58] sm:$0xff]
    %v2049 = vld [vmem:[%s2036 + $0x60] sm:$0xff]
    %v2050 = vld [vmem:[%s2036 + $0x68] sm:$0xff]
    %v2051 = vld [vmem:[%s2036 + $0x70] sm:$0xff]
    %v2052 = vld [vmem:[%s2036 + $0x78] sm:$0xff]
    %v2053 = vld [vmem:[%s4] sm:$0xf]
    %v2054 = vld [vmem:[%s4 + $0x4] sm:$0xf]
    %v2071 = vunpack.c.l.b16 %v1411
    %v2072 = vunpack.c.l.b16 %v1412
    %v2073 = vunpack.c.l.b16 %v1413
    %v2074 = vunpack.c.l.b16 %v1414
    %v2075 = vunpack.c.l.b16 %v1415
    %v2076 = vunpack.c.l.b16 %v1416
    %v2077 = vunpack.c.l.b16 %v1417
    %v2078 = vunpack.c.l.b16 %v1418
    %v2079 = vunpack.c.l.b16 %v1419
    %v2080 = vunpack.c.l.b16 %v1420
    %v2081 = vunpack.c.l.b16 %v1421
    %v2082 = vunpack.c.l.b16 %v1422
    %v2083 = vunpack.c.l.b16 %v1423
    %v2084 = vunpack.c.l.b16 %v1424
    %v2085 = vunpack.c.l.b16 %v1425
    %v2086 = vunpack.c.l.b16 %v1426
    %v2087 = vpack.c.b16 %v2072, %v2071
    %v2088 = vpack.c.b16 %v2074, %v2073
    %v2089 = vpack.c.b16 %v2076, %v2075
    %v2090 = vpack.c.b16 %v2078, %v2077
    %v2091 = vpack.c.b16 %v2080, %v2079
    %v2092 = vpack.c.b16 %v2082, %v2081
    %v2093 = vpack.c.b16 %v2084, %v2083
    %v2094 = vpack.c.b16 %v2086, %v2085
    %2095 = vrot.lane.b32.xlu0 %v2087, 80
    %v2096 = vpop.permute.xlu0 %2095
    %2097 = vrot.lane.b32.xlu0 %v2088, 80
    %v2098 = vpop.permute.xlu0 %2097
    %2099 = vrot.lane.b32.xlu0 %v2089, 80
    %v2100 = vpop.permute.xlu0 %2099
    %2101 = vrot.lane.b32.xlu0 %v2090, 80
    %v2102 = vpop.permute.xlu0 %2101
    %2103 = vrot.lane.b32.xlu0 %v2091, 80
    %v2104 = vpop.permute.xlu0 %2103
    %2105 = vrot.lane.b32.xlu0 %v2092, 80
    %v2106 = vpop.permute.xlu0 %2105
    %2107 = vrot.lane.b32.xlu0 %v2093, 80
    %v2108 = vpop.permute.xlu0 %2107
    %2109 = vrot.lane.b32.xlu0 %v2094, 80
    %v2110 = vpop.permute.xlu0 %2109
    %v2113 = vunpack.c.l.b16 %v2053
    %v2114 = vunpack.c.l.b16 %v2054
    %v2115 = vpack.c.b16 %v2114, %v2113
    %v2118 = vsel %vm331, %v2096, 0
    %v2121 = vsel %vm331, %v2098, 0
    %v2124 = vsel %vm331, %v2100, 0
    %v2127 = vsel %vm331, %v2102, 0
    %v2130 = vsel %vm331, %v2104, 0
    %v2133 = vsel %vm331, %v2106, 0
    %v2136 = vsel %vm331, %v2108, 0
    %v2139 = vsel %vm331, %v2110, 0
    %2141 = vmatpush.bf16.msra.mxu0 0
    %2142 = vmatpush.bf16.msra.mxu0 0
    %2143 = vmatpush.bf16.msra.mxu0 0
    %2144 = vmatpush.bf16.msra.mxu0 0
    %2145 = vmatpush.bf16.msra.mxu0 0
    %2146 = vmatpush.bf16.msra.mxu0 0
    %2147 = vmatpush.bf16.msra.mxu0 0
    %2148 = vmatpush.bf16.msra.mxu0 %v2115
    %2149 = vmatmul.bf16.gmra.mxu0 %v2118
    %v2150 = vpop.f32.mrf.mxu0
    %v2151 = vadd.f32 0.0, %v2150
    %v2152 = vpop.f32.mrf.mxu0
    %v2153 = vadd.f32 0.0, %v2152
    %2154 = vmatmul.bf16.gmra.mxu0 %v2121
    %v2155 = vpop.f32.mrf.mxu0
    %v2156 = vadd.f32 0.0, %v2155
    %v2157 = vpop.f32.mrf.mxu0
    %v2158 = vadd.f32 0.0, %v2157
    %2159 = vmatmul.bf16.gmra.mxu0 %v2124
    %v2160 = vpop.f32.mrf.mxu0
    %v2161 = vadd.f32 0.0, %v2160
    %v2162 = vpop.f32.mrf.mxu0
    %v2163 = vadd.f32 0.0, %v2162
    %2164 = vmatmul.bf16.gmra.mxu0 %v2127
    %v2165 = vpop.f32.mrf.mxu0
    %v2166 = vadd.f32 0.0, %v2165
    %v2167 = vpop.f32.mrf.mxu0
    %v2168 = vadd.f32 0.0, %v2167
    %2169 = vmatmul.bf16.gmra.mxu0 %v2130
    %v2170 = vpop.f32.mrf.mxu0
    %v2171 = vadd.f32 0.0, %v2170
    %v2172 = vpop.f32.mrf.mxu0
    %v2173 = vadd.f32 0.0, %v2172
    %2174 = vmatmul.bf16.gmra.mxu0 %v2133
    %v2175 = vpop.f32.mrf.mxu0
    %v2176 = vadd.f32 0.0, %v2175
    %v2177 = vpop.f32.mrf.mxu0
    %v2178 = vadd.f32 0.0, %v2177
    %2179 = vmatmul.bf16.gmra.mxu0 %v2136
    %v2180 = vpop.f32.mrf.mxu0
    %v2181 = vadd.f32 0.0, %v2180
    %v2182 = vpop.f32.mrf.mxu0
    %v2183 = vadd.f32 0.0, %v2182
    %2184 = vmatmul.bf16.gmra.mxu0 %v2139
    %v2185 = vpop.f32.mrf.mxu0
    %v2186 = vadd.f32 0.0, %v2185
    %v2187 = vpop.f32.mrf.mxu0
    %v2188 = vadd.f32 0.0, %v2187
    %2189 = vdwg.mxu0
    %v2190 = vadd.f32 %v2037, %v2151
    %v2191 = vadd.f32 %v2038, %v2153
    %v2192 = vadd.f32 %v2039, %v2156
    %v2193 = vadd.f32 %v2040, %v2158
    %v2194 = vadd.f32 %v2041, %v2161
    %v2195 = vadd.f32 %v2042, %v2163
    %v2196 = vadd.f32 %v2043, %v2166
    %v2197 = vadd.f32 %v2044, %v2168
    %v2198 = vadd.f32 %v2045, %v2171
    %v2199 = vadd.f32 %v2046, %v2173
    %v2200 = vadd.f32 %v2047, %v2176
    %v2201 = vadd.f32 %v2048, %v2178
    %v2202 = vadd.f32 %v2049, %v2181
    %v2203 = vadd.f32 %v2050, %v2183
    %v2204 = vadd.f32 %v2051, %v2186
    %v2205 = vadd.f32 %v2052, %v2188
    %2206 = vst.msk [vmem:[%s2036] sm:$0xff] %vm28, %v2190
    %2207 = vst.msk [vmem:[%s2036 + $0x8] sm:$0xff] %vm28, %v2191
    %2208 = vst.msk [vmem:[%s2036 + $0x10] sm:$0xff] %vm28, %v2192
    %2209 = vst.msk [vmem:[%s2036 + $0x18] sm:$0xff] %vm28, %v2193
    %2210 = vst.msk [vmem:[%s2036 + $0x20] sm:$0xff] %vm28, %v2194
    %2211 = vst.msk [vmem:[%s2036 + $0x28] sm:$0xff] %vm28, %v2195
    %2212 = vst.msk [vmem:[%s2036 + $0x30] sm:$0xff] %vm28, %v2196
    %2213 = vst.msk [vmem:[%s2036 + $0x38] sm:$0xff] %vm28, %v2197
    %2214 = vst.msk [vmem:[%s2036 + $0x40] sm:$0xff] %vm28, %v2198
    %2215 = vst.msk [vmem:[%s2036 + $0x48] sm:$0xff] %vm28, %v2199
    %2216 = vst.msk [vmem:[%s2036 + $0x50] sm:$0xff] %vm28, %v2200
    %2217 = vst.msk [vmem:[%s2036 + $0x58] sm:$0xff] %vm28, %v2201
    %2218 = vst.msk [vmem:[%s2036 + $0x60] sm:$0xff] %vm28, %v2202
    %2219 = vst.msk [vmem:[%s2036 + $0x68] sm:$0xff] %vm28, %v2203
    %2220 = vst.msk [vmem:[%s2036 + $0x70] sm:$0xff] %vm28, %v2204
    %2221 = vst.msk [vmem:[%s2036 + $0x78] sm:$0xff] %vm28, %v2205
    %s2222 = smul.u32 %s227, 128
    %s2223 = scalar_lea.vmem %s6, %s2222
    %v2224 = vld [vmem:[%s2223] sm:$0xff]
    %v2225 = vld [vmem:[%s2223 + $0x8] sm:$0xff]
    %v2226 = vld [vmem:[%s2223 + $0x10] sm:$0xff]
    %v2227 = vld [vmem:[%s2223 + $0x18] sm:$0xff]
    %v2228 = vld [vmem:[%s2223 + $0x20] sm:$0xff]
    %v2229 = vld [vmem:[%s2223 + $0x28] sm:$0xff]
    %v2230 = vld [vmem:[%s2223 + $0x30] sm:$0xff]
    %v2231 = vld [vmem:[%s2223 + $0x38] sm:$0xff]
    %v2232 = vld [vmem:[%s2223 + $0x40] sm:$0xff]
    %v2233 = vld [vmem:[%s2223 + $0x48] sm:$0xff]
    %v2234 = vld [vmem:[%s2223 + $0x50] sm:$0xff]
    %v2235 = vld [vmem:[%s2223 + $0x58] sm:$0xff]
    %v2236 = vld [vmem:[%s2223 + $0x60] sm:$0xff]
    %v2237 = vld [vmem:[%s2223 + $0x68] sm:$0xff]
    %v2238 = vld [vmem:[%s2223 + $0x70] sm:$0xff]
    %v2239 = vld [vmem:[%s2223 + $0x78] sm:$0xff]
    %s2240 = scalar_lea.vmem %s4, 8
    %v2241 = vld [vmem:[%s2240] sm:$0xf]
    %v2242 = vld [vmem:[%s2240 + $0x4] sm:$0xf]
    %v2259 = vunpack.c.l.b16 %v2019
    %v2260 = vunpack.c.l.b16 %v2020
    %v2261 = vunpack.c.l.b16 %v2021
    %v2262 = vunpack.c.l.b16 %v2022
    %v2263 = vunpack.c.l.b16 %v2023
    %v2264 = vunpack.c.l.b16 %v2024
    %v2265 = vunpack.c.l.b16 %v2025
    %v2266 = vunpack.c.l.b16 %v2026
    %v2267 = vunpack.c.l.b16 %v2027
    %v2268 = vunpack.c.l.b16 %v2028
    %v2269 = vunpack.c.l.b16 %v2029
    %v2270 = vunpack.c.l.b16 %v2030
    %v2271 = vunpack.c.l.b16 %v2031
    %v2272 = vunpack.c.l.b16 %v2032
    %v2273 = vunpack.c.l.b16 %v2033
    %v2274 = vunpack.c.l.b16 %v2034
    %v2275 = vpack.c.b16 %v2260, %v2259
    %v2276 = vpack.c.b16 %v2262, %v2261
    %v2277 = vpack.c.b16 %v2264, %v2263
    %v2278 = vpack.c.b16 %v2266, %v2265
    %v2279 = vpack.c.b16 %v2268, %v2267
    %v2280 = vpack.c.b16 %v2270, %v2269
    %v2281 = vpack.c.b16 %v2272, %v2271
    %v2282 = vpack.c.b16 %v2274, %v2273
    %2283 = vrot.lane.b32.xlu0 %v2275, 80
    %v2284 = vpop.permute.xlu0 %2283
    %2285 = vrot.lane.b32.xlu0 %v2276, 80
    %v2286 = vpop.permute.xlu0 %2285
    %2287 = vrot.lane.b32.xlu0 %v2277, 80
    %v2288 = vpop.permute.xlu0 %2287
    %2289 = vrot.lane.b32.xlu0 %v2278, 80
    %v2290 = vpop.permute.xlu0 %2289
    %2291 = vrot.lane.b32.xlu0 %v2279, 80
    %v2292 = vpop.permute.xlu0 %2291
    %2293 = vrot.lane.b32.xlu0 %v2280, 80
    %v2294 = vpop.permute.xlu0 %2293
    %2295 = vrot.lane.b32.xlu0 %v2281, 80
    %v2296 = vpop.permute.xlu0 %2295
    %2297 = vrot.lane.b32.xlu0 %v2282, 80
    %v2298 = vpop.permute.xlu0 %2297
    %v2301 = vunpack.c.l.b16 %v2241
    %v2302 = vunpack.c.l.b16 %v2242
    %v2303 = vpack.c.b16 %v2302, %v2301
    %v2306 = vsel %vm331, %v2284, 0
    %v2309 = vsel %vm331, %v2286, 0
    %v2312 = vsel %vm331, %v2288, 0
    %v2315 = vsel %vm331, %v2290, 0
    %v2318 = vsel %vm331, %v2292, 0
    %v2321 = vsel %vm331, %v2294, 0
    %v2324 = vsel %vm331, %v2296, 0
    %v2327 = vsel %vm331, %v2298, 0
    %2329 = vmatpush.bf16.msra.mxu0 0
    %2330 = vmatpush.bf16.msra.mxu0 0
    %2331 = vmatpush.bf16.msra.mxu0 0
    %2332 = vmatpush.bf16.msra.mxu0 0
    %2333 = vmatpush.bf16.msra.mxu0 0
    %2334 = vmatpush.bf16.msra.mxu0 0
    %2335 = vmatpush.bf16.msra.mxu0 0
    %2336 = vmatpush.bf16.msra.mxu0 %v2303
    %2337 = vmatmul.bf16.gmra.mxu0 %v2306
    %v2338 = vpop.f32.mrf.mxu0
    %v2339 = vadd.f32 0.0, %v2338
    %v2340 = vpop.f32.mrf.mxu0
    %v2341 = vadd.f32 0.0, %v2340
    %2342 = vmatmul.bf16.gmra.mxu0 %v2309
    %v2343 = vpop.f32.mrf.mxu0
    %v2344 = vadd.f32 0.0, %v2343
    %v2345 = vpop.f32.mrf.mxu0
    %v2346 = vadd.f32 0.0, %v2345
    %2347 = vmatmul.bf16.gmra.mxu0 %v2312
    %v2348 = vpop.f32.mrf.mxu0
    %v2349 = vadd.f32 0.0, %v2348
    %v2350 = vpop.f32.mrf.mxu0
    %v2351 = vadd.f32 0.0, %v2350
    %2352 = vmatmul.bf16.gmra.mxu0 %v2315
    %v2353 = vpop.f32.mrf.mxu0
    %v2354 = vadd.f32 0.0, %v2353
    %v2355 = vpop.f32.mrf.mxu0
    %v2356 = vadd.f32 0.0, %v2355
    %2357 = vmatmul.bf16.gmra.mxu0 %v2318
    %v2358 = vpop.f32.mrf.mxu0
    %v2359 = vadd.f32 0.0, %v2358
    %v2360 = vpop.f32.mrf.mxu0
    %v2361 = vadd.f32 0.0, %v2360
    %2362 = vmatmul.bf16.gmra.mxu0 %v2321
    %v2363 = vpop.f32.mrf.mxu0
    %v2364 = vadd.f32 0.0, %v2363
    %v2365 = vpop.f32.mrf.mxu0
    %v2366 = vadd.f32 0.0, %v2365
    %2367 = vmatmul.bf16.gmra.mxu0 %v2324
    %v2368 = vpop.f32.mrf.mxu0
    %v2369 = vadd.f32 0.0, %v2368
    %v2370 = vpop.f32.mrf.mxu0
    %v2371 = vadd.f32 0.0, %v2370
    %2372 = vmatmul.bf16.gmra.mxu0 %v2327
    %v2373 = vpop.f32.mrf.mxu0
    %v2374 = vadd.f32 0.0, %v2373
    %v2375 = vpop.f32.mrf.mxu0
    %v2376 = vadd.f32 0.0, %v2375
    %2377 = vdwg.mxu0
    %v2378 = vadd.f32 %v2224, %v2339
    %v2379 = vadd.f32 %v2225, %v2341
    %v2380 = vadd.f32 %v2226, %v2344
    %v2381 = vadd.f32 %v2227, %v2346
    %v2382 = vadd.f32 %v2228, %v2349
    %v2383 = vadd.f32 %v2229, %v2351
    %v2384 = vadd.f32 %v2230, %v2354
    %v2385 = vadd.f32 %v2231, %v2356
    %v2386 = vadd.f32 %v2232, %v2359
    %v2387 = vadd.f32 %v2233, %v2361
    %v2388 = vadd.f32 %v2234, %v2364
    %v2389 = vadd.f32 %v2235, %v2366
    %v2390 = vadd.f32 %v2236, %v2369
    %v2391 = vadd.f32 %v2237, %v2371
    %v2392 = vadd.f32 %v2238, %v2374
    %v2393 = vadd.f32 %v2239, %v2376
    %2394 = vst.msk [vmem:[%s2223] sm:$0xff] %vm28, %v2378
    %2395 = vst.msk [vmem:[%s2223 + $0x8] sm:$0xff] %vm28, %v2379
    %2396 = vst.msk [vmem:[%s2223 + $0x10] sm:$0xff] %vm28, %v2380
    %2397 = vst.msk [vmem:[%s2223 + $0x18] sm:$0xff] %vm28, %v2381
    %2398 = vst.msk [vmem:[%s2223 + $0x20] sm:$0xff] %vm28, %v2382
    %2399 = vst.msk [vmem:[%s2223 + $0x28] sm:$0xff] %vm28, %v2383
    %2400 = vst.msk [vmem:[%s2223 + $0x30] sm:$0xff] %vm28, %v2384
    %2401 = vst.msk [vmem:[%s2223 + $0x38] sm:$0xff] %vm28, %v2385
    %2402 = vst.msk [vmem:[%s2223 + $0x40] sm:$0xff] %vm28, %v2386
    %2403 = vst.msk [vmem:[%s2223 + $0x48] sm:$0xff] %vm28, %v2387
    %2404 = vst.msk [vmem:[%s2223 + $0x50] sm:$0xff] %vm28, %v2388
    %2405 = vst.msk [vmem:[%s2223 + $0x58] sm:$0xff] %vm28, %v2389
    %2406 = vst.msk [vmem:[%s2223 + $0x60] sm:$0xff] %vm28, %v2390
    %2407 = vst.msk [vmem:[%s2223 + $0x68] sm:$0xff] %vm28, %v2391
    %2408 = vst.msk [vmem:[%s2223 + $0x70] sm:$0xff] %vm28, %v2392
    %2409 = vst.msk [vmem:[%s2223 + $0x78] sm:$0xff] %vm28, %v2393
  $region30: #{dp_wrapper_forward.18} parent=0 // loop_footer
    %s162 = sadd.s32 1, %s158
  $region31: #{dp_wrapper_forward.18} parent=0 // loop_footer_branch
    %157 = sbr.rel target = $region27
  $region32: #{dp_wrapper_forward.18} parent=0 // loop_exit
    _
  // Predicated region
  $region33: #{dp_wrapper_forward.18} parent=0 // pred_check
    _
  $region34: #{dp_wrapper_forward.18} parent=0 // pred_check_branch
    %2411 = sbr.rel (0) target = $region36
  $region35: #{dp_wrapper_forward.18} parent=0 // pred_region
    _
  $region36: #{dp_wrapper_forward.18} parent=0 // pred_fallthru
    _
  // Predicated region
  $region37: #{dp_wrapper_forward.18} parent=0 // pred_check
    _
  $region38: #{dp_wrapper_forward.18} parent=0 // pred_check_branch
    %2413 = sbr.rel (0) target = $region40
  $region39: #{dp_wrapper_forward.18} parent=0 // pred_region
    _
  $region40: #{dp_wrapper_forward.18} parent=0 // pred_fallthru
    _

// kernel: dp_wrapper_forward.29
$region0: #{dp_wrapper_forward.29}
  #allocation0 [shape = 'u32[]', space=smem, size = 0x4, offset = 0x4, fixed_abs, tag = 'smem constant byte address 0x4 - core index']
  #allocation1 [shape = 'u32[72,128]{1,0:T(1,128)}', space=vmem, size = 0x9000, scoped, tag = 'internal scratch']
  #allocation2 [shape = 'f32[1]{0:T(128)S(6)}', space=smem, size = 0x200, scoped, tag = 'scoped memory for dp_wrapper_forward.29']
  %s0 = inlined_call_operand.vmem [shape: f32[2,16,128], index: 0, kind: input, shape index: {}]
  %s1 = inlined_call_operand.vmem [shape: bf16[32,16], index: 1, kind: input, shape index: {}]
  %s2 = inlined_call_operand.vmem [shape: f32[32,1], index: 2, kind: input, shape index: {}]
  %s3 = inlined_call_operand.<no memory space> [shape: f32[1], index: 3, kind: input, shape index: {}]
  %s4 = inlined_call_operand.vmem [shape: f32[2,32,128], index: 4, kind: output, shape index: {}]
  %s5 = sld [smem:[#allocation0]]
  $region49: #{dp_wrapper_forward.29} parent=0
    _
  %s7 = ssub.s32 1, %s5
  %s8 = scalar_select 0, %s7, %s5
  %9 = sst [smem:[#allocation2]] %s3
  loop: start=0, step=1, limit=4
  $region2: #{dp_wrapper_forward.29} parent=0 // loop_pre_header
    _
  $region3: #{dp_wrapper_forward.29} parent=0 // loop_header
    %s11 = sphi 0, %s15
    %p12 = scmp.ge.s32.totalorder %s11, 4
    %s18 = sphi 0, %s30
    %s19 = sphi 0, %s26
    %s20 = sphi 0, %s18
    %s21 = sphi 0, %s19
    %s22 = sphi 0, %s20
    %s23 = sphi 0, %s21
    %s35 = sphi 0, %s37
    %s38 = sphi 0, %s35
    %s39 = sphi 0, %s38
    %s55 = sphi 0, %s39
    %s59 = sphi 0, %s59
    %s61 = sphi 0, %s59
    %s62 = sphi 0, %s61
    %s76 = sphi 0, %s62
    %s80 = sphi 0, %s80
    %s82 = sphi 0, %s80
    %s83 = sphi 0, %s82
    %s97 = sphi 0, %s83
    %s101 = sphi 0, %s101
    %s103 = sphi 0, %s101
    %s104 = sphi 0, %s103
    %s118 = sphi 0, %s104
    %s126 = sphi 0, %s128
    %s129 = sphi 0, %s126
    %s130 = sphi 0, %s129
    %s146 = sphi 0, %s130
  $region4: #{dp_wrapper_forward.29} parent=0 // loop_header_branch
    %14 = sbr.rel (%p12) target = $region8
  $region5: #{dp_wrapper_forward.29} parent=0 // loop_body
    %s16 = ssub.s32 %s11, 1
    %s17 = ssub.s32 %s11, 2
    %s24 = sadd.s32 1, %s19
    %p25 = scmp.ge.s32.totalorder %s24, 1
    %s26 = scalar_select %p25, 0, %s24
    %s27 = sadd.s32 1, %s18
    %s28 = scalar_select %p25, %s27, %s18
    %p29 = scmp.ge.s32.totalorder %s28, 2
    %s30 = scalar_select %p29, 0, %s28
    %s31 = ssub.s32 %s18, %s30
    %s32 = ssub.s32 %s19, %s26
    %s33 = sor.u32 %s31, %s32
    %p34 = scmp.eq.s32.totalorder %s33, 0
    %s36 = sadd.s32 %s35, 1
    %s37 = scalar_select %p34, %s35, %s36
    %p40 = pneg %p34
    %p41 = scmp.eq.s32.totalorder %s11, 1
    %p42 = por %p40, %p41
    %p43 = scmp.ne.s32.totalorder %s35, %s38
    %p44 = scmp.eq.s32.totalorder %s11, 0
    %p45 = por %p43, %p44
    %p46 = scmp.ne.s32.totalorder %s35, %s38
    %p47 = scmp.eq.s32.totalorder %s16, 1
    %p48 = por %p46, %p47
    %p49 = scmp.ne.s32.totalorder %s38, %s39
    %p50 = scmp.eq.s32.totalorder %s16, 0
    %p51 = por %p49, %p50
    %p52 = scmp.ne.s32.totalorder %s38, %s39
    %p53 = scmp.eq.s32.totalorder %s17, 1
    %p54 = por %p52, %p53
    %p56 = scmp.ne.s32.totalorder %s39, %s55
    %p57 = scmp.eq.s32.totalorder %s17, 0
    %p58 = por %p56, %p57
    %s60 = sadd.s32 %s59, 1
    %p63 = scmp.eq.s32.totalorder %s11, 1
    %p64 = scmp.ne.s32.totalorder %s59, %s61
    %p65 = scmp.eq.s32.totalorder %s11, 0
    %p66 = por %p64, %p65
    %p67 = scmp.ne.s32.totalorder %s59, %s61
    %p68 = scmp.eq.s32.totalorder %s16, 1
    %p69 = por %p67, %p68
    %p70 = scmp.ne.s32.totalorder %s61, %s62
    %p71 = scmp.eq.s32.totalorder %s16, 0
    %p72 = por %p70, %p71
    %p73 = scmp.ne.s32.totalorder %s61, %s62
    %p74 = scmp.eq.s32.totalorder %s17, 1
    %p75 = por %p73, %p74
    %p77 = scmp.ne.s32.totalorder %s62, %s76
    %p78 = scmp.eq.s32.totalorder %s17, 0
    %p79 = por %p77, %p78
    %s81 = sadd.s32 %s80, 1
    %p84 = scmp.eq.s32.totalorder %s11, 1
    %p85 = scmp.ne.s32.totalorder %s80, %s82
    %p86 = scmp.eq.s32.totalorder %s11, 0
    %p87 = por %p85, %p86
    %p88 = scmp.ne.s32.totalorder %s80, %s82
    %p89 = scmp.eq.s32.totalorder %s16, 1
    %p90 = por %p88, %p89
    %p91 = scmp.ne.s32.totalorder %s82, %s83
    %p92 = scmp.eq.s32.totalorder %s16, 0
    %p93 = por %p91, %p92
    %p94 = scmp.ne.s32.totalorder %s82, %s83
    %p95 = scmp.eq.s32.totalorder %s17, 1
    %p96 = por %p94, %p95
    %p98 = scmp.ne.s32.totalorder %s83, %s97
    %p99 = scmp.eq.s32.totalorder %s17, 0
    %p100 = por %p98, %p99
    %s102 = sadd.s32 %s101, 1
    %p105 = scmp.eq.s32.totalorder %s11, 1
    %p106 = scmp.ne.s32.totalorder %s101, %s103
    %p107 = scmp.eq.s32.totalorder %s11, 0
    %p108 = por %p106, %p107
    %p109 = scmp.ne.s32.totalorder %s101, %s103
    %p110 = scmp.eq.s32.totalorder %s16, 1
    %p111 = por %p109, %p110
    %p112 = scmp.ne.s32.totalorder %s103, %s104
    %p113 = scmp.eq.s32.totalorder %s16, 0
    %p114 = por %p112, %p113
    %p115 = scmp.ne.s32.totalorder %s103, %s104
    %p116 = scmp.eq.s32.totalorder %s17, 1
    %p117 = por %p115, %p116
    %p119 = scmp.ne.s32.totalorder %s104, %s118
    %p120 = scmp.eq.s32.totalorder %s17, 0
    %p121 = por %p119, %p120
    %s122 = ssub.s32 %s18, %s30
    %s123 = ssub.s32 %s19, %s26
    %s124 = sor.u32 %s122, %s123
    %p125 = scmp.eq.s32.totalorder %s124, 0
    %s127 = sadd.s32 %s126, 1
    %s128 = scalar_select %p125, %s126, %s127
    %p131 = pneg %p125
    %p132 = scmp.eq.s32.totalorder %s11, 1
    %p133 = por %p131, %p132
    %p134 = scmp.ne.s32.totalorder %s126, %s129
    %p135 = scmp.eq.s32.totalorder %s11, 0
    %p136 = por %p134, %p135
    %p137 = scmp.ne.s32.totalorder %s126, %s129
    %p138 = scmp.eq.s32.totalorder %s16, 1
    %p139 = por %p137, %p138
    %p140 = scmp.ne.s32.totalorder %s129, %s130
    %p141 = scmp.eq.s32.totalorder %s16, 0
    %p142 = por %p140, %p141
    %p143 = scmp.ne.s32.totalorder %s129, %s130
    %p144 = scmp.eq.s32.totalorder %s17, 1
    %p145 = por %p143, %p144
    %p147 = scmp.ne.s32.totalorder %s130, %s146
    %p148 = scmp.eq.s32.totalorder %s17, 0
    %p149 = por %p147, %p148
    %p150 = scmp.le.s32.totalorder 1, %s11
    %p151 = scmp.lt.s32.totalorder %s11, 3
    %p152 = pnand %p150, %p151
    %p153 = pneg %p152
    // Predicated region
    $region9: #{dp_wrapper_forward.29} parent=5 // pred_check
      _
    $region10: #{dp_wrapper_forward.29} parent=5 // pred_check_branch
      %155 = sbr.rel (%p152) target = $region12
    $region11: #{dp_wrapper_forward.29} parent=5 // pred_region
      %s156 = ssub.s32 %s11, 1
      // Predicated region
      $region13: #{dp_wrapper_forward.29} parent=11 // pred_check
        %p157 = pneg %p72
      $region14: #{dp_wrapper_forward.29} parent=11 // pred_check_branch
        %159 = sbr.rel (%p157) target = $region16
      $region15: #{dp_wrapper_forward.29} parent=11 // pred_region
        _
      $region16: #{dp_wrapper_forward.29} parent=11 // pred_fallthru
        _
      // Predicated region
      $region17: #{dp_wrapper_forward.29} parent=11 // pred_check
        %p160 = pneg %p93
      $region18: #{dp_wrapper_forward.29} parent=11 // pred_check_branch
        %162 = sbr.rel (%p160) target = $region20
      $region19: #{dp_wrapper_forward.29} parent=11 // pred_region
        _
      $region20: #{dp_wrapper_forward.29} parent=11 // pred_fallthru
        _
      // Predicated region
      $region21: #{dp_wrapper_forward.29} parent=11 // pred_check
        %p163 = pneg %p114
      $region22: #{dp_wrapper_forward.29} parent=11 // pred_check_branch
        %165 = sbr.rel (%p163) target = $region24
      $region23: #{dp_wrapper_forward.29} parent=11 // pred_region
        _
      $region24: #{dp_wrapper_forward.29} parent=11 // pred_fallthru
        _
    $region12: #{dp_wrapper_forward.29} parent=5 // pred_fallthru
      _
    %p166 = scmp.lt.s32.totalorder %s11, 2
    // Predicated region
    $region25: #{dp_wrapper_forward.29} parent=5 // pred_check
      %p167 = pneg %p166
    $region26: #{dp_wrapper_forward.29} parent=5 // pred_check_branch
      %169 = sbr.rel (%p167) target = $region28
    $region27: #{dp_wrapper_forward.29} parent=5 // pred_region
      // Predicated region
      $region29: #{dp_wrapper_forward.29} parent=27 // pred_check
        %p170 = pneg %p45
      $region30: #{dp_wrapper_forward.29} parent=27 // pred_check_branch
        %172 = sbr.rel (%p170) target = $region32
      $region31: #{dp_wrapper_forward.29} parent=27 // pred_region
        %p173 = scmp.lt.s32.totalorder %s18, 1
        %s174 = scalar_select %p173, %s18, 1
        %p175 = scmp.lt.s32.totalorder %s19, 0
        %s176 = scalar_select %p175, %s19, 0
        %s177 = smul.addr %s174, 2
        %s178 = sadd.s32 %s176, %s177
        %s179 = smul.addr %s178, 8
        %s180 = scalar_lea.vmem %s0, %s179
      $region32: #{dp_wrapper_forward.29} parent=27 // pred_fallthru
        _
    $region28: #{dp_wrapper_forward.29} parent=5 // pred_fallthru
      _
    %p181 = scmp.le.s32.totalorder 1, %s11
    %p182 = scmp.lt.s32.totalorder %s11, 3
    %p183 = pnand %p181, %p182
    %p184 = pneg %p183
    // Predicated region
    $region33: #{dp_wrapper_forward.29} parent=5 // pred_check
      _
    $region34: #{dp_wrapper_forward.29} parent=5 // pred_check_branch
      %186 = sbr.rel (%p183) target = $region36
    $region35: #{dp_wrapper_forward.29} parent=5 // pred_region
      %s187 = ssub.s32 %s11, 1
      %p188 = scmp.lt.s32.totalorder %s20, 1
      %s189 = scalar_select %p188, %s20, 1
      %p190 = scmp.lt.s32.totalorder %s21, 0
      %s191 = scalar_select %p190, %s21, 0
      %s192 = smul.addr %s189, 2
      %s193 = sadd.s32 %s191, %s192
      %s194 = smul.addr %s193, 8
      %s195 = scalar_lea.vmem %s0, %s194
      %p196 = pneg %p51
      %p197 = pneg %p48
      %p198 = pneg %p72
      %p199 = pneg %p69
      %p200 = pneg %p93
      %p201 = pneg %p90
      %p202 = pneg %p114
      %p203 = pneg %p111
      %p204 = pneg %p142
      %p205 = pneg %p139
      %p206 = scmp.lt.s32.totalorder %s20, 1
      %s207 = scalar_select %p206, %s20, 1
      %p208 = scmp.lt.s32.totalorder %s21, 0
      %s209 = scalar_select %p208, %s21, 0
      %s210 = smul.addr %s207, 4
      %s211 = sadd.s32 %s209, %s210
      %s212 = smul.addr %s211, 8
      %s213 = scalar_lea.vmem %s4, %s212
      %p214 = scmp.lt.s32.totalorder %s20, 1
      %s215 = scalar_select %p214, %s20, 1
      %p216 = scmp.lt.s32.totalorder %s21, 0
      %s217 = scalar_select %p216, %s21, 0
      %s218 = smul.addr %s215, 2
      %s219 = sadd.s32 %s217, %s218
      %s220 = smul.addr %s219, 8
      %s221 = scalar_lea.vmem %s0, %s220
      %p222 = scmp.lt.s32.totalorder %s20, 1
      %s223 = scalar_select %p222, %s20, 1
      %p224 = scmp.lt.s32.totalorder %s21, 0
      %s225 = scalar_select %p224, %s21, 0
      %s226 = smul.addr %s223, 4
      %s227 = sadd.s32 %s225, %s226
      %s228 = smul.addr %s227, 8
      %s229 = scalar_lea.vmem %s4, %s228
      %s231 = sld [smem:[#allocation2]]
      %v232 = vld [vmem:[%s221] sm:$0xff]
      %v233 = vld [vmem:[%s221 + $0x8] sm:$0xff]
      %vm234 = vcmp.ge.f32.partialorder %v232, 0.0
      %vm235 = vcmp.ge.f32.partialorder %v233, 0.0
      %v236 = vstv %s231
      %v237 = vmul.f32 %v236, %v232
      %v238 = vmul.f32 %v236, %v233
      %v239 = vsel %vm234, %v232, %v237
      %v240 = vsel %vm235, %v233, %v238
      %v241 = vld [vmem:[%s1] sm:$0xf]
      %v242 = vld [vmem:[%s1 + $0x4] sm:$0xf]
      %v243 = vld [vmem:[%s1 + $0x8] sm:$0xf]
      %v244 = vld [vmem:[%s1 + $0xc] sm:$0xf]
      %v245 = vpack.c.bf16 %v240, %v239
      %v246 = vld [vmem:[%s2] sm:$0xff]
      %v247 = vld [vmem:[%s2 + $0x8] sm:$0xff]
      %v248 = vld [vmem:[%s2 + $0x10] sm:$0xff]
      %v249 = vld [vmem:[%s2 + $0x18] sm:$0xff]
      %251 = vset.pattern.permute.xlu0 0
      %252 = vperm.xlu0 %251, %v246
      %v253 = vpop.permute.xlu0 %252
      %256 = vset.pattern.permute.xlu0 0
      %257 = vperm.xlu0 %256, %v247
      %v258 = vpop.permute.xlu0 %257
      %261 = vset.pattern.permute.xlu0 0
      %262 = vperm.xlu0 %261, %v248
      %v263 = vpop.permute.xlu0 %262
      %266 = vset.pattern.permute.xlu0 0
      %267 = vperm.xlu0 %266, %v249
      %v268 = vpop.permute.xlu0 %267
      %v274 = vunpack.c.l.b16 %v241
      %v275 = vunpack.c.l.b16 %v242
      %v276 = vunpack.c.l.b16 %v243
      %v277 = vunpack.c.l.b16 %v244
      %v278 = vpack.c.b16 %v275, %v274
      %v279 = vpack.c.b16 %v277, %v276
      %vm280 = vcmask 130048
      %v282 = vsel %vm280, %v278, 0
      %v285 = vsel %vm280, %v279, 0
      %287 = vmatpush.bf16.msra.mxu0 0
      %288 = vmatpush.bf16.msra.mxu0 0
      %289 = vmatpush.bf16.msra.mxu0 0
      %290 = vmatpush.bf16.msra.mxu0 0
      %291 = vmatpush.bf16.msra.mxu0 0
      %292 = vmatpush.bf16.msra.mxu0 0
      %293 = vmatpush.bf16.msra.mxu0 0
      %294 = vmatpush.bf16.msra.mxu0 %v245
      %295 = vmatmul.bf16.gmra.mxu0 %v282
      %v296 = vpop.f32.mrf.mxu0
      %v297 = vadd.f32 %v253, %v296
      %v298 = vpop.f32.mrf.mxu0
      %v299 = vadd.f32 %v258, %v298
      %300 = vmatmul.bf16.gmra.mxu0 %v285
      %v301 = vpop.f32.mrf.mxu0
      %v302 = vadd.f32 %v263, %v301
      %v303 = vpop.f32.mrf.mxu0
      %v304 = vadd.f32 %v268, %v303
      %305 = vdwg.mxu0
      %306 = vst [vmem:[%s229] sm:$0xff] %v297
      %307 = vst [vmem:[%s229 + $0x8] sm:$0xff] %v299
      %308 = vst [vmem:[%s229 + $0x10] sm:$0xff] %v302
      %309 = vst [vmem:[%s229 + $0x18] sm:$0xff] %v304
      %p310 = scmp.lt.s32.totalorder %s20, 1
      %s311 = scalar_select %p310, %s20, 1
      %p312 = scmp.lt.s32.totalorder %s21, 0
      %s313 = scalar_select %p312, %s21, 0
      %s314 = smul.addr %s311, 4
      %s315 = sadd.s32 %s313, %s314
      %s316 = smul.addr %s315, 8
      %s317 = scalar_lea.vmem %s4, %s316
      // Predicated region
      $region37: #{dp_wrapper_forward.29} parent=35 // pred_check
        %p318 = pneg %p139
      $region38: #{dp_wrapper_forward.29} parent=35 // pred_check_branch
        %320 = sbr.rel (%p318) target = $region40
      $region39: #{dp_wrapper_forward.29} parent=35 // pred_region
        _
      $region40: #{dp_wrapper_forward.29} parent=35 // pred_fallthru
        _
    $region36: #{dp_wrapper_forward.29} parent=5 // pred_fallthru
      _
    %p321 = scmp.le.s32.totalorder 2, %s11
    // Predicated region
    $region41: #{dp_wrapper_forward.29} parent=5 // pred_check
      %p322 = pneg %p321
    $region42: #{dp_wrapper_forward.29} parent=5 // pred_check_branch
      %324 = sbr.rel (%p322) target = $region44
    $region43: #{dp_wrapper_forward.29} parent=5 // pred_region
      %s325 = ssub.s32 %s11, 2
      // Predicated region
      $region45: #{dp_wrapper_forward.29} parent=43 // pred_check
        %p326 = pneg %p145
      $region46: #{dp_wrapper_forward.29} parent=43 // pred_check_branch
        %328 = sbr.rel (%p326) target = $region48
      $region47: #{dp_wrapper_forward.29} parent=43 // pred_region
        %p329 = scmp.lt.s32.totalorder %s22, 1
        %s330 = scalar_select %p329, %s22, 1
        %p331 = scmp.lt.s32.totalorder %s23, 0
        %s332 = scalar_select %p331, %s23, 0
        %s333 = smul.addr %s330, 4
        %s334 = sadd.s32 %s332, %s333
        %s335 = smul.addr %s334, 8
        %s336 = scalar_lea.vmem %s4, %s335
      $region48: #{dp_wrapper_forward.29} parent=43 // pred_fallthru
        _
    $region44: #{dp_wrapper_forward.29} parent=5 // pred_fallthru
      _
  $region6: #{dp_wrapper_forward.29} parent=0 // loop_footer
    %s15 = sadd.s32 1, %s11
  $region7: #{dp_wrapper_forward.29} parent=0 // loop_footer_branch
    %10 = sbr.rel target = $region3
  $region8: #{dp_wrapper_forward.29} parent=0 // loop_exit
    _

</llo_original>
